<compile_context>
chip_gen: v6e
topology: v6e:2x2x1
jax: 0.10.0
libtpu: 0.0.40
codegen_flags: <defaults>
</compile_context>

<pallas_src>
import math
from functools import partial

import jax
import jax.numpy as jnp
from jax.experimental import pallas as pl
from jax.experimental.pallas import tpu as pltpu

LN_EPS = 1e-5
_SQRT_HALF = 1.0 / math.sqrt(2.0)
_SQRT_2_OVER_PI = math.sqrt(2.0 / math.pi)
_VMEM_LIMIT = 64 * 1024 * 1024   # <= physical VMEM on v5e/v6e/v7x


def _softshrink(x, lambd):
    return jnp.where(x > lambd, x - lambd, jnp.where(x < -lambd, x + lambd, 0.0))


# ----------------------------- tiling helpers -----------------------------
def _pick_lane_tile(n, target=512):
    """Largest multiple of 128 that divides n, capped at target; untiled otherwise."""
    if n % 128 != 0:
        return n                      # full-dim block (always legal)
    t = min(target, n)
    t -= t % 128
    while n % t != 0:
        t -= 128
    return t


def _pick_sublane_tile(n, target=128):
    """Largest multiple of 8 that divides n, capped at target; untiled otherwise."""
    if n % 8 != 0:
        return n
    t = min(target, n)
    t -= t % 8
    while n % t != 0:
        t -= 8
    return t


def _spec_tile_and_pad(n):
    """(lane_tile, padded_total) for the packed spectrum: tile multiple of 128,
    padded_total multiple of tile, bounded padding waste."""
    if n <= 2048:
        t = ((n + 127) // 128) * 128
        return t, t
    for t in (1024, 512, 256):
        p = ((n + t - 1) // t) * t
        if p - n <= max(128, n // 8):
            return t, p
    t = 128
    return t, ((n + t - 1) // t) * t


# ----------------------------- LayerNorm over (H, W) (norm1) -----------------------------
def _ln_kernel(x_ref, w_ref, b_ref, o_ref):
    x = x_ref[0]                                        # [TC, HW] f32
    mean = jnp.mean(x, axis=-1, keepdims=True)
    var = jnp.mean(x * x, axis=-1, keepdims=True) - mean * mean   # single pass
    o_ref[0] = (x - mean) * jax.lax.rsqrt(var + LN_EPS) * w_ref[...] + b_ref[...]


def layernorm_hw(x, weight, bias):
    B, C, H, W = x.shape
    HW = H * W
    TC = _pick_sublane_tile(C, 128)
    x3 = x.reshape(B, C, HW)
    w2 = weight.reshape(1, HW)
    b2 = bias.reshape(1, HW)
    out = pl.pallas_call(
        _ln_kernel,
        out_shape=jax.ShapeDtypeStruct((B, C, HW), x.dtype),
        grid=(B, C // TC),
        in_specs=[
            pl.BlockSpec((1, TC, HW), lambda b, c: (b, c, 0)),
            pl.BlockSpec((1, HW), lambda b, c: (0, 0)),
            pl.BlockSpec((1, HW), lambda b, c: (0, 0)),
        ],
        out_specs=pl.BlockSpec((1, TC, HW), lambda b, c: (b, c, 0)),
        compiler_params=pltpu.CompilerParams(
            dimension_semantics=("parallel", "parallel"),
            vmem_limit_bytes=_VMEM_LIMIT),
    )(x3, w2, b2)
    return out.reshape(B, C, H, W)


# ----------------------------- AFNO spectral weight packing -----------------------------
def _block_mats(wr, wi):
    """Per-block complex weight [nb, din, dout] -> real left-mult matrix [nb, 2*dout, 2*din]
    with row/col packing [re; im]:  [[Wr^T, -Wi^T], [Wi^T, Wr^T]]."""
    wrT = jnp.transpose(wr, (0, 2, 1))
    wiT = jnp.transpose(wi, (0, 2, 1))
    top = jnp.concatenate([wrT, -wiT], axis=-1)
    bot = jnp.concatenate([wiT, wrT], axis=-1)
    return jnp.concatenate([top, bot], axis=-2)


def _block_diag(mats):
    """[nb, r, c] -> block-diagonal [nb*r, nb*c]."""
    nb = mats.shape[0]
    eye = jnp.eye(nb, dtype=mats.dtype)
    return jnp.einsum("kl,krc->krlc", eye, mats).reshape(nb * mats.shape[1],
                                                         nb * mats.shape[2])


def prepare_block_params(p, num_blocks, spectral_mode=None):
    """One-time (outside jit) packing of AFNO spectral weights and bf16 MLP weights."""
    C = p["mlp_w2"].shape[0]
    bs = C // num_blocks
    hidden = p["mlp_w1"].shape[0]
    if spectral_mode is None:
        # block-batched matmul once per-block K=2*bs is a healthy MXU contraction;
        # dense block-diagonal embed only for tiny blocks.
        spectral_mode = "block" if (bs >= 64 and (2 * bs) % 8 == 0) else "dense"
    assert spectral_mode in ("block", "dense")
    if spectral_mode == "block":
        assert (2 * bs) % 8 == 0, "block path needs 2*block_size divisible by 8"

    w1r, w1i = p["afno_w1"][..., 0], p["afno_w1"][..., 1]        # [nb, bs, hs]
    w2r, w2i = p["afno_w2"][..., 0], p["afno_w2"][..., 1]        # [nb, hs, bs]
    b1r = p["afno_b1"][..., 0].reshape(num_blocks, -1)           # [nb, hs]
    b1i = p["afno_b1"][..., 1].reshape(num_blocks, -1)
    b2r = p["afno_b2"][..., 0].reshape(num_blocks, -1)           # [nb, bs]
    b2i = p["afno_b2"][..., 1].reshape(num_blocks, -1)

    w1b = _block_mats(w1r, w1i)                                  # [nb, 2hs, 2bs]
    w2b = _block_mats(w2r, w2i)                                  # [nb, 2bs, 2hs]
    b1b = jnp.concatenate([b1r, b1i], axis=1)[..., None]         # [nb, 2hs, 1]
    b2b = jnp.concatenate([b2r, b2i], axis=1)[..., None]         # [nb, 2bs, 1]

    if spectral_mode == "dense":
        afno_w1 = _block_diag(w1b).astype(jnp.bfloat16)          # [nb*2hs, 2C]
        afno_w2 = _block_diag(w2b).astype(jnp.bfloat16)          # [2C, nb*2hs]
        afno_b1 = b1b.reshape(-1, 1)
        afno_b2 = b2b.reshape(-1, 1)
    else:
        afno_w1, afno_w2 = w1b.astype(jnp.bfloat16), w2b.astype(jnp.bfloat16)
        afno_b1, afno_b2 = b1b, b2b

    pd = {
        "afno_w1": afno_w1, "afno_b1": afno_b1,
        "afno_w2": afno_w2, "afno_b2": afno_b2,
        "mlp_w1": p["mlp_w1"].reshape(hidden, C).astype(jnp.bfloat16),
        "mlp_b1": p["mlp_b1"].reshape(hidden, 1),
        "mlp_w2": p["mlp_w2"].reshape(C, hidden).astype(jnp.bfloat16),
        "mlp_b2": p["mlp_b2"].reshape(C, 1),
    }
    return pd, spectral_mode


# ----------------------------- AFNO spectral kernels -----------------------------
def _afno_dense_kernel(x_ref, w1_ref, b1_ref, w2_ref, b2_ref, o_ref, *, lambd):
    x = x_ref[...].astype(jnp.bfloat16)                 # [2C, TN]
    o1 = jnp.dot(w1_ref[...], x, preferred_element_type=jnp.float32) + b1_ref[...]
    o1 = jnp.maximum(o1, 0.0)                           # ReLU on real & imag rows
    o2 = jnp.dot(w2_ref[...], o1.astype(jnp.bfloat16),
                 preferred_element_type=jnp.float32) + b2_ref[...]
    o_ref[...] = _softshrink(o2, lambd)


def _afno_block_kernel(x_ref, w1_ref, b1_ref, w2_ref, b2_ref, o_ref, *, lambd):
    x = x_ref[...].astype(jnp.bfloat16)                 # [2bs, TN]
    o1 = jnp.dot(w1_ref[0], x, preferred_element_type=jnp.float32) + b1_ref[0]
    o1 = jnp.maximum(o1, 0.0)
    o2 = jnp.dot(w2_ref[0], o1.astype(jnp.bfloat16),
                 preferred_element_type=jnp.float32) + b2_ref[0]
    o_ref[...] = _softshrink(o2, lambd)


def afno_spectral_dense(xpk, w1, b1, w2, b2, lambd, tile_n):
    twoC, Np = xpk.shape
    twoH = w1.shape[0]
    cost = pl.CostEstimate(
        flops=int(4 * Np * twoH * twoC),
        transcendentals=0,
        bytes_accessed=int(2 * twoC * Np * 4 + (w1.size + w2.size) * 2
                           + (b1.size + b2.size) * 4))
    return pl.pallas_call(
        partial(_afno_dense_kernel, lambd=lambd),
        out_shape=jax.ShapeDtypeStruct((twoC, Np), jnp.float32),
        grid=(Np // tile_n,),
        in_specs=[
            pl.BlockSpec((twoC, tile_n), lambda j: (0, j)),
            pl.BlockSpec((twoH, twoC), lambda j: (0, 0)),
            pl.BlockSpec((twoH, 1), lambda j: (0, 0)),
            pl.BlockSpec((twoC, twoH), lambda j: (0, 0)),
            pl.BlockSpec((twoC, 1), lambda j: (0, 0)),
        ],
        out_specs=pl.BlockSpec((twoC, tile_n), lambda j: (0, j)),
        compiler_params=pltpu.CompilerParams(
            dimension_semantics=("parallel",), vmem_limit_bytes=_VMEM_LIMIT),
        cost_estimate=cost,
    )(xpk, w1, b1, w2, b2)


def afno_spectral_block(xpk, w1, b1, w2, b2, lambd, tile_n):
    twoC, Np = xpk.shape
    nb, twoH, twoBS = w1.shape
    cost = pl.CostEstimate(
        flops=int(4 * Np * nb * twoH * twoBS),
        transcendentals=0,
        bytes_accessed=int(2 * twoC * Np * 4 + (w1.size + w2.size) * 2
                           + (b1.size + b2.size) * 4))
    return pl.pallas_call(
        partial(_afno_block_kernel, lambd=lambd),
        out_shape=jax.ShapeDtypeStruct((twoC, Np), jnp.float32),
        grid=(nb, Np // tile_n),
        in_specs=[
            pl.BlockSpec((twoBS, tile_n), lambda k, j: (k, j)),
            pl.BlockSpec((1, twoH, twoBS), lambda k, j: (k, 0, 0)),
            pl.BlockSpec((1, twoH, 1), lambda k, j: (k, 0, 0)),
            pl.BlockSpec((1, twoBS, twoH), lambda k, j: (k, 0, 0)),
            pl.BlockSpec((1, twoBS, 1), lambda k, j: (k, 0, 0)),
        ],
        out_specs=pl.BlockSpec((twoBS, tile_n), lambda k, j: (k, j)),
        compiler_params=pltpu.CompilerParams(
            dimension_semantics=("parallel", "parallel"), vmem_limit_bytes=_VMEM_LIMIT),
        cost_estimate=cost,
    )(xpk, w1, b1, w2, b2)


def _pack_spectral(xs):
    """complex [B, nb, bs, Hk, Wk] -> real [nb*2*bs, B*Hk*Wk] (batch folded into lanes)."""
    B, nb, bs, Hk, Wk = xs.shape
    xr = jnp.stack([jnp.real(xs), jnp.imag(xs)], axis=2)         # [B, nb, 2, bs, Hk, Wk]
    xr = jnp.transpose(xr, (1, 2, 3, 0, 4, 5))                   # [nb, 2, bs, B, Hk, Wk]
    return xr.reshape(nb * 2 * bs, B * Hk * Wk)


def _unpack_spectral(opk, B, nb, bs, Hk, Wk):
    o = opk[:, : B * Hk * Wk].reshape(nb, 2, bs, B, Hk, Wk)
    o = jnp.transpose(o, (3, 0, 1, 2, 4, 5))                     # [B, nb, 2, bs, Hk, Wk]
    return jax.lax.complex(o[:, :, 0], o[:, :, 1]).reshape(B, nb * bs, Hk, Wk)


def afno2d_filter(x_ln, pd, num_blocks, lambd, frac, spectral_mode):
    """Spectral part of DistributedAFNO2D (the '+ bias' residual is fused downstream)."""
    x = x_ln.astype(jnp.float32)
    B, C, H, W = x.shape
    bs = C // num_blocks
    Wc = W // 2 + 1
    total = H // 2 + 1
    kept = int(total * frac)
    h_lo, h_hi, w_hi = total - kept, min(total + kept, H), min(kept, Wc)
    Hk, Wk = h_hi - h_lo, w_hi

    xhat = jnp.fft.rfft2(x, s=(H, W), axes=(-2, -1), norm="ortho")
    xs = xhat.reshape(B, num_blocks, bs, H, Wc)[:, :, :, h_lo:h_hi, :w_hi]
    xpk = _pack_spectral(xs)                                     # [2C, B*Hk*Wk]
    Ntot = xpk.shape[1]
    tile_n, Np = _spec_tile_and_pad(Ntot)
    xpk = jnp.pad(xpk, ((0, 0), (0, Np - Ntot)))                 # lane-dense; exact (softshrink(0)=0)

    if spectral_mode == "block":
        opk = afno_spectral_block(xpk, pd["afno_w1"], pd["afno_b1"],
                                  pd["afno_w2"], pd["afno_b2"], lambd, tile_n)
    else:
        opk = afno_spectral_dense(xpk, pd["afno_w1"], pd["afno_b1"],
                                  pd["afno_w2"], pd["afno_b2"], lambd, tile_n)

    yk = _unpack_spectral(opk, B, num_blocks, bs, Hk, Wk)        # complex [B, C, Hk, Wk]
    yhat = jnp.pad(yk, ((0, 0), (0, 0), (h_lo, H - h_hi), (0, Wc - w_hi)))
    return jnp.fft.irfft2(yhat, s=(H, W), axes=(-2, -1), norm="ortho")


# ----------------------- Fused: residual adds + LayerNorm2 + MLP -----------------------
def _ln2_stats_kernel(y_ref, ln1_ref, x0_ref, mean_ref, rstd_ref, *, double_skip):
    t = y_ref[0] + ln1_ref[0]                           # filter output (y + ln1)
    if double_skip:
        t = t + x0_ref[0]                               # + residual
    mean = jnp.mean(t, axis=-1, keepdims=True)
    var = jnp.mean(t * t, axis=-1, keepdims=True) - mean * mean   # single pass
    mean_ref[0] = mean
    rstd_ref[0] = jax.lax.rsqrt(var + LN_EPS)


def _ln2_mlp_kernel(y_ref, ln1_ref, x0_ref, mean_ref, rstd_ref, lnw_ref, lnb_ref,
                    w1_ref, b1_ref, w2_ref, b2_ref, o_ref, *, double_skip):
    y = y_ref[0]                                        # AFNO spectral output   [C, TN]
    ln1 = ln1_ref[0]                                    # norm1 output (filter bias)
    x0 = x0_ref[0]                                      # block input
    filt = y + ln1                                      # DistributedAFNO2D output
    if double_skip:
        t = filt + x0                                   # x = filter(x) + residual
        res = t                                         # residual = x
    else:
        t = filt
        res = x0
    xn = (t - mean_ref[0]) * rstd_ref[0] * lnw_ref[...] + lnb_ref[...]
    # 1x1 convs as left-matmuls: channels on sublanes, spatial on lanes (lane-dense)
    h = jnp.dot(w1_ref[...], xn.astype(jnp.bfloat16),
                preferred_element_type=jnp.float32) + b1_ref[...]
    # tanh-form GELU: transcendental goes to the EUP slot
    h = 0.5 * h * (1.0 + jnp.tanh(_SQRT_2_OVER_PI * (h + 0.044715 * h * h * h)))
    out = jnp.dot(w2_ref[...], h.astype(jnp.bfloat16),
                  preferred_element_type=jnp.float32) + b2_ref[...]
    o_ref[0] = (out + res).astype(o_ref.dtype)          # trailing residual add fused


def fused_ln2_mlp(y3, ln13, x03, lnw, lnb, w1m, b1m, w2m, b2m, *, double_skip):
    B, C, HW = y3.shape
    hidden = w1m.shape[0]
    TC = _pick_sublane_tile(C, 128)
    TN = _pick_lane_tile(HW, 512)

    # prologue: per-(B,C) LN2 statistics so the matmul pass can tile HW freely
    mean, rstd = pl.pallas_call(
        partial(_ln2_stats_kernel, double_skip=double_skip),
        out_shape=(jax.ShapeDtypeStruct((B, C, 1), jnp.float32),
                   jax.ShapeDtypeStruct((B, C, 1), jnp.float32)),
        grid=(B, C // TC),
        in_specs=[
            pl.BlockSpec((1, TC, HW), lambda b, c: (b, c, 0)),
            pl.BlockSpec((1, TC, HW), lambda b, c: (b, c, 0)),
            pl.BlockSpec((1, TC, HW), lambda b, c: (b, c, 0)),
        ],
        out_specs=(pl.BlockSpec((1, TC, 1), lambda b, c: (b, c, 0)),
                   pl.BlockSpec((1, TC, 1), lambda b, c: (b, c, 0))),
        compiler_params=pltpu.CompilerParams(
            dimension_semantics=("parallel", "parallel"),
            vmem_limit_bytes=_VMEM_LIMIT),
    )(y3, ln13, x03)

    cost = pl.CostEstimate(
        flops=int(4 * B * hidden * C * HW),
        transcendentals=int(B * hidden * HW),
        bytes_accessed=int(7 * B * C * HW * 4
                           + (w1m.size + w2m.size) * 2
                           + (b1m.size + b2m.size + 2 * HW) * 4),
    )
    out = pl.pallas_call(
        partial(_ln2_mlp_kernel, double_skip=double_skip),
        out_shape=jax.ShapeDtypeStruct((B, C, HW), x03.dtype),
        grid=(B, HW // TN),
        in_specs=[
            pl.BlockSpec((1, C, TN), lambda b, j: (b, 0, j)),
            pl.BlockSpec((1, C, TN), lambda b, j: (b, 0, j)),
            pl.BlockSpec((1, C, TN), lambda b, j: (b, 0, j)),
            pl.BlockSpec((1, C, 1), lambda b, j: (b, 0, 0)),
            pl.BlockSpec((1, C, 1), lambda b, j: (b, 0, 0)),
            pl.BlockSpec((1, TN), lambda b, j: (0, j)),
            pl.BlockSpec((1, TN), lambda b, j: (0, j)),
            pl.BlockSpec((hidden, C), lambda b, j: (0, 0)),
            pl.BlockSpec((hidden, 1), lambda b, j: (0, 0)),
            pl.BlockSpec((C, hidden), lambda b, j: (0, 0)),
            pl.BlockSpec((C, 1), lambda b, j: (0, 0)),
        ],
        out_specs=pl.BlockSpec((1, C, TN), lambda b, j: (b, 0, j)),
        compiler_params=pltpu.CompilerParams(
            dimension_semantics=("parallel", "parallel"),
            vmem_limit_bytes=_VMEM_LIMIT),
        cost_estimate=cost,
    )(y3, ln13, x03, mean, rstd, lnw, lnb, w1m, b1m, w2m, b2m)
    return out


# ----------------------------- DistributedBlock forward (world_size=1) -----------------------------
def distributed_block_forward(x, p, pd, *, num_blocks, sparsity_threshold,
                              hard_thresholding_fraction, spectral_mode,
                              double_skip=True):
    B, C, H, W = x.shape
    HW = H * W

    # norm1 (Pallas, grid over (batch, channel tiles), channels-on-sublanes layout)
    x_ln1 = layernorm_hw(x, p["norm1_w"], p["norm1_b"])

    # AFNO spectral filter (FFTs in XLA, packed spectral MLP in Pallas)
    y = afno2d_filter(x_ln1, pd, num_blocks, sparsity_threshold,
                      hard_thresholding_fraction, spectral_mode)

    # Fused: (filter bias + residual adds) + norm2 + MLP + trailing residual
    out = fused_ln2_mlp(
        y.reshape(B, C, HW), x_ln1.reshape(B, C, HW), x.reshape(B, C, HW),
        p["norm2_w"].reshape(1, HW), p["norm2_b"].reshape(1, HW),
        pd["mlp_w1"], pd["mlp_b1"], pd["mlp_w2"], pd["mlp_b2"],
        double_skip=double_skip)
    # drop_path = Identity (drop_path=0.0), dropout = Identity (drop=0.0)
    return out.reshape(B, C, H, W).astype(x.dtype)


# ----------------------------- pure-JAX reference (sanity check) -----------------------------
def reference_forward(x, p, num_blocks, lambd, frac):
    def ln(z, w, b):
        mean = z.mean(axis=(-2, -1), keepdims=True)
        var = ((z - mean) ** 2).mean(axis=(-2, -1), keepdims=True)
        return (z - mean) / jnp.sqrt(var + LN_EPS) * w + b

    def afno(z):
        bias = z
        B, C, H, W = z.shape
        bs = C // num_blocks
        Wc = W // 2 + 1
        total = H // 2 + 1
        kept = int(total * frac)
        xh = jnp.fft.rfft2(z.astype(jnp.float32), s=(H, W), axes=(-2, -1), norm="ortho")
        xh = xh.reshape(B, num_blocks, bs, H, Wc)
        w1 = p["afno_w1"][..., 0] + 1j * p["afno_w1"][..., 1]
        b1 = p["afno_b1"][..., 0] + 1j * p["afno_b1"][..., 1]
        w2 = p["afno_w2"][..., 0] + 1j * p["afno_w2"][..., 1]
        b2 = p["afno_b2"][..., 0] + 1j * p["afno_b2"][..., 1]
        h_lo, h_hi, w_hi = total - kept, min(total + kept, H), min(kept, Wc)
        xs = xh[:, :, :, h_lo:h_hi, :w_hi]
        t1 = jnp.einsum("bkixy,kio->bkoxy", xs, w1) + b1[None]
        o1 = jnp.maximum(t1.real, 0.0) + 1j * jnp.maximum(t1.imag, 0.0)
        t2 = jnp.einsum("bkixy,kio->bkoxy", o1, w2) + b2[None]
        o2 = jnp.zeros((B, num_blocks, bs, H, Wc), jnp.complex64)
        o2 = o2.at[:, :, :, h_lo:h_hi, :w_hi].set(t2)
        y = _softshrink(o2.real, lambd) + 1j * _softshrink(o2.imag, lambd)
        y = y.reshape(B, C, H, Wc)
        y = jnp.fft.irfft2(y, s=(H, W), axes=(-2, -1), norm="ortho")
        return y.astype(bias.dtype) + bias

    def mlp(z):
        B, C, H, W = z.shape
        hidden = p["mlp_w1"].shape[0]
        h = jnp.einsum("bchw,oc->bohw", z, p["mlp_w1"].reshape(hidden, C)) \
            + p["mlp_b1"][None, :, None, None]
        h = 0.5 * h * (1.0 + jax.scipy.special.erf(h * _SQRT_HALF))
        y = jnp.einsum("bchw,oc->bohw", h, p["mlp_w2"].reshape(C, hidden)) \
            + p["mlp_b2"][None, :, None, None]
        return y

    residual = x
    x = ln(x, p["norm1_w"], p["norm1_b"])
    x = afno(x)
    x = x + residual
    residual = x
    x = ln(x, p["norm2_w"], p["norm2_b"])
    x = mlp(x)
    return x + residual


if __name__ == "__main__":
    # Model config (world_size=1 -> no scatter/gather collectives).
    B, dim, H, W = 2, 32, 16, 16
    num_blocks = 4
    mlp_ratio = 4.0
    sparsity_threshold = 0.01
    hard_thresholding_fraction = 1.0
    hidden_size_factor = 1

    bs = dim // num_blocks
    hs = bs * hidden_size_factor
    mlp_hidden = int(dim * mlp_ratio)
    scale = 0.02

    key = jax.random.PRNGKey(0)
    k = jax.random.split(key, 7)
    params = {
        # nn.LayerNorm((H, W)) default init: weight=1, bias=0
        "norm1_w": jnp.ones((H, W), jnp.float32),
        "norm1_b": jnp.zeros((H, W), jnp.float32),
        "norm2_w": jnp.ones((H, W), jnp.float32),
        "norm2_b": jnp.zeros((H, W), jnp.float32),
        # DistributedAFNO2D params: scale * randn(...)
        "afno_w1": scale * jax.random.normal(k[0], (num_blocks, bs, hs, 2), jnp.float32),
        "afno_b1": scale * jax.random.normal(k[1], (num_blocks, hs, 1, 1, 2), jnp.float32),
        "afno_w2": scale * jax.random.normal(k[2], (num_blocks, hs, bs, 2), jnp.float32),
        "afno_b2": scale * jax.random.normal(k[3], (num_blocks, bs, 1, 1, 2), jnp.float32),
        # DistributedMLP params: trunc_normal(std=0.02) ~ normal here, biases 0
        "mlp_w1": scale * jax.random.normal(k[4], (mlp_hidden, dim, 1, 1), jnp.float32),
        "mlp_b1": jnp.zeros((mlp_hidden,), jnp.float32),
        "mlp_w2": scale * jax.random.normal(k[5], (dim, mlp_hidden, 1, 1), jnp.float32),
        "mlp_b2": jnp.zeros((dim,), jnp.float32),
    }

    x = jax.random.normal(k[6], (B, dim, H, W), jnp.float32)   # NCHW

    # (a) auto-selected spectral path (dense block-diagonal: bs=8 < 64 at this toy shape)
    pd_auto, mode_auto = prepare_block_params(params, num_blocks)
    fwd_auto = jax.jit(partial(distributed_block_forward,
                               num_blocks=num_blocks,
                               sparsity_threshold=sparsity_threshold,
                               hard_thresholding_fraction=hard_thresholding_fraction,
                               spectral_mode=mode_auto))
    out = jax.block_until_ready(fwd_auto(x, params, pd_auto))

    # (b) block-batched spectral path (what production block sizes use) — forced here too
    pd_blk, mode_blk = prepare_block_params(params, num_blocks, spectral_mode="block")
    fwd_blk = jax.jit(partial(distributed_block_forward,
                              num_blocks=num_blocks,
                              sparsity_threshold=sparsity_threshold,
                              hard_thresholding_fraction=hard_thresholding_fraction,
                              spectral_mode=mode_blk))
    out_blk = jax.block_until_ready(fwd_blk(x, params, pd_blk))

    ref = jax.block_until_ready(
        reference_forward(x, params, num_blocks, sparsity_threshold, hard_thresholding_fraction))

    assert out.shape == x.shape and out.dtype == x.dtype
    assert bool(jnp.all(jnp.isfinite(out)))
    # bf16 MXU inputs + tanh-GELU vs exact-erf f32 reference: slightly relaxed tolerance
    assert float(jnp.max(jnp.abs(out - ref))) < 3e-3
    assert float(jnp.max(jnp.abs(out_blk - ref))) < 3e-3
    print("KERNEL_OK")
</pallas_src>

<mosaic_0001>
module attributes {stable_mosaic.version = 11 : i64} {
  func.func @_ln_kernel(%arg0: i32, %arg1: i32, %arg2: memref<1x32x256xf32, #tpu.memory_space<vmem>>, %arg3: memref<1x256xf32, #tpu.memory_space<vmem>>, %arg4: memref<1x256xf32, #tpu.memory_space<vmem>>, %arg5: memref<1x32x256xf32, #tpu.memory_space<vmem>>) attributes {dimension_semantics = [#tpu.dimension_semantics<parallel>, #tpu.dimension_semantics<parallel>], iteration_bounds = array<i64: 2, 1>, scalar_prefetch = 0 : i64, scratch_operands = 0 : i64, tpu.core_type = #tpu.core_type<tc>, window_params = [{transform_indices = @transform_0, window_bounds = array<i64: 1, 32, 256>}, {pipeline_mode = #tpu.pipeline_mode<synchronous>, transform_indices = @transform_1, window_bounds = array<i64: 1, 256>}, {pipeline_mode = #tpu.pipeline_mode<synchronous>, transform_indices = @transform_2, window_bounds = array<i64: 1, 256>}, {transform_indices = @transform_3, window_bounds = array<i64: 1, 32, 256>}]} {
    %c0 = arith.constant 0 : index
    %c0_0 = arith.constant 0 : index
    %c0_1 = arith.constant 0 : index
    %0 = vector.load %arg2[%c0, %c0_0, %c0_1] : memref<1x32x256xf32, #tpu.memory_space<vmem>>, vector<1x32x256xf32>
    %1 = vector.shape_cast %0 : vector<1x32x256xf32> to vector<32x256xf32>
    %cst = arith.constant dense<0.000000e+00> : vector<32xf32>
    %2 = vector.multi_reduction <add>, %1, %cst [1] : vector<32x256xf32> to vector<32xf32>
    %3 = vector.shape_cast %2 : vector<32xf32> to vector<32x1xf32>
    %cst_2 = arith.constant 2.560000e+02 : f32
    %4 = vector.broadcast %cst_2 : f32 to vector<32x1xf32>
    %5 = arith.divf %3, %4 : vector<32x1xf32>
    %6 = arith.mulf %1, %1 : vector<32x256xf32>
    %cst_3 = arith.constant dense<0.000000e+00> : vector<32xf32>
    %7 = vector.multi_reduction <add>, %6, %cst_3 [1] : vector<32x256xf32> to vector<32xf32>
    %8 = vector.shape_cast %7 : vector<32xf32> to vector<32x1xf32>
    %cst_4 = arith.constant 2.560000e+02 : f32
    %9 = vector.broadcast %cst_4 : f32 to vector<32x1xf32>
    %10 = arith.divf %8, %9 : vector<32x1xf32>
    %11 = arith.mulf %5, %5 : vector<32x1xf32>
    %12 = arith.subf %10, %11 : vector<32x1xf32>
    %13 = vector.broadcast %5 : vector<32x1xf32> to vector<32x256xf32>
    %14 = arith.subf %1, %13 : vector<32x256xf32>
    %cst_5 = arith.constant 9.99999974E-6 : f32
    %15 = vector.broadcast %cst_5 : f32 to vector<32x1xf32>
    %16 = arith.addf %12, %15 : vector<32x1xf32>
    %17 = math.rsqrt %16 : vector<32x1xf32>
    %18 = vector.broadcast %17 : vector<32x1xf32> to vector<32x256xf32>
    %19 = arith.mulf %14, %18 : vector<32x256xf32>
    %c0_6 = arith.constant 0 : index
    %c0_7 = arith.constant 0 : index
    %20 = vector.load %arg3[%c0_6, %c0_7] : memref<1x256xf32, #tpu.memory_space<vmem>>, vector<1x256xf32>
    %21 = vector.broadcast %20 : vector<1x256xf32> to vector<32x256xf32>
    %22 = arith.mulf %19, %21 : vector<32x256xf32>
    %c0_8 = arith.constant 0 : index
    %c0_9 = arith.constant 0 : index
    %23 = vector.load %arg4[%c0_8, %c0_9] : memref<1x256xf32, #tpu.memory_space<vmem>>, vector<1x256xf32>
    %24 = vector.broadcast %23 : vector<1x256xf32> to vector<32x256xf32>
    %25 = arith.addf %22, %24 : vector<32x256xf32>
    %c0_10 = arith.constant 0 : index
    %c0_11 = arith.constant 0 : index
    %c0_12 = arith.constant 0 : index
    %26 = vector.load %arg5[%c0_10, %c0_11, %c0_12] : memref<1x32x256xf32, #tpu.memory_space<vmem>>, vector<1x32x256xf32>
    %27 = vector.shape_cast %26 : vector<1x32x256xf32> to vector<32x256xf32>
    %28 = vector.shape_cast %25 : vector<32x256xf32> to vector<1x32x256xf32>
    tpu.vector_store %arg5[%c0_10, %c0_11, %c0_12], %28 {strides = array<i32>} : memref<1x32x256xf32, #tpu.memory_space<vmem>>, vector<1x32x256xf32>,
    return
  }
  func.func @transform_0(%arg0: i32, %arg1: i32) -> (i32, i32, i32) {
    %c0_i32 = arith.constant 0 : i32
    %c0_i32_0 = arith.constant 0 : i32
    return %arg0, %arg1, %c0_i32 : i32, i32, i32
  }
  func.func @transform_1(%arg0: i32, %arg1: i32) -> (i32, i32) {
    %c0_i32 = arith.constant 0 : i32
    %c0_i32_0 = arith.constant 0 : i32
    %c0_i32_1 = arith.constant 0 : i32
    return %c0_i32, %c0_i32_0 : i32, i32
  }
  func.func @transform_2(%arg0: i32, %arg1: i32) -> (i32, i32) {
    %c0_i32 = arith.constant 0 : i32
    %c0_i32_0 = arith.constant 0 : i32
    %c0_i32_1 = arith.constant 0 : i32
    return %c0_i32, %c0_i32_0 : i32, i32
  }
  func.func @transform_3(%arg0: i32, %arg1: i32) -> (i32, i32, i32) {
    %c0_i32 = arith.constant 0 : i32
    %c0_i32_0 = arith.constant 0 : i32
    return %arg0, %arg1, %c0_i32 : i32, i32, i32
  }
}

module attributes {stable_mosaic.version = 11 : i64} {
  func.func @_afno_dense_kernel(%arg0: i32, %arg1: memref<64x384xf32, #tpu.memory_space<vmem>>, %arg2: memref<64x64xbf16, #tpu.memory_space<vmem>>, %arg3: memref<64x1xf32, #tpu.memory_space<vmem>>, %arg4: memref<64x64xbf16, #tpu.memory_space<vmem>>, %arg5: memref<64x1xf32, #tpu.memory_space<vmem>>, %arg6: memref<64x384xf32, #tpu.memory_space<vmem>>) attributes {dimension_semantics = [#tpu.dimension_semantics<parallel>], iteration_bounds = array<i64: 1>, scalar_prefetch = 0 : i64, scratch_operands = 0 : i64, tpu.core_type = #tpu.core_type<tc>, window_params = [{transform_indices = @transform_0, window_bounds = array<i64: 64, 384>}, {pipeline_mode = #tpu.pipeline_mode<synchronous>, transform_indices = @transform_1, window_bounds = array<i64: 64, 64>}, {pipeline_mode = #tpu.pipeline_mode<synchronous>, transform_indices = @transform_2, window_bounds = array<i64: 64, 1>}, {pipeline_mode = #tpu.pipeline_mode<synchronous>, transform_indices = @transform_3, window_bounds = array<i64: 64, 64>}, {pipeline_mode = #tpu.pipeline_mode<synchronous>, transform_indices = @transform_4, window_bounds = array<i64: 64, 1>}, {transform_indices = @transform_5, window_bounds = array<i64: 64, 384>}]} {
    %c0 = arith.constant 0 : index
    %c0_0 = arith.constant 0 : index
    %0 = vector.load %arg1[%c0, %c0_0] : memref<64x384xf32, #tpu.memory_space<vmem>>, vector<64x384xf32>
    %1 = arith.truncf %0 : vector<64x384xf32> to vector<64x384xbf16>
    %c0_1 = arith.constant 0 : index
    %c0_2 = arith.constant 0 : index
    %2 = vector.load %arg2[%c0_1, %c0_2] : memref<64x64xbf16, #tpu.memory_space<vmem>>, vector<64x64xbf16>
    %cst = arith.constant dense<0.000000e+00> : vector<64x384xf32>
    %3 = tpu.matmul %2, %1, %cst {dimension_numbers = #tpu.dot_dimension_numbers<[1], [0], [0], [1], [0, 0, 1, 1], [], []>} : vector<64x64xbf16>, vector<64x384xbf16>, vector<64x384xf32> -> vector<64x384xf32>
    %c0_3 = arith.constant 0 : index
    %c0_4 = arith.constant 0 : index
    %4 = vector.load %arg3[%c0_3, %c0_4] : memref<64x1xf32, #tpu.memory_space<vmem>>, vector<64x1xf32>
    %5 = vector.broadcast %4 : vector<64x1xf32> to vector<64x384xf32>
    %6 = arith.addf %3, %5 : vector<64x384xf32>
    %cst_5 = arith.constant 0.000000e+00 : f32
    %7 = vector.broadcast %cst_5 : f32 to vector<64x384xf32>
    %8 = arith.maximumf %6, %7 : vector<64x384xf32>
    %c0_6 = arith.constant 0 : index
    %c0_7 = arith.constant 0 : index
    %9 = vector.load %arg4[%c0_6, %c0_7] : memref<64x64xbf16, #tpu.memory_space<vmem>>, vector<64x64xbf16>
    %10 = arith.truncf %8 : vector<64x384xf32> to vector<64x384xbf16>
    %cst_8 = arith.constant dense<0.000000e+00> : vector<64x384xf32>
    %11 = tpu.matmul %9, %10, %cst_8 {dimension_numbers = #tpu.dot_dimension_numbers<[1], [0], [0], [1], [0, 0, 1, 1], [], []>} : vector<64x64xbf16>, vector<64x384xbf16>, vector<64x384xf32> -> vector<64x384xf32>
    %c0_9 = arith.constant 0 : index
    %c0_10 = arith.constant 0 : index
    %12 = vector.load %arg5[%c0_9, %c0_10] : memref<64x1xf32, #tpu.memory_space<vmem>>, vector<64x1xf32>
    %13 = vector.broadcast %12 : vector<64x1xf32> to vector<64x384xf32>
    %14 = arith.addf %11, %13 : vector<64x384xf32>
    %cst_11 = arith.constant 0.00999999977 : f32
    %15 = vector.broadcast %cst_11 : f32 to vector<64x384xf32>
    %16 = arith.cmpf ogt, %14, %15 : vector<64x384xf32>
    %cst_12 = arith.constant 0.00999999977 : f32
    %17 = vector.broadcast %cst_12 : f32 to vector<64x384xf32>
    %18 = arith.subf %14, %17 : vector<64x384xf32>
    %cst_13 = arith.constant -0.00999999977 : f32
    %19 = vector.broadcast %cst_13 : f32 to vector<64x384xf32>
    %20 = arith.cmpf olt, %14, %19 : vector<64x384xf32>
    %cst_14 = arith.constant 0.00999999977 : f32
    %21 = vector.broadcast %cst_14 : f32 to vector<64x384xf32>
    %22 = arith.addf %14, %21 : vector<64x384xf32>
    %cst_15 = arith.constant 0.000000e+00 : f32
    %23 = vector.broadcast %cst_15 : f32 to vector<64x384xf32>
    %24 = arith.select %20, %22, %23 : vector<64x384xi1>, vector<64x384xf32>
    %25 = arith.select %16, %18, %24 : vector<64x384xi1>, vector<64x384xf32>
    %c0_16 = arith.constant 0 : index
    %c0_17 = arith.constant 0 : index
    %26 = vector.load %arg6[%c0_16, %c0_17] : memref<64x384xf32, #tpu.memory_space<vmem>>, vector<64x384xf32>
    tpu.vector_store %arg6[%c0_16, %c0_17], %25 {strides = array<i32>} : memref<64x384xf32, #tpu.memory_space<vmem>>, vector<64x384xf32>,
    return
  }
  func.func @transform_0(%arg0: i32) -> (i32, i32) {
    %c0_i32 = arith.constant 0 : i32
    %c0_i32_0 = arith.constant 0 : i32
    return %c0_i32, %arg0 : i32, i32
  }
  func.func @transform_1(%arg0: i32) -> (i32, i32) {
    %c0_i32 = arith.constant 0 : i32
    %c0_i32_0 = arith.constant 0 : i32
    %c0_i32_1 = arith.constant 0 : i32
    return %c0_i32, %c0_i32_0 : i32, i32
  }
  func.func @transform_2(%arg0: i32) -> (i32, i32) {
    %c0_i32 = arith.constant 0 : i32
    %c0_i32_0 = arith.constant 0 : i32
    %c0_i32_1 = arith.constant 0 : i32
    return %c0_i32, %c0_i32_0 : i32, i32
  }
  func.func @transform_3(%arg0: i32) -> (i32, i32) {
    %c0_i32 = arith.constant 0 : i32
    %c0_i32_0 = arith.constant 0 : i32
    %c0_i32_1 = arith.constant 0 : i32
    return %c0_i32, %c0_i32_0 : i32, i32
  }
  func.func @transform_4(%arg0: i32) -> (i32, i32) {
    %c0_i32 = arith.constant 0 : i32
    %c0_i32_0 = arith.constant 0 : i32
    %c0_i32_1 = arith.constant 0 : i32
    return %c0_i32, %c0_i32_0 : i32, i32
  }
  func.func @transform_5(%arg0: i32) -> (i32, i32) {
    %c0_i32 = arith.constant 0 : i32
    %c0_i32_0 = arith.constant 0 : i32
    return %c0_i32, %arg0 : i32, i32
  }
}

module attributes {stable_mosaic.version = 11 : i64} {
  func.func @_ln2_stats_kernel(%arg0: i32, %arg1: i32, %arg2: memref<1x32x256xf32, #tpu.memory_space<vmem>>, %arg3: memref<1x32x256xf32, #tpu.memory_space<vmem>>, %arg4: memref<1x32x256xf32, #tpu.memory_space<vmem>>, %arg5: memref<1x32x1xf32, #tpu.memory_space<vmem>>, %arg6: memref<1x32x1xf32, #tpu.memory_space<vmem>>) attributes {dimension_semantics = [#tpu.dimension_semantics<parallel>, #tpu.dimension_semantics<parallel>], iteration_bounds = array<i64: 2, 1>, scalar_prefetch = 0 : i64, scratch_operands = 0 : i64, tpu.core_type = #tpu.core_type<tc>, window_params = [{transform_indices = @transform_0, window_bounds = array<i64: 1, 32, 256>}, {transform_indices = @transform_1, window_bounds = array<i64: 1, 32, 256>}, {transform_indices = @transform_2, window_bounds = array<i64: 1, 32, 256>}, {transform_indices = @transform_3, window_bounds = array<i64: 1, 32, 1>}, {transform_indices = @transform_4, window_bounds = array<i64: 1, 32, 1>}]} {
    %c0 = arith.constant 0 : index
    %c0_0 = arith.constant 0 : index
    %c0_1 = arith.constant 0 : index
    %0 = vector.load %arg2[%c0, %c0_0, %c0_1] : memref<1x32x256xf32, #tpu.memory_space<vmem>>, vector<1x32x256xf32>
    %1 = vector.shape_cast %0 : vector<1x32x256xf32> to vector<32x256xf32>
    %c0_2 = arith.constant 0 : index
    %c0_3 = arith.constant 0 : index
    %c0_4 = arith.constant 0 : index
    %2 = vector.load %arg3[%c0_2, %c0_3, %c0_4] : memref<1x32x256xf32, #tpu.memory_space<vmem>>, vector<1x32x256xf32>
    %3 = vector.shape_cast %2 : vector<1x32x256xf32> to vector<32x256xf32>
    %4 = arith.addf %1, %3 : vector<32x256xf32>
    %c0_5 = arith.constant 0 : index
    %c0_6 = arith.constant 0 : index
    %c0_7 = arith.constant 0 : index
    %5 = vector.load %arg4[%c0_5, %c0_6, %c0_7] : memref<1x32x256xf32, #tpu.memory_space<vmem>>, vector<1x32x256xf32>
    %6 = vector.shape_cast %5 : vector<1x32x256xf32> to vector<32x256xf32>
    %7 = arith.addf %4, %6 : vector<32x256xf32>
    %cst = arith.constant dense<0.000000e+00> : vector<32xf32>
    %8 = vector.multi_reduction <add>, %7, %cst [1] : vector<32x256xf32> to vector<32xf32>
    %9 = vector.shape_cast %8 : vector<32xf32> to vector<32x1xf32>
    %cst_8 = arith.constant 2.560000e+02 : f32
    %10 = vector.broadcast %cst_8 : f32 to vector<32x1xf32>
    %11 = arith.divf %9, %10 : vector<32x1xf32>
    %12 = arith.mulf %7, %7 : vector<32x256xf32>
    %cst_9 = arith.constant dense<0.000000e+00> : vector<32xf32>
    %13 = vector.multi_reduction <add>, %12, %cst_9 [1] : vector<32x256xf32> to vector<32xf32>
    %14 = vector.shape_cast %13 : vector<32xf32> to vector<32x1xf32>
    %cst_10 = arith.constant 2.560000e+02 : f32
    %15 = vector.broadcast %cst_10 : f32 to vector<32x1xf32>
    %16 = arith.divf %14, %15 : vector<32x1xf32>
    %17 = arith.mulf %11, %11 : vector<32x1xf32>
    %18 = arith.subf %16, %17 : vector<32x1xf32>
    %c0_11 = arith.constant 0 : index
    %c0_12 = arith.constant 0 : index
    %c0_13 = arith.constant 0 : index
    %19 = vector.load %arg5[%c0_11, %c0_12, %c0_13] : memref<1x32x1xf32, #tpu.memory_space<vmem>>, vector<1x32x1xf32>
    %20 = vector.shape_cast %19 : vector<1x32x1xf32> to vector<32x1xf32>
    %21 = vector.shape_cast %11 : vector<32x1xf32> to vector<1x32x1xf32>
    tpu.vector_store %arg5[%c0_11, %c0_12, %c0_13], %21 {strides = array<i32>} : memref<1x32x1xf32, #tpu.memory_space<vmem>>, vector<1x32x1xf32>,
    %cst_14 = arith.constant 9.99999974E-6 : f32
    %22 = vector.broadcast %cst_14 : f32 to vector<32x1xf32>
    %23 = arith.addf %18, %22 : vector<32x1xf32>
    %24 = math.rsqrt %23 : vector<32x1xf32>
    %c0_15 = arith.constant 0 : index
    %c0_16 = arith.constant 0 : index
    %c0_17 = arith.constant 0 : index
    %25 = vector.load %arg6[%c0_15, %c0_16, %c0_17] : memref<1x32x1xf32, #tpu.memory_space<vmem>>, vector<1x32x1xf32>
    %26 = vector.shape_cast %25 : vector<1x32x1xf32> to vector<32x1xf32>
    %27 = vector.shape_cast %24 : vector<32x1xf32> to vector<1x32x1xf32>
    tpu.vector_store %arg6[%c0_15, %c0_16, %c0_17], %27 {strides = array<i32>} : memref<1x32x1xf32, #tpu.memory_space<vmem>>, vector<1x32x1xf32>,
    return
  }
  func.func @transform_0(%arg0: i32, %arg1: i32) -> (i32, i32, i32) {
    %c0_i32 = arith.constant 0 : i32
    %c0_i32_0 = arith.constant 0 : i32
    return %arg0, %arg1, %c0_i32 : i32, i32, i32
  }
  func.func @transform_1(%arg0: i32, %arg1: i32) -> (i32, i32, i32) {
    %c0_i32 = arith.constant 0 : i32
    %c0_i32_0 = arith.constant 0 : i32
    return %arg0, %arg1, %c0_i32 : i32, i32, i32
  }
  func.func @transform_2(%arg0: i32, %arg1: i32) -> (i32, i32, i32) {
    %c0_i32 = arith.constant 0 : i32
    %c0_i32_0 = arith.constant 0 : i32
    return %arg0, %arg1, %c0_i32 : i32, i32, i32
  }
  func.func @transform_3(%arg0: i32, %arg1: i32) -> (i32, i32, i32) {
    %c0_i32 = arith.constant 0 : i32
    %c0_i32_0 = arith.constant 0 : i32
    return %arg0, %arg1, %c0_i32 : i32, i32, i32
  }
  func.func @transform_4(%arg0: i32, %arg1: i32) -> (i32, i32, i32) {
    %c0_i32 = arith.constant 0 : i32
    %c0_i32_0 = arith.constant 0 : i32
    return %arg0, %arg1, %c0_i32 : i32, i32, i32
  }
}

module attributes {stable_mosaic.version = 11 : i64} {
  func.func @_ln2_mlp_kernel(%arg0: i32, %arg1: i32, %arg2: memref<1x32x256xf32, #tpu.memory_space<vmem>>, %arg3: memref<1x32x256xf32, #tpu.memory_space<vmem>>, %arg4: memref<1x32x256xf32, #tpu.memory_space<vmem>>, %arg5: memref<1x32x1xf32, #tpu.memory_space<vmem>>, %arg6: memref<1x32x1xf32, #tpu.memory_space<vmem>>, %arg7: memref<1x256xf32, #tpu.memory_space<vmem>>, %arg8: memref<1x256xf32, #tpu.memory_space<vmem>>, %arg9: memref<128x32xbf16, #tpu.memory_space<vmem>>, %arg10: memref<128x1xf32, #tpu.memory_space<vmem>>, %arg11: memref<32x128xbf16, #tpu.memory_space<vmem>>, %arg12: memref<32x1xf32, #tpu.memory_space<vmem>>, %arg13: memref<1x32x256xf32, #tpu.memory_space<vmem>>) attributes {dimension_semantics = [#tpu.dimension_semantics<parallel>, #tpu.dimension_semantics<parallel>], iteration_bounds = array<i64: 2, 1>, scalar_prefetch = 0 : i64, scratch_operands = 0 : i64, tpu.core_type = #tpu.core_type<tc>, window_params = [{transform_indices = @transform_0, window_bounds = array<i64: 1, 32, 256>}, {transform_indices = @transform_1, window_bounds = array<i64: 1, 32, 256>}, {transform_indices = @transform_2, window_bounds = array<i64: 1, 32, 256>}, {transform_indices = @transform_3, window_bounds = array<i64: 1, 32, 1>}, {transform_indices = @transform_4, window_bounds = array<i64: 1, 32, 1>}, {transform_indices = @transform_5, window_bounds = array<i64: 1, 256>}, {transform_indices = @transform_6, window_bounds = array<i64: 1, 256>}, {pipeline_mode = #tpu.pipeline_mode<synchronous>, transform_indices = @transform_7, window_bounds = array<i64: 128, 32>}, {pipeline_mode = #tpu.pipeline_mode<synchronous>, transform_indices = @transform_8, window_bounds = array<i64: 128, 1>}, {pipeline_mode = #tpu.pipeline_mode<synchronous>, transform_indices = @transform_9, window_bounds = array<i64: 32, 128>}, {pipeline_mode = #tpu.pipeline_mode<synchronous>, transform_indices = @transform_10, window_bounds = array<i64: 32, 1>}, {transform_indices = @transform_11, window_bounds = array<i64: 1, 32, 256>}]} {
    %c0 = arith.constant 0 : index
    %c0_0 = arith.constant 0 : index
    %c0_1 = arith.constant 0 : index
    %0 = vector.load %arg2[%c0, %c0_0, %c0_1] : memref<1x32x256xf32, #tpu.memory_space<vmem>>, vector<1x32x256xf32>
    %1 = vector.shape_cast %0 : vector<1x32x256xf32> to vector<32x256xf32>
    %c0_2 = arith.constant 0 : index
    %c0_3 = arith.constant 0 : index
    %c0_4 = arith.constant 0 : index
    %2 = vector.load %arg3[%c0_2, %c0_3, %c0_4] : memref<1x32x256xf32, #tpu.memory_space<vmem>>, vector<1x32x256xf32>
    %3 = vector.shape_cast %2 : vector<1x32x256xf32> to vector<32x256xf32>
    %c0_5 = arith.constant 0 : index
    %c0_6 = arith.constant 0 : index
    %c0_7 = arith.constant 0 : index
    %4 = vector.load %arg4[%c0_5, %c0_6, %c0_7] : memref<1x32x256xf32, #tpu.memory_space<vmem>>, vector<1x32x256xf32>
    %5 = vector.shape_cast %4 : vector<1x32x256xf32> to vector<32x256xf32>
    %6 = arith.addf %1, %3 : vector<32x256xf32>
    %7 = arith.addf %6, %5 : vector<32x256xf32>
    %c0_8 = arith.constant 0 : index
    %c0_9 = arith.constant 0 : index
    %c0_10 = arith.constant 0 : index
    %8 = vector.load %arg5[%c0_8, %c0_9, %c0_10] : memref<1x32x1xf32, #tpu.memory_space<vmem>>, vector<1x32x1xf32>
    %9 = vector.shape_cast %8 : vector<1x32x1xf32> to vector<32x1xf32>
    %10 = vector.broadcast %9 : vector<32x1xf32> to vector<32x256xf32>
    %11 = arith.subf %7, %10 : vector<32x256xf32>
    %c0_11 = arith.constant 0 : index
    %c0_12 = arith.constant 0 : index
    %c0_13 = arith.constant 0 : index
    %12 = vector.load %arg6[%c0_11, %c0_12, %c0_13] : memref<1x32x1xf32, #tpu.memory_space<vmem>>, vector<1x32x1xf32>
    %13 = vector.shape_cast %12 : vector<1x32x1xf32> to vector<32x1xf32>
    %14 = vector.broadcast %13 : vector<32x1xf32> to vector<32x256xf32>
    %15 = arith.mulf %11, %14 : vector<32x256xf32>
    %c0_14 = arith.constant 0 : index
    %c0_15 = arith.constant 0 : index
    %16 = vector.load %arg7[%c0_14, %c0_15] : memref<1x256xf32, #tpu.memory_space<vmem>>, vector<1x256xf32>
    %17 = vector.broadcast %16 : vector<1x256xf32> to vector<32x256xf32>
    %18 = arith.mulf %15, %17 : vector<32x256xf32>
    %c0_16 = arith.constant 0 : index
    %c0_17 = arith.constant 0 : index
    %19 = vector.load %arg8[%c0_16, %c0_17] : memref<1x256xf32, #tpu.memory_space<vmem>>, vector<1x256xf32>
    %20 = vector.broadcast %19 : vector<1x256xf32> to vector<32x256xf32>
    %21 = arith.addf %18, %20 : vector<32x256xf32>
    %c0_18 = arith.constant 0 : index
    %c0_19 = arith.constant 0 : index
    %22 = vector.load %arg9[%c0_18, %c0_19] : memref<128x32xbf16, #tpu.memory_space<vmem>>, vector<128x32xbf16>
    %23 = arith.truncf %21 : vector<32x256xf32> to vector<32x256xbf16>
    %cst = arith.constant dense<0.000000e+00> : vector<128x256xf32>
    %24 = tpu.matmul %22, %23, %cst {dimension_numbers = #tpu.dot_dimension_numbers<[1], [0], [0], [1], [0, 0, 1, 1], [], []>} : vector<128x32xbf16>, vector<32x256xbf16>, vector<128x256xf32> -> vector<128x256xf32>
    %c0_20 = arith.constant 0 : index
    %c0_21 = arith.constant 0 : index
    %25 = vector.load %arg10[%c0_20, %c0_21] : memref<128x1xf32, #tpu.memory_space<vmem>>, vector<128x1xf32>
    %26 = vector.broadcast %25 : vector<128x1xf32> to vector<128x256xf32>
    %27 = arith.addf %24, %26 : vector<128x256xf32>
    %cst_22 = arith.constant 5.000000e-01 : f32
    %28 = vector.broadcast %cst_22 : f32 to vector<128x256xf32>
    %29 = arith.mulf %28, %27 : vector<128x256xf32>
    %cst_23 = arith.constant 4.471500e-02 : f32
    %30 = vector.broadcast %cst_23 : f32 to vector<128x256xf32>
    %31 = arith.mulf %30, %27 : vector<128x256xf32>
    %32 = arith.mulf %31, %27 : vector<128x256xf32>
    %33 = arith.mulf %32, %27 : vector<128x256xf32>
    %34 = arith.addf %27, %33 : vector<128x256xf32>
    %cst_24 = arith.constant 0.797884583 : f32
    %35 = vector.broadcast %cst_24 : f32 to vector<128x256xf32>
    %36 = arith.mulf %35, %34 : vector<128x256xf32>
    %37 = math.tanh %36 : vector<128x256xf32>
    %cst_25 = arith.constant 1.000000e+00 : f32
    %38 = vector.broadcast %cst_25 : f32 to vector<128x256xf32>
    %39 = arith.addf %38, %37 : vector<128x256xf32>
    %40 = arith.mulf %29, %39 : vector<128x256xf32>
    %c0_26 = arith.constant 0 : index
    %c0_27 = arith.constant 0 : index
    %41 = vector.load %arg11[%c0_26, %c0_27] : memref<32x128xbf16, #tpu.memory_space<vmem>>, vector<32x128xbf16>
    %42 = arith.truncf %40 : vector<128x256xf32> to vector<128x256xbf16>
    %cst_28 = arith.constant dense<0.000000e+00> : vector<32x256xf32>
    %43 = tpu.matmul %41, %42, %cst_28 {dimension_numbers = #tpu.dot_dimension_numbers<[1], [0], [0], [1], [0, 0, 1, 1], [], []>} : vector<32x128xbf16>, vector<128x256xbf16>, vector<32x256xf32> -> vector<32x256xf32>
    %c0_29 = arith.constant 0 : index
    %c0_30 = arith.constant 0 : index
    %44 = vector.load %arg12[%c0_29, %c0_30] : memref<32x1xf32, #tpu.memory_space<vmem>>, vector<32x1xf32>
    %45 = vector.broadcast %44 : vector<32x1xf32> to vector<32x256xf32>
    %46 = arith.addf %43, %45 : vector<32x256xf32>
    %47 = arith.addf %46, %7 : vector<32x256xf32>
    %c0_31 = arith.constant 0 : index
    %c0_32 = arith.constant 0 : index
    %c0_33 = arith.constant 0 : index
    %48 = vector.load %arg13[%c0_31, %c0_32, %c0_33] : memref<1x32x256xf32, #tpu.memory_space<vmem>>, vector<1x32x256xf32>
    %49 = vector.shape_cast %48 : vector<1x32x256xf32> to vector<32x256xf32>
    %50 = vector.shape_cast %47 : vector<32x256xf32> to vector<1x32x256xf32>
    tpu.vector_store %arg13[%c0_31, %c0_32, %c0_33], %50 {strides = array<i32>} : memref<1x32x256xf32, #tpu.memory_space<vmem>>, vector<1x32x256xf32>,
    return
  }
  func.func @transform_0(%arg0: i32, %arg1: i32) -> (i32, i32, i32) {
    %c0_i32 = arith.constant 0 : i32
    %c0_i32_0 = arith.constant 0 : i32
    return %arg0, %c0_i32, %arg1 : i32, i32, i32
  }
  func.func @transform_1(%arg0: i32, %arg1: i32) -> (i32, i32, i32) {
    %c0_i32 = arith.constant 0 : i32
    %c0_i32_0 = arith.constant 0 : i32
    return %arg0, %c0_i32, %arg1 : i32, i32, i32
  }
  func.func @transform_2(%arg0: i32, %arg1: i32) -> (i32, i32, i32) {
    %c0_i32 = arith.constant 0 : i32
    %c0_i32_0 = arith.constant 0 : i32
    return %arg0, %c0_i32, %arg1 : i32, i32, i32
  }
  func.func @transform_3(%arg0: i32, %arg1: i32) -> (i32, i32, i32) {
    %c0_i32 = arith.constant 0 : i32
    %c0_i32_0 = arith.constant 0 : i32
    %c0_i32_1 = arith.constant 0 : i32
    return %arg0, %c0_i32, %c0_i32_0 : i32, i32, i32
  }
  func.func @transform_4(%arg0: i32, %arg1: i32) -> (i32, i32, i32) {
    %c0_i32 = arith.constant 0 : i32
    %c0_i32_0 = arith.constant 0 : i32
    %c0_i32_1 = arith.constant 0 : i32
    return %arg0, %c0_i32, %c0_i32_0 : i32, i32, i32
  }
  func.func @transform_5(%arg0: i32, %arg1: i32) -> (i32, i32) {
    %c0_i32 = arith.constant 0 : i32
    %c0_i32_0 = arith.constant 0 : i32
    return %c0_i32, %arg1 : i32, i32
  }
  func.func @transform_6(%arg0: i32, %arg1: i32) -> (i32, i32) {
    %c0_i32 = arith.constant 0 : i32
    %c0_i32_0 = arith.constant 0 : i32
    return %c0_i32, %arg1 : i32, i32
  }
  func.func @transform_7(%arg0: i32, %arg1: i32) -> (i32, i32) {
    %c0_i32 = arith.constant 0 : i32
    %c0_i32_0 = arith.constant 0 : i32
    %c0_i32_1 = arith.constant 0 : i32
    return %c0_i32, %c0_i32_0 : i32, i32
  }
  func.func @transform_8(%arg0: i32, %arg1: i32) -> (i32, i32) {
    %c0_i32 = arith.constant 0 : i32
    %c0_i32_0 = arith.constant 0 : i32
    %c0_i32_1 = arith.constant 0 : i32
    return %c0_i32, %c0_i32_0 : i32, i32
  }
  func.func @transform_9(%arg0: i32, %arg1: i32) -> (i32, i32) {
    %c0_i32 = arith.constant 0 : i32
    %c0_i32_0 = arith.constant 0 : i32
    %c0_i32_1 = arith.constant 0 : i32
    return %c0_i32, %c0_i32_0 : i32, i32
  }
  func.func @transform_10(%arg0: i32, %arg1: i32) -> (i32, i32) {
    %c0_i32 = arith.constant 0 : i32
    %c0_i32_0 = arith.constant 0 : i32
    %c0_i32_1 = arith.constant 0 : i32
    return %c0_i32, %c0_i32_0 : i32, i32
  }
  func.func @transform_11(%arg0: i32, %arg1: i32) -> (i32, i32, i32) {
    %c0_i32 = arith.constant 0 : i32
    %c0_i32_0 = arith.constant 0 : i32
    return %arg0, %c0_i32, %arg1 : i32, i32, i32
  }
}

</mosaic_0001>

<llo_original>
// kernel: distributed_block_forward.4
$region0: #{distributed_block_forward.4}
  #allocation0 [shape = 'u32[]', space=smem, size = 0x4, offset = 0x4, fixed_abs, tag = 'smem constant byte address 0x4 - core index']
  #allocation1 [shape = 'u32[144,128]{1,0:T(1,128)}', space=vmem, size = 0x12000, scoped, tag = 'internal scratch']
  %s0 = inlined_call_operand.vmem [shape: f32[2,32,256], index: 0, kind: input, shape index: {}]
  %s1 = inlined_call_operand.vmem [shape: f32[1,256], index: 1, kind: input, shape index: {}]
  %s2 = inlined_call_operand.vmem [shape: f32[1,256], index: 2, kind: input, shape index: {}]
  %s3 = inlined_call_operand.vmem [shape: f32[2,32,256], index: 3, kind: output, shape index: {}]
  %s4 = sld [smem:[#allocation0]]
  $region45: #{distributed_block_forward.4} parent=0
    _
  %s6 = ssub.s32 1, %s4
  %s7 = scalar_select 0, %s6, %s4
  loop: start=0, step=1, limit=4
  $region2: #{distributed_block_forward.4} parent=0 // loop_pre_header
    _
  $region3: #{distributed_block_forward.4} parent=0 // loop_header
    %s9 = sphi 0, %s13
    %p10 = scmp.ge.s32.totalorder %s9, 4
    %s16 = sphi 0, %s28
    %s17 = sphi 0, %s24
    %s18 = sphi 0, %s16
    %s19 = sphi 0, %s17
    %s20 = sphi 0, %s18
    %s21 = sphi 0, %s19
    %s33 = sphi 0, %s35
    %s36 = sphi 0, %s33
    %s37 = sphi 0, %s36
    %s53 = sphi 0, %s37
    %s57 = sphi 0, %s57
    %s59 = sphi 0, %s57
    %s60 = sphi 0, %s59
    %s74 = sphi 0, %s60
    %s78 = sphi 0, %s78
    %s80 = sphi 0, %s78
    %s81 = sphi 0, %s80
    %s95 = sphi 0, %s81
    %s103 = sphi 0, %s105
    %s106 = sphi 0, %s103
    %s107 = sphi 0, %s106
    %s123 = sphi 0, %s107
  $region4: #{distributed_block_forward.4} parent=0 // loop_header_branch
    %12 = sbr.rel (%p10) target = $region8
  $region5: #{distributed_block_forward.4} parent=0 // loop_body
    %s14 = ssub.s32 %s9, 1
    %s15 = ssub.s32 %s9, 2
    %s22 = sadd.s32 1, %s17
    %p23 = scmp.ge.s32.totalorder %s22, 1
    %s24 = scalar_select %p23, 0, %s22
    %s25 = sadd.s32 1, %s16
    %s26 = scalar_select %p23, %s25, %s16
    %p27 = scmp.ge.s32.totalorder %s26, 2
    %s28 = scalar_select %p27, 0, %s26
    %s29 = ssub.s32 %s16, %s28
    %s30 = ssub.s32 %s17, %s24
    %s31 = sor.u32 %s29, %s30
    %p32 = scmp.eq.s32.totalorder %s31, 0
    %s34 = sadd.s32 %s33, 1
    %s35 = scalar_select %p32, %s33, %s34
    %p38 = pneg %p32
    %p39 = scmp.eq.s32.totalorder %s9, 1
    %p40 = por %p38, %p39
    %p41 = scmp.ne.s32.totalorder %s33, %s36
    %p42 = scmp.eq.s32.totalorder %s9, 0
    %p43 = por %p41, %p42
    %p44 = scmp.ne.s32.totalorder %s33, %s36
    %p45 = scmp.eq.s32.totalorder %s14, 1
    %p46 = por %p44, %p45
    %p47 = scmp.ne.s32.totalorder %s36, %s37
    %p48 = scmp.eq.s32.totalorder %s14, 0
    %p49 = por %p47, %p48
    %p50 = scmp.ne.s32.totalorder %s36, %s37
    %p51 = scmp.eq.s32.totalorder %s15, 1
    %p52 = por %p50, %p51
    %p54 = scmp.ne.s32.totalorder %s37, %s53
    %p55 = scmp.eq.s32.totalorder %s15, 0
    %p56 = por %p54, %p55
    %s58 = sadd.s32 %s57, 1
    %p61 = scmp.eq.s32.totalorder %s9, 1
    %p62 = scmp.ne.s32.totalorder %s57, %s59
    %p63 = scmp.eq.s32.totalorder %s9, 0
    %p64 = por %p62, %p63
    %p65 = scmp.ne.s32.totalorder %s57, %s59
    %p66 = scmp.eq.s32.totalorder %s14, 1
    %p67 = por %p65, %p66
    %p68 = scmp.ne.s32.totalorder %s59, %s60
    %p69 = scmp.eq.s32.totalorder %s14, 0
    %p70 = por %p68, %p69
    %p71 = scmp.ne.s32.totalorder %s59, %s60
    %p72 = scmp.eq.s32.totalorder %s15, 1
    %p73 = por %p71, %p72
    %p75 = scmp.ne.s32.totalorder %s60, %s74
    %p76 = scmp.eq.s32.totalorder %s15, 0
    %p77 = por %p75, %p76
    %s79 = sadd.s32 %s78, 1
    %p82 = scmp.eq.s32.totalorder %s9, 1
    %p83 = scmp.ne.s32.totalorder %s78, %s80
    %p84 = scmp.eq.s32.totalorder %s9, 0
    %p85 = por %p83, %p84
    %p86 = scmp.ne.s32.totalorder %s78, %s80
    %p87 = scmp.eq.s32.totalorder %s14, 1
    %p88 = por %p86, %p87
    %p89 = scmp.ne.s32.totalorder %s80, %s81
    %p90 = scmp.eq.s32.totalorder %s14, 0
    %p91 = por %p89, %p90
    %p92 = scmp.ne.s32.totalorder %s80, %s81
    %p93 = scmp.eq.s32.totalorder %s15, 1
    %p94 = por %p92, %p93
    %p96 = scmp.ne.s32.totalorder %s81, %s95
    %p97 = scmp.eq.s32.totalorder %s15, 0
    %p98 = por %p96, %p97
    %s99 = ssub.s32 %s16, %s28
    %s100 = ssub.s32 %s17, %s24
    %s101 = sor.u32 %s99, %s100
    %p102 = scmp.eq.s32.totalorder %s101, 0
    %s104 = sadd.s32 %s103, 1
    %s105 = scalar_select %p102, %s103, %s104
    %p108 = pneg %p102
    %p109 = scmp.eq.s32.totalorder %s9, 1
    %p110 = por %p108, %p109
    %p111 = scmp.ne.s32.totalorder %s103, %s106
    %p112 = scmp.eq.s32.totalorder %s9, 0
    %p113 = por %p111, %p112
    %p114 = scmp.ne.s32.totalorder %s103, %s106
    %p115 = scmp.eq.s32.totalorder %s14, 1
    %p116 = por %p114, %p115
    %p117 = scmp.ne.s32.totalorder %s106, %s107
    %p118 = scmp.eq.s32.totalorder %s14, 0
    %p119 = por %p117, %p118
    %p120 = scmp.ne.s32.totalorder %s106, %s107
    %p121 = scmp.eq.s32.totalorder %s15, 1
    %p122 = por %p120, %p121
    %p124 = scmp.ne.s32.totalorder %s107, %s123
    %p125 = scmp.eq.s32.totalorder %s15, 0
    %p126 = por %p124, %p125
    %p127 = scmp.le.s32.totalorder 1, %s9
    %p128 = scmp.lt.s32.totalorder %s9, 3
    %p129 = pnand %p127, %p128
    %p130 = pneg %p129
    // Predicated region
    $region9: #{distributed_block_forward.4} parent=5 // pred_check
      _
    $region10: #{distributed_block_forward.4} parent=5 // pred_check_branch
      %132 = sbr.rel (%p129) target = $region12
    $region11: #{distributed_block_forward.4} parent=5 // pred_region
      %s133 = ssub.s32 %s9, 1
      // Predicated region
      $region13: #{distributed_block_forward.4} parent=11 // pred_check
        %p134 = pneg %p70
      $region14: #{distributed_block_forward.4} parent=11 // pred_check_branch
        %136 = sbr.rel (%p134) target = $region16
      $region15: #{distributed_block_forward.4} parent=11 // pred_region
        _
      $region16: #{distributed_block_forward.4} parent=11 // pred_fallthru
        _
      // Predicated region
      $region17: #{distributed_block_forward.4} parent=11 // pred_check
        %p137 = pneg %p91
      $region18: #{distributed_block_forward.4} parent=11 // pred_check_branch
        %139 = sbr.rel (%p137) target = $region20
      $region19: #{distributed_block_forward.4} parent=11 // pred_region
        _
      $region20: #{distributed_block_forward.4} parent=11 // pred_fallthru
        _
    $region12: #{distributed_block_forward.4} parent=5 // pred_fallthru
      _
    %p140 = scmp.lt.s32.totalorder %s9, 2
    // Predicated region
    $region21: #{distributed_block_forward.4} parent=5 // pred_check
      %p141 = pneg %p140
    $region22: #{distributed_block_forward.4} parent=5 // pred_check_branch
      %143 = sbr.rel (%p141) target = $region24
    $region23: #{distributed_block_forward.4} parent=5 // pred_region
      // Predicated region
      $region25: #{distributed_block_forward.4} parent=23 // pred_check
        %p144 = pneg %p43
      $region26: #{distributed_block_forward.4} parent=23 // pred_check_branch
        %146 = sbr.rel (%p144) target = $region28
      $region27: #{distributed_block_forward.4} parent=23 // pred_region
        %s147 = smul.u32 4, %s17
        %p148 = scmp.lt.s32.totalorder %s16, 1
        %s149 = scalar_select %p148, %s16, 1
        %p150 = scmp.lt.s32.totalorder %s147, 3
        %s151 = scalar_select %p150, %s147, 3
        %s152 = smul.addr %s151, 2
        %s153 = smul.addr %s149, 8
        %s154 = sadd.s32 %s152, %s153
        %s155 = smul.addr %s154, 8
        %s156 = scalar_lea.vmem %s0, %s155
        %s157 = smul.u32 4, %s17
      $region28: #{distributed_block_forward.4} parent=23 // pred_fallthru
        _
    $region24: #{distributed_block_forward.4} parent=5 // pred_fallthru
      _
    %p158 = scmp.le.s32.totalorder 1, %s9
    %p159 = scmp.lt.s32.totalorder %s9, 3
    %p160 = pnand %p158, %p159
    %p161 = pneg %p160
    // Predicated region
    $region29: #{distributed_block_forward.4} parent=5 // pred_check
      _
    $region30: #{distributed_block_forward.4} parent=5 // pred_check_branch
      %163 = sbr.rel (%p160) target = $region32
    $region31: #{distributed_block_forward.4} parent=5 // pred_region
      %s164 = ssub.s32 %s9, 1
      %s165 = smul.u32 4, %s19
      %p166 = scmp.lt.s32.totalorder %s18, 1
      %s167 = scalar_select %p166, %s18, 1
      %p168 = scmp.lt.s32.totalorder %s165, 3
      %s169 = scalar_select %p168, %s165, 3
      %s170 = smul.addr %s169, 2
      %s171 = smul.addr %s167, 8
      %s172 = sadd.s32 %s170, %s171
      %s173 = smul.addr %s172, 8
      %s174 = scalar_lea.vmem %s0, %s173
      %p175 = pneg %p49
      %p176 = pneg %p46
      %p177 = pneg %p70
      %p178 = pneg %p67
      %p179 = pneg %p91
      %p180 = pneg %p88
      %p181 = pneg %p119
      %p182 = pneg %p116
      %s183 = smul.u32 4, %s19
      %p184 = scmp.lt.s32.totalorder %s18, 1
      %s185 = scalar_select %p184, %s18, 1
      %p186 = scmp.lt.s32.totalorder %s183, 3
      %s187 = scalar_select %p186, %s183, 3
      %s188 = smul.addr %s187, 2
      %s189 = smul.addr %s185, 8
      %s190 = sadd.s32 %s188, %s189
      %s191 = smul.addr %s190, 8
      %s192 = scalar_lea.vmem %s3, %s191
      %s193 = smul.u32 4, %s19
      %p194 = scmp.lt.s32.totalorder %s18, 1
      %s195 = scalar_select %p194, %s18, 1
      %p196 = scmp.lt.s32.totalorder %s193, 3
      %s197 = scalar_select %p196, %s193, 3
      %s198 = smul.addr %s197, 2
      %s199 = smul.addr %s195, 8
      %s200 = sadd.s32 %s198, %s199
      %s201 = smul.addr %s200, 8
      %s202 = scalar_lea.vmem %s0, %s201
      %s203 = smul.u32 4, %s19
      %s204 = smul.u32 4, %s19
      %p205 = scmp.lt.s32.totalorder %s18, 1
      %s206 = scalar_select %p205, %s18, 1
      %p207 = scmp.lt.s32.totalorder %s204, 3
      %s208 = scalar_select %p207, %s204, 3
      %s209 = smul.addr %s208, 2
      %s210 = smul.addr %s206, 8
      %s211 = sadd.s32 %s209, %s210
      %s212 = smul.addr %s211, 8
      %s213 = scalar_lea.vmem %s3, %s212
      %s214 = smul.u32 4, %s19
      %v215 = vld [vmem:[%s202] sm:$0xff]
      %v216 = vld [vmem:[%s202 + $0x8] sm:$0xff]
      %v217 = vld [vmem:[%s202 + $0x10] sm:$0xff]
      %v218 = vld [vmem:[%s202 + $0x18] sm:$0xff]
      %v219 = vld [vmem:[%s202 + $0x20] sm:$0xff]
      %v220 = vld [vmem:[%s202 + $0x28] sm:$0xff]
      %v221 = vld [vmem:[%s202 + $0x30] sm:$0xff]
      %v222 = vld [vmem:[%s202 + $0x38] sm:$0xff]
      %v223 = vadd.f32 %v215, %v216
      %224 = vadd.xlane.f32.xlu0 %v223
      %v225 = vpop.xlane.xlu0 %224
      %v226 = vadd.f32 %v217, %v218
      %227 = vadd.xlane.f32.xlu0 %v226
      %v228 = vpop.xlane.xlu0 %227
      %v229 = vadd.f32 %v219, %v220
      %230 = vadd.xlane.f32.xlu0 %v229
      %v231 = vpop.xlane.xlu0 %230
      %v232 = vadd.f32 %v221, %v222
      %233 = vadd.xlane.f32.xlu0 %v232
      %v234 = vpop.xlane.xlu0 %233
      %v235 = vrcp.pop 256.0
      %v236 = vmul.f32 %v225, %v235
      %v237 = vmul.f32 %v228, %v235
      %v238 = vmul.f32 %v231, %v235
      %v239 = vmul.f32 %v234, %v235
      %v240 = vmul.f32 %v215, %v215
      %v241 = vmul.f32 %v216, %v216
      %v242 = vmul.f32 %v217, %v217
      %v243 = vmul.f32 %v218, %v218
      %v244 = vmul.f32 %v219, %v219
      %v245 = vmul.f32 %v220, %v220
      %v246 = vmul.f32 %v221, %v221
      %v247 = vmul.f32 %v222, %v222
      %v248 = vadd.f32 %v240, %v241
      %249 = vadd.xlane.f32.xlu0 %v248
      %v250 = vpop.xlane.xlu0 %249
      %v251 = vadd.f32 %v242, %v243
      %252 = vadd.xlane.f32.xlu0 %v251
      %v253 = vpop.xlane.xlu0 %252
      %v254 = vadd.f32 %v244, %v245
      %255 = vadd.xlane.f32.xlu0 %v254
      %v256 = vpop.xlane.xlu0 %255
      %v257 = vadd.f32 %v246, %v247
      %258 = vadd.xlane.f32.xlu0 %v257
      %v259 = vpop.xlane.xlu0 %258
      %v260 = vmul.f32 %v250, %v235
      %v261 = vmul.f32 %v253, %v235
      %v262 = vmul.f32 %v256, %v235
      %v263 = vmul.f32 %v259, %v235
      %v264 = vmul.f32 %v236, %v236
      %v265 = vmul.f32 %v237, %v237
      %v266 = vmul.f32 %v238, %v238
      %v267 = vmul.f32 %v239, %v239
      %v268 = vsub.f32 %v260, %v264
      %v269 = vsub.f32 %v261, %v265
      %v270 = vsub.f32 %v262, %v266
      %v271 = vsub.f32 %v263, %v267
      %v272 = vsub.f32 %v215, %v236
      %v273 = vsub.f32 %v216, %v236
      %v274 = vsub.f32 %v217, %v237
      %v275 = vsub.f32 %v218, %v237
      %v276 = vsub.f32 %v219, %v238
      %v277 = vsub.f32 %v220, %v238
      %v278 = vsub.f32 %v221, %v239
      %v279 = vsub.f32 %v222, %v239
      %v280 = vadd.f32 %v268, 1e-05
      %v281 = vadd.f32 %v269, 1e-05
      %v282 = vadd.f32 %v270, 1e-05
      %v283 = vadd.f32 %v271, 1e-05
      %v284 = vrsqrt.pop %v280
      %v285 = vrsqrt.pop %v281
      %v286 = vrsqrt.pop %v282
      %v287 = vrsqrt.pop %v283
      %v288 = vmul.f32 %v272, %v284
      %v289 = vmul.f32 %v273, %v284
      %v290 = vmul.f32 %v274, %v285
      %v291 = vmul.f32 %v275, %v285
      %v292 = vmul.f32 %v276, %v286
      %v293 = vmul.f32 %v277, %v286
      %v294 = vmul.f32 %v278, %v287
      %v295 = vmul.f32 %v279, %v287
      %v296 = vld [vmem:[%s1] sm:$0x3]
      %v298 = vlaneseq
      %v299 = vshrl.u32 %v298, 7
      %v300 = vsub.s32 0, %v299
      %v301 = vrot.slane %v296, %v300
      %v302 = vlaneseq
      %v303 = vshrl.u32 %v302, 7
      %v304 = vsub.s32 1, %v303
      %v305 = vrot.slane %v296, %v304
      %v308 = vmul.f32 %v288, %v301
      %v309 = vmul.f32 %v289, %v305
      %v310 = vmul.f32 %v290, %v301
      %v311 = vmul.f32 %v291, %v305
      %v312 = vmul.f32 %v292, %v301
      %v313 = vmul.f32 %v293, %v305
      %v314 = vmul.f32 %v294, %v301
      %v315 = vmul.f32 %v295, %v305
      %v316 = vld [vmem:[%s2] sm:$0x3]
      %v318 = vlaneseq
      %v319 = vshrl.u32 %v318, 7
      %v320 = vsub.s32 0, %v319
      %v321 = vrot.slane %v316, %v320
      %v322 = vlaneseq
      %v323 = vshrl.u32 %v322, 7
      %v324 = vsub.s32 1, %v323
      %v325 = vrot.slane %v316, %v324
      %v328 = vadd.f32 %v308, %v321
      %v329 = vadd.f32 %v309, %v325
      %v330 = vadd.f32 %v310, %v321
      %v331 = vadd.f32 %v311, %v325
      %v332 = vadd.f32 %v312, %v321
      %v333 = vadd.f32 %v313, %v325
      %v334 = vadd.f32 %v314, %v321
      %v335 = vadd.f32 %v315, %v325
      %336 = vst [vmem:[%s213] sm:$0xff] %v328
      %337 = vst [vmem:[%s213 + $0x8] sm:$0xff] %v329
      %338 = vst [vmem:[%s213 + $0x10] sm:$0xff] %v330
      %339 = vst [vmem:[%s213 + $0x18] sm:$0xff] %v331
      %340 = vst [vmem:[%s213 + $0x20] sm:$0xff] %v332
      %341 = vst [vmem:[%s213 + $0x28] sm:$0xff] %v333
      %342 = vst [vmem:[%s213 + $0x30] sm:$0xff] %v334
      %343 = vst [vmem:[%s213 + $0x38] sm:$0xff] %v335
      %s344 = smul.u32 4, %s19
      %p345 = scmp.lt.s32.totalorder %s18, 1
      %s346 = scalar_select %p345, %s18, 1
      %p347 = scmp.lt.s32.totalorder %s344, 3
      %s348 = scalar_select %p347, %s344, 3
      %s349 = smul.addr %s348, 2
      %s350 = smul.addr %s346, 8
      %s351 = sadd.s32 %s349, %s350
      %s352 = smul.addr %s351, 8
      %s353 = scalar_lea.vmem %s3, %s352
      // Predicated region
      $region33: #{distributed_block_forward.4} parent=31 // pred_check
        %p354 = pneg %p116
      $region34: #{distributed_block_forward.4} parent=31 // pred_check_branch
        %356 = sbr.rel (%p354) target = $region36
      $region35: #{distributed_block_forward.4} parent=31 // pred_region
        %s357 = smul.u32 4, %s19
      $region36: #{distributed_block_forward.4} parent=31 // pred_fallthru
        _
    $region32: #{distributed_block_forward.4} parent=5 // pred_fallthru
      _
    %p358 = scmp.le.s32.totalorder 2, %s9
    // Predicated region
    $region37: #{distributed_block_forward.4} parent=5 // pred_check
      %p359 = pneg %p358
    $region38: #{distributed_block_forward.4} parent=5 // pred_check_branch
      %361 = sbr.rel (%p359) target = $region40
    $region39: #{distributed_block_forward.4} parent=5 // pred_region
      %s362 = ssub.s32 %s9, 2
      // Predicated region
      $region41: #{distributed_block_forward.4} parent=39 // pred_check
        %p363 = pneg %p122
      $region42: #{distributed_block_forward.4} parent=39 // pred_check_branch
        %365 = sbr.rel (%p363) target = $region44
      $region43: #{distributed_block_forward.4} parent=39 // pred_region
        %s366 = smul.u32 4, %s21
        %p367 = scmp.lt.s32.totalorder %s20, 1
        %s368 = scalar_select %p367, %s20, 1
        %p369 = scmp.lt.s32.totalorder %s366, 3
        %s370 = scalar_select %p369, %s366, 3
        %s371 = smul.addr %s370, 2
        %s372 = smul.addr %s368, 8
        %s373 = sadd.s32 %s371, %s372
        %s374 = smul.addr %s373, 8
        %s375 = scalar_lea.vmem %s3, %s374
      $region44: #{distributed_block_forward.4} parent=39 // pred_fallthru
        _
    $region40: #{distributed_block_forward.4} parent=5 // pred_fallthru
      _
  $region6: #{distributed_block_forward.4} parent=0 // loop_footer
    %s13 = sadd.s32 1, %s9
  $region7: #{distributed_block_forward.4} parent=0 // loop_footer_branch
    %8 = sbr.rel target = $region3
  $region8: #{distributed_block_forward.4} parent=0 // loop_exit
    _

// kernel: distributed_block_forward.5
$region0: #{distributed_block_forward.5}
  #allocation0 [shape = 'u32[]', space=smem, size = 0x4, offset = 0x4, fixed_abs, tag = 'smem constant byte address 0x4 - core index']
  #allocation1 [shape = 'u32[144,128]{1,0:T(1,128)}', space=vmem, size = 0x12000, scoped, tag = 'internal scratch']
  %s0 = inlined_call_operand.vmem [shape: f32[64,384], index: 0, kind: input, shape index: {}]
  %s1 = inlined_call_operand.vmem [shape: bf16[64,64], index: 1, kind: input, shape index: {}]
  %s2 = inlined_call_operand.vmem [shape: f32[64,1], index: 2, kind: input, shape index: {}]
  %s3 = inlined_call_operand.vmem [shape: bf16[64,64], index: 3, kind: input, shape index: {}]
  %s4 = inlined_call_operand.vmem [shape: f32[64,1], index: 4, kind: input, shape index: {}]
  %s5 = inlined_call_operand.vmem [shape: f32[64,384], index: 5, kind: output, shape index: {}]
  %s6 = sld [smem:[#allocation0]]
  $region30: #{distributed_block_forward.5} parent=0
    _
  %s8 = ssub.s32 1, %s6
  %s9 = scalar_select 0, %s8, %s6
  // Predicated region
  $region2: #{distributed_block_forward.5} parent=0 // pred_check
    _
  $region3: #{distributed_block_forward.5} parent=0 // pred_check_branch
    %11 = sbr.rel (0) target = $region5
  $region4: #{distributed_block_forward.5} parent=0 // pred_region
    _
  $region5: #{distributed_block_forward.5} parent=0 // pred_fallthru
    _
  // Predicated region
  $region6: #{distributed_block_forward.5} parent=0 // pred_check
    _
  $region7: #{distributed_block_forward.5} parent=0 // pred_check_branch
    %13 = sbr.rel (0) target = $region9
  $region8: #{distributed_block_forward.5} parent=0 // pred_region
    _
  $region9: #{distributed_block_forward.5} parent=0 // pred_fallthru
    _
  // Predicated region
  $region10: #{distributed_block_forward.5} parent=0 // pred_check
    _
  $region11: #{distributed_block_forward.5} parent=0 // pred_check_branch
    %15 = sbr.rel (0) target = $region13
  $region12: #{distributed_block_forward.5} parent=0 // pred_region
    _
  $region13: #{distributed_block_forward.5} parent=0 // pred_fallthru
    _
  // Predicated region
  $region14: #{distributed_block_forward.5} parent=0 // pred_check
    _
  $region15: #{distributed_block_forward.5} parent=0 // pred_check_branch
    %17 = sbr.rel (0) target = $region17
  $region16: #{distributed_block_forward.5} parent=0 // pred_region
    _
  $region17: #{distributed_block_forward.5} parent=0 // pred_fallthru
    _
  // Predicated region
  $region18: #{distributed_block_forward.5} parent=0 // pred_check
    _
  $region19: #{distributed_block_forward.5} parent=0 // pred_check_branch
    %19 = sbr.rel (0) target = $region21
  $region20: #{distributed_block_forward.5} parent=0 // pred_region
    _
  $region21: #{distributed_block_forward.5} parent=0 // pred_fallthru
    _
  %v21 = vld [vmem:[%s0] sm:$0xff]
  %v22 = vld [vmem:[%s0 + $0x8] sm:$0xff]
  %v23 = vld [vmem:[%s0 + $0x10] sm:$0xff]
  %v24 = vld [vmem:[%s0 + $0x18] sm:$0xff]
  %v25 = vld [vmem:[%s0 + $0x20] sm:$0xff]
  %v26 = vld [vmem:[%s0 + $0x28] sm:$0xff]
  %v27 = vld [vmem:[%s0 + $0x30] sm:$0xff]
  %v28 = vld [vmem:[%s0 + $0x38] sm:$0xff]
  %v29 = vld [vmem:[%s0 + $0x40] sm:$0xff]
  %v30 = vld [vmem:[%s0 + $0x48] sm:$0xff]
  %v31 = vld [vmem:[%s0 + $0x50] sm:$0xff]
  %v32 = vld [vmem:[%s0 + $0x58] sm:$0xff]
  %v33 = vld [vmem:[%s0 + $0x60] sm:$0xff]
  %v34 = vld [vmem:[%s0 + $0x68] sm:$0xff]
  %v35 = vld [vmem:[%s0 + $0x70] sm:$0xff]
  %v36 = vld [vmem:[%s0 + $0x78] sm:$0xff]
  %v37 = vld [vmem:[%s0 + $0x80] sm:$0xff]
  %v38 = vld [vmem:[%s0 + $0x88] sm:$0xff]
  %v39 = vld [vmem:[%s0 + $0x90] sm:$0xff]
  %v40 = vld [vmem:[%s0 + $0x98] sm:$0xff]
  %v41 = vld [vmem:[%s0 + $0xa0] sm:$0xff]
  %v42 = vld [vmem:[%s0 + $0xa8] sm:$0xff]
  %v43 = vld [vmem:[%s0 + $0xb0] sm:$0xff]
  %v44 = vld [vmem:[%s0 + $0xb8] sm:$0xff]
  %v45 = vpack.c.bf16 %v24, %v21
  %v46 = vpack.c.bf16 %v25, %v22
  %v47 = vpack.c.bf16 %v26, %v23
  %v48 = vpack.c.bf16 %v30, %v27
  %v49 = vpack.c.bf16 %v31, %v28
  %v50 = vpack.c.bf16 %v32, %v29
  %v51 = vpack.c.bf16 %v36, %v33
  %v52 = vpack.c.bf16 %v37, %v34
  %v53 = vpack.c.bf16 %v38, %v35
  %v54 = vpack.c.bf16 %v42, %v39
  %v55 = vpack.c.bf16 %v43, %v40
  %v56 = vpack.c.bf16 %v44, %v41
  %v57 = vld [vmem:[%s1] sm:$0xf]
  %v58 = vld [vmem:[%s1 + $0x4] sm:$0xf]
  %v59 = vld [vmem:[%s1 + $0x8] sm:$0xf]
  %v60 = vld [vmem:[%s1 + $0xc] sm:$0xf]
  %v61 = vld [vmem:[%s1 + $0x10] sm:$0xf]
  %v62 = vld [vmem:[%s1 + $0x14] sm:$0xf]
  %v63 = vld [vmem:[%s1 + $0x18] sm:$0xf]
  %v64 = vld [vmem:[%s1 + $0x1c] sm:$0xf]
  %v65 = vld [vmem:[%s2] sm:$0xff]
  %v66 = vld [vmem:[%s2 + $0x8] sm:$0xff]
  %v67 = vld [vmem:[%s2 + $0x10] sm:$0xff]
  %v68 = vld [vmem:[%s2 + $0x18] sm:$0xff]
  %v69 = vld [vmem:[%s2 + $0x20] sm:$0xff]
  %v70 = vld [vmem:[%s2 + $0x28] sm:$0xff]
  %v71 = vld [vmem:[%s2 + $0x30] sm:$0xff]
  %v72 = vld [vmem:[%s2 + $0x38] sm:$0xff]
  %74 = vset.pattern.permute.xlu0 0
  %75 = vperm.xlu0 %74, %v65
  %v76 = vpop.permute.xlu0 %75
  %79 = vset.pattern.permute.xlu0 0
  %80 = vperm.xlu0 %79, %v66
  %v81 = vpop.permute.xlu0 %80
  %84 = vset.pattern.permute.xlu0 0
  %85 = vperm.xlu0 %84, %v67
  %v86 = vpop.permute.xlu0 %85
  %89 = vset.pattern.permute.xlu0 0
  %90 = vperm.xlu0 %89, %v68
  %v91 = vpop.permute.xlu0 %90
  %94 = vset.pattern.permute.xlu0 0
  %95 = vperm.xlu0 %94, %v69
  %v96 = vpop.permute.xlu0 %95
  %99 = vset.pattern.permute.xlu0 0
  %100 = vperm.xlu0 %99, %v70
  %v101 = vpop.permute.xlu0 %100
  %104 = vset.pattern.permute.xlu0 0
  %105 = vperm.xlu0 %104, %v71
  %v106 = vpop.permute.xlu0 %105
  %109 = vset.pattern.permute.xlu0 0
  %110 = vperm.xlu0 %109, %v72
  %v111 = vpop.permute.xlu0 %110
  %v121 = vunpack.c.l.b16 %v57
  %v122 = vunpack.c.l.b16 %v58
  %v123 = vunpack.c.l.b16 %v59
  %v124 = vunpack.c.l.b16 %v60
  %v125 = vunpack.c.l.b16 %v61
  %v126 = vunpack.c.l.b16 %v62
  %v127 = vunpack.c.l.b16 %v63
  %v128 = vunpack.c.l.b16 %v64
  %v129 = vpack.c.b16 %v122, %v121
  %v130 = vpack.c.b16 %v124, %v123
  %v131 = vpack.c.b16 %v126, %v125
  %v132 = vpack.c.b16 %v128, %v127
  %vm133 = vcmask 523264
  %v135 = vsel %vm133, %v129, 0
  %v138 = vsel %vm133, %v130, 0
  %v141 = vsel %vm133, %v131, 0
  %v144 = vsel %vm133, %v132, 0
  %146 = vmatprep.subr.bf16.mxu0 0
  %147 = vmatpush1.bf16.msra.mxu0 0
  %148 = vmatprep.subr.bf16.mxu0 0
  %149 = vmatpush1.bf16.msra.mxu0 0
  %150 = vmatprep.subr.bf16.mxu0 0
  %151 = vmatpush1.bf16.msra.mxu0 0
  %152 = vmatprep.subr.bf16.mxu0 0
  %153 = vmatpush1.bf16.msra.mxu0 0
  %154 = vmatprep.subr.bf16.mxu0 %v55
  %155 = vmatpush1.bf16.msra.mxu0 %v54
  %156 = vmatprep.subr.bf16.mxu0 %v52
  %157 = vmatpush1.bf16.msra.mxu0 %v51
  %158 = vmatprep.subr.bf16.mxu0 %v49
  %159 = vmatpush1.bf16.msra.mxu0 %v48
  %160 = vmatprep.subr.bf16.mxu0 %v46
  %161 = vmatpush1.bf16.msra.mxu0 %v45
  %162 = vmatprep.subr.bf16.mxu0 0
  %163 = vmatpush2.bf16.msra.mxu0 0
  %164 = vmatprep.subr.bf16.mxu0 0
  %165 = vmatpush2.bf16.msra.mxu0 0
  %166 = vmatprep.subr.bf16.mxu0 0
  %167 = vmatpush2.bf16.msra.mxu0 0
  %168 = vmatprep.subr.bf16.mxu0 0
  %169 = vmatpush2.bf16.msra.mxu0 0
  %170 = vmatprep.subr.bf16.mxu0 0
  %171 = vmatpush2.bf16.msra.mxu0 0
  %172 = vmatprep.subr.bf16.mxu0 0
  %173 = vmatpush2.bf16.msra.mxu0 0
  %174 = vmatprep.subr.bf16.mxu0 0
  %175 = vmatpush2.bf16.msra.mxu0 0
  %176 = vmatprep.subr.bf16.mxu0 0
  %177 = vmatpush2.bf16.msra.mxu0 0
  %178 = vmatprep.mubr.bf16.mxu0 0
  %179 = vmatmul.mubr.bf16.gmra.mxu0 %v135
  %v180 = vpop.f32.mrf.mxu0
  %v181 = vadd.f32 %v76, %v180
  %v182 = vpop.f32.mrf.mxu0
  %v183 = vadd.f32 %v76, %v182
  %v184 = vpop.f32.mrf.mxu0
  %v185 = vadd.f32 %v81, %v184
  %v186 = vpop.f32.mrf.mxu0
  %v187 = vadd.f32 %v81, %v186
  %188 = vmatprep.mubr.bf16.mxu0 0
  %189 = vmatmul.mubr.bf16.gmra.mxu0 %v138
  %v190 = vpop.f32.mrf.mxu0
  %v191 = vadd.f32 %v86, %v190
  %v192 = vpop.f32.mrf.mxu0
  %v193 = vadd.f32 %v86, %v192
  %v194 = vpop.f32.mrf.mxu0
  %v195 = vadd.f32 %v91, %v194
  %v196 = vpop.f32.mrf.mxu0
  %v197 = vadd.f32 %v91, %v196
  %198 = vmatprep.mubr.bf16.mxu0 0
  %199 = vmatmul.mubr.bf16.gmra.mxu0 %v141
  %v200 = vpop.f32.mrf.mxu0
  %v201 = vadd.f32 %v96, %v200
  %v202 = vpop.f32.mrf.mxu0
  %v203 = vadd.f32 %v96, %v202
  %v204 = vpop.f32.mrf.mxu0
  %v205 = vadd.f32 %v101, %v204
  %v206 = vpop.f32.mrf.mxu0
  %v207 = vadd.f32 %v101, %v206
  %208 = vmatprep.mubr.bf16.mxu0 0
  %209 = vmatmul.mubr.bf16.gmra.mxu0 %v144
  %v210 = vpop.f32.mrf.mxu0
  %v211 = vadd.f32 %v106, %v210
  %v212 = vpop.f32.mrf.mxu0
  %v213 = vadd.f32 %v106, %v212
  %v214 = vpop.f32.mrf.mxu0
  %v215 = vadd.f32 %v111, %v214
  %v216 = vpop.f32.mrf.mxu0
  %v217 = vadd.f32 %v111, %v216
  %218 = vdwg.mxu0
  %219 = vmatprep.subr.bf16.mxu0 0
  %220 = vmatpush1.bf16.msra.mxu0 0
  %221 = vmatprep.subr.bf16.mxu0 0
  %222 = vmatpush1.bf16.msra.mxu0 0
  %223 = vmatprep.subr.bf16.mxu0 0
  %224 = vmatpush1.bf16.msra.mxu0 0
  %225 = vmatprep.subr.bf16.mxu0 0
  %226 = vmatpush1.bf16.msra.mxu0 0
  %227 = vmatprep.subr.bf16.mxu0 0
  %228 = vmatpush1.bf16.msra.mxu0 %v56
  %229 = vmatprep.subr.bf16.mxu0 0
  %230 = vmatpush1.bf16.msra.mxu0 %v53
  %231 = vmatprep.subr.bf16.mxu0 0
  %232 = vmatpush1.bf16.msra.mxu0 %v50
  %233 = vmatprep.subr.bf16.mxu0 0
  %234 = vmatpush1.bf16.msra.mxu0 %v47
  %235 = vmatprep.subr.bf16.mxu0 0
  %236 = vmatpush2.bf16.msra.mxu0 0
  %237 = vmatprep.subr.bf16.mxu0 0
  %238 = vmatpush2.bf16.msra.mxu0 0
  %239 = vmatprep.subr.bf16.mxu0 0
  %240 = vmatpush2.bf16.msra.mxu0 0
  %241 = vmatprep.subr.bf16.mxu0 0
  %242 = vmatpush2.bf16.msra.mxu0 0
  %243 = vmatprep.subr.bf16.mxu0 0
  %244 = vmatpush2.bf16.msra.mxu0 0
  %245 = vmatprep.subr.bf16.mxu0 0
  %246 = vmatpush2.bf16.msra.mxu0 0
  %247 = vmatprep.subr.bf16.mxu0 0
  %248 = vmatpush2.bf16.msra.mxu0 0
  %249 = vmatprep.subr.bf16.mxu0 0
  %250 = vmatpush2.bf16.msra.mxu0 0
  %251 = vmatprep.mubr.bf16.mxu0 0
  %252 = vmatmul.mubr.bf16.gmra.mxu0 %v135
  %v253 = vpop.f32.mrf.mxu0
  %v254 = vadd.f32 %v76, %v253
  %v255 = vpop.f32.mrf.mxu0
  %v256 = vpop.f32.mrf.mxu0
  %v257 = vadd.f32 %v81, %v256
  %v258 = vpop.f32.mrf.mxu0
  %259 = vmatprep.mubr.bf16.mxu0 0
  %260 = vmatmul.mubr.bf16.gmra.mxu0 %v138
  %v261 = vpop.f32.mrf.mxu0
  %v262 = vadd.f32 %v86, %v261
  %v263 = vpop.f32.mrf.mxu0
  %v264 = vpop.f32.mrf.mxu0
  %v265 = vadd.f32 %v91, %v264
  %v266 = vpop.f32.mrf.mxu0
  %267 = vmatprep.mubr.bf16.mxu0 0
  %268 = vmatmul.mubr.bf16.gmra.mxu0 %v141
  %v269 = vpop.f32.mrf.mxu0
  %v270 = vadd.f32 %v96, %v269
  %v271 = vpop.f32.mrf.mxu0
  %v272 = vpop.f32.mrf.mxu0
  %v273 = vadd.f32 %v101, %v272
  %v274 = vpop.f32.mrf.mxu0
  %275 = vmatprep.mubr.bf16.mxu0 0
  %276 = vmatmul.mubr.bf16.gmra.mxu0 %v144
  %v277 = vpop.f32.mrf.mxu0
  %v278 = vadd.f32 %v106, %v277
  %v279 = vpop.f32.mrf.mxu0
  %v280 = vpop.f32.mrf.mxu0
  %v281 = vadd.f32 %v111, %v280
  %v282 = vpop.f32.mrf.mxu0
  %283 = vdwg.mxu0
  %v284 = vmax.f32 %v181, 0.0
  %v285 = vmax.f32 %v183, 0.0
  %v286 = vmax.f32 %v254, 0.0
  %v287 = vmax.f32 %v185, 0.0
  %v288 = vmax.f32 %v187, 0.0
  %v289 = vmax.f32 %v257, 0.0
  %v290 = vmax.f32 %v191, 0.0
  %v291 = vmax.f32 %v193, 0.0
  %v292 = vmax.f32 %v262, 0.0
  %v293 = vmax.f32 %v195, 0.0
  %v294 = vmax.f32 %v197, 0.0
  %v295 = vmax.f32 %v265, 0.0
  %v296 = vmax.f32 %v201, 0.0
  %v297 = vmax.f32 %v203, 0.0
  %v298 = vmax.f32 %v270, 0.0
  %v299 = vmax.f32 %v205, 0.0
  %v300 = vmax.f32 %v207, 0.0
  %v301 = vmax.f32 %v273, 0.0
  %v302 = vmax.f32 %v211, 0.0
  %v303 = vmax.f32 %v213, 0.0
  %v304 = vmax.f32 %v278, 0.0
  %v305 = vmax.f32 %v215, 0.0
  %v306 = vmax.f32 %v217, 0.0
  %v307 = vmax.f32 %v281, 0.0
  %v308 = vld [vmem:[%s3] sm:$0xf]
  %v309 = vld [vmem:[%s3 + $0x4] sm:$0xf]
  %v310 = vld [vmem:[%s3 + $0x8] sm:$0xf]
  %v311 = vld [vmem:[%s3 + $0xc] sm:$0xf]
  %v312 = vld [vmem:[%s3 + $0x10] sm:$0xf]
  %v313 = vld [vmem:[%s3 + $0x14] sm:$0xf]
  %v314 = vld [vmem:[%s3 + $0x18] sm:$0xf]
  %v315 = vld [vmem:[%s3 + $0x1c] sm:$0xf]
  %v316 = vpack.c.bf16 %v287, %v284
  %v317 = vpack.c.bf16 %v288, %v285
  %v318 = vpack.c.bf16 %v289, %v286
  %v319 = vpack.c.bf16 %v293, %v290
  %v320 = vpack.c.bf16 %v294, %v291
  %v321 = vpack.c.bf16 %v295, %v292
  %v322 = vpack.c.bf16 %v299, %v296
  %v323 = vpack.c.bf16 %v300, %v297
  %v324 = vpack.c.bf16 %v301, %v298
  %v325 = vpack.c.bf16 %v305, %v302
  %v326 = vpack.c.bf16 %v306, %v303
  %v327 = vpack.c.bf16 %v307, %v304
  %v328 = vld [vmem:[%s4] sm:$0xff]
  %v329 = vld [vmem:[%s4 + $0x8] sm:$0xff]
  %v330 = vld [vmem:[%s4 + $0x10] sm:$0xff]
  %v331 = vld [vmem:[%s4 + $0x18] sm:$0xff]
  %v332 = vld [vmem:[%s4 + $0x20] sm:$0xff]
  %v333 = vld [vmem:[%s4 + $0x28] sm:$0xff]
  %v334 = vld [vmem:[%s4 + $0x30] sm:$0xff]
  %v335 = vld [vmem:[%s4 + $0x38] sm:$0xff]
  %337 = vset.pattern.permute.xlu0 0
  %338 = vperm.xlu0 %337, %v328
  %v339 = vpop.permute.xlu0 %338
  %342 = vset.pattern.permute.xlu0 0
  %343 = vperm.xlu0 %342, %v329
  %v344 = vpop.permute.xlu0 %343
  %347 = vset.pattern.permute.xlu0 0
  %348 = vperm.xlu0 %347, %v330
  %v349 = vpop.permute.xlu0 %348
  %352 = vset.pattern.permute.xlu0 0
  %353 = vperm.xlu0 %352, %v331
  %v354 = vpop.permute.xlu0 %353
  %357 = vset.pattern.permute.xlu0 0
  %358 = vperm.xlu0 %357, %v332
  %v359 = vpop.permute.xlu0 %358
  %362 = vset.pattern.permute.xlu0 0
  %363 = vperm.xlu0 %362, %v333
  %v364 = vpop.permute.xlu0 %363
  %367 = vset.pattern.permute.xlu0 0
  %368 = vperm.xlu0 %367, %v334
  %v369 = vpop.permute.xlu0 %368
  %372 = vset.pattern.permute.xlu0 0
  %373 = vperm.xlu0 %372, %v335
  %v374 = vpop.permute.xlu0 %373
  %v384 = vunpack.c.l.b16 %v308
  %v385 = vunpack.c.l.b16 %v309
  %v386 = vunpack.c.l.b16 %v310
  %v387 = vunpack.c.l.b16 %v311
  %v388 = vunpack.c.l.b16 %v312
  %v389 = vunpack.c.l.b16 %v313
  %v390 = vunpack.c.l.b16 %v314
  %v391 = vunpack.c.l.b16 %v315
  %v392 = vpack.c.b16 %v385, %v384
  %v393 = vpack.c.b16 %v387, %v386
  %v394 = vpack.c.b16 %v389, %v388
  %v395 = vpack.c.b16 %v391, %v390
  %v397 = vsel %vm133, %v392, 0
  %v400 = vsel %vm133, %v393, 0
  %v403 = vsel %vm133, %v394, 0
  %v406 = vsel %vm133, %v395, 0
  %408 = vmatprep.subr.bf16.mxu0 0
  %409 = vmatpush1.bf16.msra.mxu0 0
  %410 = vmatprep.subr.bf16.mxu0 0
  %411 = vmatpush1.bf16.msra.mxu0 0
  %412 = vmatprep.subr.bf16.mxu0 0
  %413 = vmatpush1.bf16.msra.mxu0 0
  %414 = vmatprep.subr.bf16.mxu0 0
  %415 = vmatpush1.bf16.msra.mxu0 0
  %416 = vmatprep.subr.bf16.mxu0 %v326
  %417 = vmatpush1.bf16.msra.mxu0 %v325
  %418 = vmatprep.subr.bf16.mxu0 %v323
  %419 = vmatpush1.bf16.msra.mxu0 %v322
  %420 = vmatprep.subr.bf16.mxu0 %v320
  %421 = vmatpush1.bf16.msra.mxu0 %v319
  %422 = vmatprep.subr.bf16.mxu0 %v317
  %423 = vmatpush1.bf16.msra.mxu0 %v316
  %424 = vmatprep.subr.bf16.mxu0 0
  %425 = vmatpush2.bf16.msra.mxu0 0
  %426 = vmatprep.subr.bf16.mxu0 0
  %427 = vmatpush2.bf16.msra.mxu0 0
  %428 = vmatprep.subr.bf16.mxu0 0
  %429 = vmatpush2.bf16.msra.mxu0 0
  %430 = vmatprep.subr.bf16.mxu0 0
  %431 = vmatpush2.bf16.msra.mxu0 0
  %432 = vmatprep.subr.bf16.mxu0 0
  %433 = vmatpush2.bf16.msra.mxu0 0
  %434 = vmatprep.subr.bf16.mxu0 0
  %435 = vmatpush2.bf16.msra.mxu0 0
  %436 = vmatprep.subr.bf16.mxu0 0
  %437 = vmatpush2.bf16.msra.mxu0 0
  %438 = vmatprep.subr.bf16.mxu0 0
  %439 = vmatpush2.bf16.msra.mxu0 0
  %440 = vmatprep.mubr.bf16.mxu0 0
  %441 = vmatmul.mubr.bf16.gmra.mxu0 %v397
  %v442 = vpop.f32.mrf.mxu0
  %v443 = vadd.f32 %v339, %v442
  %v444 = vpop.f32.mrf.mxu0
  %v445 = vadd.f32 %v339, %v444
  %v446 = vpop.f32.mrf.mxu0
  %v447 = vadd.f32 %v344, %v446
  %v448 = vpop.f32.mrf.mxu0
  %v449 = vadd.f32 %v344, %v448
  %450 = vmatprep.mubr.bf16.mxu0 0
  %451 = vmatmul.mubr.bf16.gmra.mxu0 %v400
  %v452 = vpop.f32.mrf.mxu0
  %v453 = vadd.f32 %v349, %v452
  %v454 = vpop.f32.mrf.mxu0
  %v455 = vadd.f32 %v349, %v454
  %v456 = vpop.f32.mrf.mxu0
  %v457 = vadd.f32 %v354, %v456
  %v458 = vpop.f32.mrf.mxu0
  %v459 = vadd.f32 %v354, %v458
  %460 = vmatprep.mubr.bf16.mxu0 0
  %461 = vmatmul.mubr.bf16.gmra.mxu0 %v403
  %v462 = vpop.f32.mrf.mxu0
  %v463 = vadd.f32 %v359, %v462
  %v464 = vpop.f32.mrf.mxu0
  %v465 = vadd.f32 %v359, %v464
  %v466 = vpop.f32.mrf.mxu0
  %v467 = vadd.f32 %v364, %v466
  %v468 = vpop.f32.mrf.mxu0
  %v469 = vadd.f32 %v364, %v468
  %470 = vmatprep.mubr.bf16.mxu0 0
  %471 = vmatmul.mubr.bf16.gmra.mxu0 %v406
  %v472 = vpop.f32.mrf.mxu0
  %v473 = vadd.f32 %v369, %v472
  %v474 = vpop.f32.mrf.mxu0
  %v475 = vadd.f32 %v369, %v474
  %v476 = vpop.f32.mrf.mxu0
  %v477 = vadd.f32 %v374, %v476
  %v478 = vpop.f32.mrf.mxu0
  %v479 = vadd.f32 %v374, %v478
  %480 = vdwg.mxu0
  %481 = vmatprep.subr.bf16.mxu0 0
  %482 = vmatpush1.bf16.msra.mxu0 0
  %483 = vmatprep.subr.bf16.mxu0 0
  %484 = vmatpush1.bf16.msra.mxu0 0
  %485 = vmatprep.subr.bf16.mxu0 0
  %486 = vmatpush1.bf16.msra.mxu0 0
  %487 = vmatprep.subr.bf16.mxu0 0
  %488 = vmatpush1.bf16.msra.mxu0 0
  %489 = vmatprep.subr.bf16.mxu0 0
  %490 = vmatpush1.bf16.msra.mxu0 %v327
  %491 = vmatprep.subr.bf16.mxu0 0
  %492 = vmatpush1.bf16.msra.mxu0 %v324
  %493 = vmatprep.subr.bf16.mxu0 0
  %494 = vmatpush1.bf16.msra.mxu0 %v321
  %495 = vmatprep.subr.bf16.mxu0 0
  %496 = vmatpush1.bf16.msra.mxu0 %v318
  %497 = vmatprep.subr.bf16.mxu0 0
  %498 = vmatpush2.bf16.msra.mxu0 0
  %499 = vmatprep.subr.bf16.mxu0 0
  %500 = vmatpush2.bf16.msra.mxu0 0
  %501 = vmatprep.subr.bf16.mxu0 0
  %502 = vmatpush2.bf16.msra.mxu0 0
  %503 = vmatprep.subr.bf16.mxu0 0
  %504 = vmatpush2.bf16.msra.mxu0 0
  %505 = vmatprep.subr.bf16.mxu0 0
  %506 = vmatpush2.bf16.msra.mxu0 0
  %507 = vmatprep.subr.bf16.mxu0 0
  %508 = vmatpush2.bf16.msra.mxu0 0
  %509 = vmatprep.subr.bf16.mxu0 0
  %510 = vmatpush2.bf16.msra.mxu0 0
  %511 = vmatprep.subr.bf16.mxu0 0
  %512 = vmatpush2.bf16.msra.mxu0 0
  %513 = vmatprep.mubr.bf16.mxu0 0
  %514 = vmatmul.mubr.bf16.gmra.mxu0 %v397
  %v515 = vpop.f32.mrf.mxu0
  %v516 = vadd.f32 %v339, %v515
  %v517 = vpop.f32.mrf.mxu0
  %v518 = vpop.f32.mrf.mxu0
  %v519 = vadd.f32 %v344, %v518
  %v520 = vpop.f32.mrf.mxu0
  %521 = vmatprep.mubr.bf16.mxu0 0
  %522 = vmatmul.mubr.bf16.gmra.mxu0 %v400
  %v523 = vpop.f32.mrf.mxu0
  %v524 = vadd.f32 %v349, %v523
  %v525 = vpop.f32.mrf.mxu0
  %v526 = vpop.f32.mrf.mxu0
  %v527 = vadd.f32 %v354, %v526
  %v528 = vpop.f32.mrf.mxu0
  %529 = vmatprep.mubr.bf16.mxu0 0
  %530 = vmatmul.mubr.bf16.gmra.mxu0 %v403
  %v531 = vpop.f32.mrf.mxu0
  %v532 = vadd.f32 %v359, %v531
  %v533 = vpop.f32.mrf.mxu0
  %v534 = vpop.f32.mrf.mxu0
  %v535 = vadd.f32 %v364, %v534
  %v536 = vpop.f32.mrf.mxu0
  %537 = vmatprep.mubr.bf16.mxu0 0
  %538 = vmatmul.mubr.bf16.gmra.mxu0 %v406
  %v539 = vpop.f32.mrf.mxu0
  %v540 = vadd.f32 %v369, %v539
  %v541 = vpop.f32.mrf.mxu0
  %v542 = vpop.f32.mrf.mxu0
  %v543 = vadd.f32 %v374, %v542
  %v544 = vpop.f32.mrf.mxu0
  %545 = vdwg.mxu0
  %vm546 = vcmp.gt.f32.partialorder %v443, 0.01
  %vm547 = vcmp.gt.f32.partialorder %v445, 0.01
  %vm548 = vcmp.gt.f32.partialorder %v516, 0.01
  %vm549 = vcmp.gt.f32.partialorder %v447, 0.01
  %vm550 = vcmp.gt.f32.partialorder %v449, 0.01
  %vm551 = vcmp.gt.f32.partialorder %v519, 0.01
  %vm552 = vcmp.gt.f32.partialorder %v453, 0.01
  %vm553 = vcmp.gt.f32.partialorder %v455, 0.01
  %vm554 = vcmp.gt.f32.partialorder %v524, 0.01
  %vm555 = vcmp.gt.f32.partialorder %v457, 0.01
  %vm556 = vcmp.gt.f32.partialorder %v459, 0.01
  %vm557 = vcmp.gt.f32.partialorder %v527, 0.01
  %vm558 = vcmp.gt.f32.partialorder %v463, 0.01
  %vm559 = vcmp.gt.f32.partialorder %v465, 0.01
  %vm560 = vcmp.gt.f32.partialorder %v532, 0.01
  %vm561 = vcmp.gt.f32.partialorder %v467, 0.01
  %vm562 = vcmp.gt.f32.partialorder %v469, 0.01
  %vm563 = vcmp.gt.f32.partialorder %v535, 0.01
  %vm564 = vcmp.gt.f32.partialorder %v473, 0.01
  %vm565 = vcmp.gt.f32.partialorder %v475, 0.01
  %vm566 = vcmp.gt.f32.partialorder %v540, 0.01
  %vm567 = vcmp.gt.f32.partialorder %v477, 0.01
  %vm568 = vcmp.gt.f32.partialorder %v479, 0.01
  %vm569 = vcmp.gt.f32.partialorder %v543, 0.01
  %v570 = vsub.f32 %v443, 0.01
  %v571 = vsub.f32 %v445, 0.01
  %v572 = vsub.f32 %v516, 0.01
  %v573 = vsub.f32 %v447, 0.01
  %v574 = vsub.f32 %v449, 0.01
  %v575 = vsub.f32 %v519, 0.01
  %v576 = vsub.f32 %v453, 0.01
  %v577 = vsub.f32 %v455, 0.01
  %v578 = vsub.f32 %v524, 0.01
  %v579 = vsub.f32 %v457, 0.01
  %v580 = vsub.f32 %v459, 0.01
  %v581 = vsub.f32 %v527, 0.01
  %v582 = vsub.f32 %v463, 0.01
  %v583 = vsub.f32 %v465, 0.01
  %v584 = vsub.f32 %v532, 0.01
  %v585 = vsub.f32 %v467, 0.01
  %v586 = vsub.f32 %v469, 0.01
  %v587 = vsub.f32 %v535, 0.01
  %v588 = vsub.f32 %v473, 0.01
  %v589 = vsub.f32 %v475, 0.01
  %v590 = vsub.f32 %v540, 0.01
  %v591 = vsub.f32 %v477, 0.01
  %v592 = vsub.f32 %v479, 0.01
  %v593 = vsub.f32 %v543, 0.01
  %vm594 = vcmp.lt.f32.partialorder %v443, -0.01
  %vm595 = vcmp.lt.f32.partialorder %v445, -0.01
  %vm596 = vcmp.lt.f32.partialorder %v516, -0.01
  %vm597 = vcmp.lt.f32.partialorder %v447, -0.01
  %vm598 = vcmp.lt.f32.partialorder %v449, -0.01
  %vm599 = vcmp.lt.f32.partialorder %v519, -0.01
  %vm600 = vcmp.lt.f32.partialorder %v453, -0.01
  %vm601 = vcmp.lt.f32.partialorder %v455, -0.01
  %vm602 = vcmp.lt.f32.partialorder %v524, -0.01
  %vm603 = vcmp.lt.f32.partialorder %v457, -0.01
  %vm604 = vcmp.lt.f32.partialorder %v459, -0.01
  %vm605 = vcmp.lt.f32.partialorder %v527, -0.01
  %vm606 = vcmp.lt.f32.partialorder %v463, -0.01
  %vm607 = vcmp.lt.f32.partialorder %v465, -0.01
  %vm608 = vcmp.lt.f32.partialorder %v532, -0.01
  %vm609 = vcmp.lt.f32.partialorder %v467, -0.01
  %vm610 = vcmp.lt.f32.partialorder %v469, -0.01
  %vm611 = vcmp.lt.f32.partialorder %v535, -0.01
  %vm612 = vcmp.lt.f32.partialorder %v473, -0.01
  %vm613 = vcmp.lt.f32.partialorder %v475, -0.01
  %vm614 = vcmp.lt.f32.partialorder %v540, -0.01
  %vm615 = vcmp.lt.f32.partialorder %v477, -0.01
  %vm616 = vcmp.lt.f32.partialorder %v479, -0.01
  %vm617 = vcmp.lt.f32.partialorder %v543, -0.01
  %v618 = vadd.f32 %v443, 0.01
  %v619 = vadd.f32 %v445, 0.01
  %v620 = vadd.f32 %v516, 0.01
  %v621 = vadd.f32 %v447, 0.01
  %v622 = vadd.f32 %v449, 0.01
  %v623 = vadd.f32 %v519, 0.01
  %v624 = vadd.f32 %v453, 0.01
  %v625 = vadd.f32 %v455, 0.01
  %v626 = vadd.f32 %v524, 0.01
  %v627 = vadd.f32 %v457, 0.01
  %v628 = vadd.f32 %v459, 0.01
  %v629 = vadd.f32 %v527, 0.01
  %v630 = vadd.f32 %v463, 0.01
  %v631 = vadd.f32 %v465, 0.01
  %v632 = vadd.f32 %v532, 0.01
  %v633 = vadd.f32 %v467, 0.01
  %v634 = vadd.f32 %v469, 0.01
  %v635 = vadd.f32 %v535, 0.01
  %v636 = vadd.f32 %v473, 0.01
  %v637 = vadd.f32 %v475, 0.01
  %v638 = vadd.f32 %v540, 0.01
  %v639 = vadd.f32 %v477, 0.01
  %v640 = vadd.f32 %v479, 0.01
  %v641 = vadd.f32 %v543, 0.01
  %v642 = vsel %vm594, %v618, 0.0
  %v643 = vsel %vm595, %v619, 0.0
  %v644 = vsel %vm596, %v620, 0.0
  %v645 = vsel %vm597, %v621, 0.0
  %v646 = vsel %vm598, %v622, 0.0
  %v647 = vsel %vm599, %v623, 0.0
  %v648 = vsel %vm600, %v624, 0.0
  %v649 = vsel %vm601, %v625, 0.0
  %v650 = vsel %vm602, %v626, 0.0
  %v651 = vsel %vm603, %v627, 0.0
  %v652 = vsel %vm604, %v628, 0.0
  %v653 = vsel %vm605, %v629, 0.0
  %v654 = vsel %vm606, %v630, 0.0
  %v655 = vsel %vm607, %v631, 0.0
  %v656 = vsel %vm608, %v632, 0.0
  %v657 = vsel %vm609, %v633, 0.0
  %v658 = vsel %vm610, %v634, 0.0
  %v659 = vsel %vm611, %v635, 0.0
  %v660 = vsel %vm612, %v636, 0.0
  %v661 = vsel %vm613, %v637, 0.0
  %v662 = vsel %vm614, %v638, 0.0
  %v663 = vsel %vm615, %v639, 0.0
  %v664 = vsel %vm616, %v640, 0.0
  %v665 = vsel %vm617, %v641, 0.0
  %v666 = vsel %vm546, %v570, %v642
  %v667 = vsel %vm547, %v571, %v643
  %v668 = vsel %vm548, %v572, %v644
  %v669 = vsel %vm549, %v573, %v645
  %v670 = vsel %vm550, %v574, %v646
  %v671 = vsel %vm551, %v575, %v647
  %v672 = vsel %vm552, %v576, %v648
  %v673 = vsel %vm553, %v577, %v649
  %v674 = vsel %vm554, %v578, %v650
  %v675 = vsel %vm555, %v579, %v651
  %v676 = vsel %vm556, %v580, %v652
  %v677 = vsel %vm557, %v581, %v653
  %v678 = vsel %vm558, %v582, %v654
  %v679 = vsel %vm559, %v583, %v655
  %v680 = vsel %vm560, %v584, %v656
  %v681 = vsel %vm561, %v585, %v657
  %v682 = vsel %vm562, %v586, %v658
  %v683 = vsel %vm563, %v587, %v659
  %v684 = vsel %vm564, %v588, %v660
  %v685 = vsel %vm565, %v589, %v661
  %v686 = vsel %vm566, %v590, %v662
  %v687 = vsel %vm567, %v591, %v663
  %v688 = vsel %vm568, %v592, %v664
  %v689 = vsel %vm569, %v593, %v665
  %690 = vst [vmem:[%s5] sm:$0xff] %v666
  %691 = vst [vmem:[%s5 + $0x8] sm:$0xff] %v667
  %692 = vst [vmem:[%s5 + $0x10] sm:$0xff] %v668
  %693 = vst [vmem:[%s5 + $0x18] sm:$0xff] %v669
  %694 = vst [vmem:[%s5 + $0x20] sm:$0xff] %v670
  %695 = vst [vmem:[%s5 + $0x28] sm:$0xff] %v671
  %696 = vst [vmem:[%s5 + $0x30] sm:$0xff] %v672
  %697 = vst [vmem:[%s5 + $0x38] sm:$0xff] %v673
  %698 = vst [vmem:[%s5 + $0x40] sm:$0xff] %v674
  %699 = vst [vmem:[%s5 + $0x48] sm:$0xff] %v675
  %700 = vst [vmem:[%s5 + $0x50] sm:$0xff] %v676
  %701 = vst [vmem:[%s5 + $0x58] sm:$0xff] %v677
  %702 = vst [vmem:[%s5 + $0x60] sm:$0xff] %v678
  %703 = vst [vmem:[%s5 + $0x68] sm:$0xff] %v679
  %704 = vst [vmem:[%s5 + $0x70] sm:$0xff] %v680
  %705 = vst [vmem:[%s5 + $0x78] sm:$0xff] %v681
  %706 = vst [vmem:[%s5 + $0x80] sm:$0xff] %v682
  %707 = vst [vmem:[%s5 + $0x88] sm:$0xff] %v683
  %708 = vst [vmem:[%s5 + $0x90] sm:$0xff] %v684
  %709 = vst [vmem:[%s5 + $0x98] sm:$0xff] %v685
  %710 = vst [vmem:[%s5 + $0xa0] sm:$0xff] %v686
  %711 = vst [vmem:[%s5 + $0xa8] sm:$0xff] %v687
  %712 = vst [vmem:[%s5 + $0xb0] sm:$0xff] %v688
  %713 = vst [vmem:[%s5 + $0xb8] sm:$0xff] %v689
  // Predicated region
  $region22: #{distributed_block_forward.5} parent=0 // pred_check
    _
  $region23: #{distributed_block_forward.5} parent=0 // pred_check_branch
    %715 = sbr.rel (0) target = $region25
  $region24: #{distributed_block_forward.5} parent=0 // pred_region
    _
  $region25: #{distributed_block_forward.5} parent=0 // pred_fallthru
    _
  // Predicated region
  $region26: #{distributed_block_forward.5} parent=0 // pred_check
    _
  $region27: #{distributed_block_forward.5} parent=0 // pred_check_branch
    %717 = sbr.rel (0) target = $region29
  $region28: #{distributed_block_forward.5} parent=0 // pred_region
    _
  $region29: #{distributed_block_forward.5} parent=0 // pred_fallthru
    _

// kernel: reverse.1
$region0: #{reverse.1}
  #allocation0 [shape = 's32[1]{0}', space=sflag, size = 0x4, scoped, tag = 'scoped memory for reverse.1']
  %s0 = inlined_call_operand.vmem [shape: f32[2,32,16,7], index: 0, kind: input, shape index: {}]
  %s1 = inlined_call_operand.vmem [shape: f32[2,32,16,7], index: 1, kind: output, shape index: {}]
  %s2 = scalar_lea.vmem %s0, 96
  %v3 = vld [vmem:[%s2] sm:$0xff]
  %4 = vst [vmem:[%s1] sm:$0xff] %v3
  %s5 = scalar_lea.vmem %s0, 208
  %v6 = vld [vmem:[%s5] sm:$0xff]
  %s7 = scalar_lea.vmem %s1, 112
  %8 = vst [vmem:[%s7] sm:$0xff] %v6
  %s9 = scalar_lea.vmem %s0, 80
  %v10 = vld [vmem:[%s9] sm:$0xff]
  %s11 = scalar_lea.vmem %s1, 16
  %12 = vst [vmem:[%s11] sm:$0xff] %v10
  %s13 = scalar_lea.vmem %s0, 192
  %v14 = vld [vmem:[%s13] sm:$0xff]
  %s15 = scalar_lea.vmem %s1, 128
  %16 = vst [vmem:[%s15] sm:$0xff] %v14
  %s17 = scalar_lea.vmem %s0, 64
  %v18 = vld [vmem:[%s17] sm:$0xff]
  %s19 = scalar_lea.vmem %s1, 32
  %20 = vst [vmem:[%s19] sm:$0xff] %v18
  %s21 = scalar_lea.vmem %s0, 176
  %v22 = vld [vmem:[%s21] sm:$0xff]
  %s23 = scalar_lea.vmem %s1, 144
  %24 = vst [vmem:[%s23] sm:$0xff] %v22
  %s25 = scalar_lea.vmem %s0, 48
  %v26 = vld [vmem:[%s25] sm:$0xff]
  %s27 = scalar_lea.vmem %s1, 48
  %28 = vst [vmem:[%s27] sm:$0xff] %v26
  %s29 = scalar_lea.vmem %s0, 160
  %v30 = vld [vmem:[%s29] sm:$0xff]
  %s31 = scalar_lea.vmem %s1, 160
  %32 = vst [vmem:[%s31] sm:$0xff] %v30
  %s33 = scalar_lea.vmem %s0, 32
  %v34 = vld [vmem:[%s33] sm:$0xff]
  %s35 = scalar_lea.vmem %s1, 64
  %36 = vst [vmem:[%s35] sm:$0xff] %v34
  %s37 = scalar_lea.vmem %s0, 144
  %v38 = vld [vmem:[%s37] sm:$0xff]
  %s39 = scalar_lea.vmem %s1, 176
  %40 = vst [vmem:[%s39] sm:$0xff] %v38
  %s41 = scalar_lea.vmem %s0, 16
  %v42 = vld [vmem:[%s41] sm:$0xff]
  %s43 = scalar_lea.vmem %s1, 80
  %44 = vst [vmem:[%s43] sm:$0xff] %v42
  %s45 = scalar_lea.vmem %s0, 128
  %v46 = vld [vmem:[%s45] sm:$0xff]
  %s47 = scalar_lea.vmem %s1, 192
  %48 = vst [vmem:[%s47] sm:$0xff] %v46
  %v49 = vld [vmem:[%s0] sm:$0xff]
  %s50 = scalar_lea.vmem %s1, 96
  %51 = vst [vmem:[%s50] sm:$0xff] %v49
  %s52 = scalar_lea.vmem %s0, 112
  %v53 = vld [vmem:[%s52] sm:$0xff]
  %s54 = scalar_lea.vmem %s1, 208
  %55 = vst [vmem:[%s54] sm:$0xff] %v53
  %s56 = scalar_lea.vmem %s0, 104
  %v57 = vld [vmem:[%s56] sm:$0xff]
  %s58 = scalar_lea.vmem %s1, 8
  %59 = vst [vmem:[%s58] sm:$0xff] %v57
  %s60 = scalar_lea.vmem %s0, 216
  %v61 = vld [vmem:[%s60] sm:$0xff]
  %s62 = scalar_lea.vmem %s1, 120
  %63 = vst [vmem:[%s62] sm:$0xff] %v61
  %s64 = scalar_lea.vmem %s0, 88
  %v65 = vld [vmem:[%s64] sm:$0xff]
  %s66 = scalar_lea.vmem %s1, 24
  %67 = vst [vmem:[%s66] sm:$0xff] %v65
  %s68 = scalar_lea.vmem %s0, 200
  %v69 = vld [vmem:[%s68] sm:$0xff]
  %s70 = scalar_lea.vmem %s1, 136
  %71 = vst [vmem:[%s70] sm:$0xff] %v69
  %s72 = scalar_lea.vmem %s0, 72
  %v73 = vld [vmem:[%s72] sm:$0xff]
  %s74 = scalar_lea.vmem %s1, 40
  %75 = vst [vmem:[%s74] sm:$0xff] %v73
  %s76 = scalar_lea.vmem %s0, 184
  %v77 = vld [vmem:[%s76] sm:$0xff]
  %s78 = scalar_lea.vmem %s1, 152
  %79 = vst [vmem:[%s78] sm:$0xff] %v77
  %s80 = scalar_lea.vmem %s0, 56
  %v81 = vld [vmem:[%s80] sm:$0xff]
  %s82 = scalar_lea.vmem %s1, 56
  %83 = vst [vmem:[%s82] sm:$0xff] %v81
  %s84 = scalar_lea.vmem %s0, 168
  %v85 = vld [vmem:[%s84] sm:$0xff]
  %s86 = scalar_lea.vmem %s1, 168
  %87 = vst [vmem:[%s86] sm:$0xff] %v85
  %s88 = scalar_lea.vmem %s0, 40
  %v89 = vld [vmem:[%s88] sm:$0xff]
  %s90 = scalar_lea.vmem %s1, 72
  %91 = vst [vmem:[%s90] sm:$0xff] %v89
  %s92 = scalar_lea.vmem %s0, 152
  %v93 = vld [vmem:[%s92] sm:$0xff]
  %s94 = scalar_lea.vmem %s1, 184
  %95 = vst [vmem:[%s94] sm:$0xff] %v93
  %s96 = scalar_lea.vmem %s0, 24
  %v97 = vld [vmem:[%s96] sm:$0xff]
  %s98 = scalar_lea.vmem %s1, 88
  %99 = vst [vmem:[%s98] sm:$0xff] %v97
  %s100 = scalar_lea.vmem %s0, 136
  %v101 = vld [vmem:[%s100] sm:$0xff]
  %s102 = scalar_lea.vmem %s1, 200
  %103 = vst [vmem:[%s102] sm:$0xff] %v101
  %s104 = scalar_lea.vmem %s0, 8
  %v105 = vld [vmem:[%s104] sm:$0xff]
  %s106 = scalar_lea.vmem %s1, 104
  %107 = vst [vmem:[%s106] sm:$0xff] %v105
  %s108 = scalar_lea.vmem %s0, 120
  %v109 = vld [vmem:[%s108] sm:$0xff]
  %s110 = scalar_lea.vmem %s1, 216
  %111 = vst [vmem:[%s110] sm:$0xff] %v109

// kernel: distributed_block_forward.6
$region0: #{distributed_block_forward.6}
  #allocation0 [shape = 'u32[]', space=smem, size = 0x4, offset = 0x4, fixed_abs, tag = 'smem constant byte address 0x4 - core index']
  #allocation1 [shape = 'u32[144,128]{1,0:T(1,128)}', space=vmem, size = 0x12000, scoped, tag = 'internal scratch']
  %s0 = inlined_call_operand.vmem [shape: f32[2,32,256], index: 0, kind: input, shape index: {}]
  %s1 = inlined_call_operand.vmem [shape: f32[2,32,256], index: 1, kind: input, shape index: {}]
  %s2 = inlined_call_operand.vmem [shape: f32[2,32,256], index: 2, kind: input, shape index: {}]
  %s3 = inlined_call_operand.vmem [shape: f32[2,32,1], index: 3, kind: output, shape index: {0}]
  %s4 = inlined_call_operand.vmem [shape: f32[2,32,1], index: 4, kind: output, shape index: {1}]
  %5 = xla_tuple %s3, %s4
  %s6 = sld [smem:[#allocation0]]
  $region53: #{distributed_block_forward.6} parent=0
    _
  %s8 = ssub.s32 1, %s6
  %s9 = scalar_select 0, %s8, %s6
  loop: start=0, step=1, limit=4
  $region2: #{distributed_block_forward.6} parent=0 // loop_pre_header
    _
  $region3: #{distributed_block_forward.6} parent=0 // loop_header
    %s11 = sphi 0, %s15
    %p12 = scmp.ge.s32.totalorder %s11, 4
    %s18 = sphi 0, %s30
    %s19 = sphi 0, %s26
    %s20 = sphi 0, %s18
    %s21 = sphi 0, %s19
    %s22 = sphi 0, %s20
    %s23 = sphi 0, %s21
    %s35 = sphi 0, %s37
    %s38 = sphi 0, %s35
    %s39 = sphi 0, %s38
    %s55 = sphi 0, %s39
    %s63 = sphi 0, %s65
    %s66 = sphi 0, %s63
    %s67 = sphi 0, %s66
    %s83 = sphi 0, %s67
    %s91 = sphi 0, %s93
    %s94 = sphi 0, %s91
    %s95 = sphi 0, %s94
    %s111 = sphi 0, %s95
    %s119 = sphi 0, %s121
    %s122 = sphi 0, %s119
    %s123 = sphi 0, %s122
    %s139 = sphi 0, %s123
    %s147 = sphi 0, %s149
    %s150 = sphi 0, %s147
    %s151 = sphi 0, %s150
    %s167 = sphi 0, %s151
  $region4: #{distributed_block_forward.6} parent=0 // loop_header_branch
    %14 = sbr.rel (%p12) target = $region8
  $region5: #{distributed_block_forward.6} parent=0 // loop_body
    %s16 = ssub.s32 %s11, 1
    %s17 = ssub.s32 %s11, 2
    %s24 = sadd.s32 1, %s19
    %p25 = scmp.ge.s32.totalorder %s24, 1
    %s26 = scalar_select %p25, 0, %s24
    %s27 = sadd.s32 1, %s18
    %s28 = scalar_select %p25, %s27, %s18
    %p29 = scmp.ge.s32.totalorder %s28, 2
    %s30 = scalar_select %p29, 0, %s28
    %s31 = ssub.s32 %s18, %s30
    %s32 = ssub.s32 %s19, %s26
    %s33 = sor.u32 %s31, %s32
    %p34 = scmp.eq.s32.totalorder %s33, 0
    %s36 = sadd.s32 %s35, 1
    %s37 = scalar_select %p34, %s35, %s36
    %p40 = pneg %p34
    %p41 = scmp.eq.s32.totalorder %s11, 1
    %p42 = por %p40, %p41
    %p43 = scmp.ne.s32.totalorder %s35, %s38
    %p44 = scmp.eq.s32.totalorder %s11, 0
    %p45 = por %p43, %p44
    %p46 = scmp.ne.s32.totalorder %s35, %s38
    %p47 = scmp.eq.s32.totalorder %s16, 1
    %p48 = por %p46, %p47
    %p49 = scmp.ne.s32.totalorder %s38, %s39
    %p50 = scmp.eq.s32.totalorder %s16, 0
    %p51 = por %p49, %p50
    %p52 = scmp.ne.s32.totalorder %s38, %s39
    %p53 = scmp.eq.s32.totalorder %s17, 1
    %p54 = por %p52, %p53
    %p56 = scmp.ne.s32.totalorder %s39, %s55
    %p57 = scmp.eq.s32.totalorder %s17, 0
    %p58 = por %p56, %p57
    %s59 = ssub.s32 %s18, %s30
    %s60 = ssub.s32 %s19, %s26
    %s61 = sor.u32 %s59, %s60
    %p62 = scmp.eq.s32.totalorder %s61, 0
    %s64 = sadd.s32 %s63, 1
    %s65 = scalar_select %p62, %s63, %s64
    %p68 = pneg %p62
    %p69 = scmp.eq.s32.totalorder %s11, 1
    %p70 = por %p68, %p69
    %p71 = scmp.ne.s32.totalorder %s63, %s66
    %p72 = scmp.eq.s32.totalorder %s11, 0
    %p73 = por %p71, %p72
    %p74 = scmp.ne.s32.totalorder %s63, %s66
    %p75 = scmp.eq.s32.totalorder %s16, 1
    %p76 = por %p74, %p75
    %p77 = scmp.ne.s32.totalorder %s66, %s67
    %p78 = scmp.eq.s32.totalorder %s16, 0
    %p79 = por %p77, %p78
    %p80 = scmp.ne.s32.totalorder %s66, %s67
    %p81 = scmp.eq.s32.totalorder %s17, 1
    %p82 = por %p80, %p81
    %p84 = scmp.ne.s32.totalorder %s67, %s83
    %p85 = scmp.eq.s32.totalorder %s17, 0
    %p86 = por %p84, %p85
    %s87 = ssub.s32 %s18, %s30
    %s88 = ssub.s32 %s19, %s26
    %s89 = sor.u32 %s87, %s88
    %p90 = scmp.eq.s32.totalorder %s89, 0
    %s92 = sadd.s32 %s91, 1
    %s93 = scalar_select %p90, %s91, %s92
    %p96 = pneg %p90
    %p97 = scmp.eq.s32.totalorder %s11, 1
    %p98 = por %p96, %p97
    %p99 = scmp.ne.s32.totalorder %s91, %s94
    %p100 = scmp.eq.s32.totalorder %s11, 0
    %p101 = por %p99, %p100
    %p102 = scmp.ne.s32.totalorder %s91, %s94
    %p103 = scmp.eq.s32.totalorder %s16, 1
    %p104 = por %p102, %p103
    %p105 = scmp.ne.s32.totalorder %s94, %s95
    %p106 = scmp.eq.s32.totalorder %s16, 0
    %p107 = por %p105, %p106
    %p108 = scmp.ne.s32.totalorder %s94, %s95
    %p109 = scmp.eq.s32.totalorder %s17, 1
    %p110 = por %p108, %p109
    %p112 = scmp.ne.s32.totalorder %s95, %s111
    %p113 = scmp.eq.s32.totalorder %s17, 0
    %p114 = por %p112, %p113
    %s115 = ssub.s32 %s18, %s30
    %s116 = ssub.s32 %s19, %s26
    %s117 = sor.u32 %s115, %s116
    %p118 = scmp.eq.s32.totalorder %s117, 0
    %s120 = sadd.s32 %s119, 1
    %s121 = scalar_select %p118, %s119, %s120
    %p124 = pneg %p118
    %p125 = scmp.eq.s32.totalorder %s11, 1
    %p126 = por %p124, %p125
    %p127 = scmp.ne.s32.totalorder %s119, %s122
    %p128 = scmp.eq.s32.totalorder %s11, 0
    %p129 = por %p127, %p128
    %p130 = scmp.ne.s32.totalorder %s119, %s122
    %p131 = scmp.eq.s32.totalorder %s16, 1
    %p132 = por %p130, %p131
    %p133 = scmp.ne.s32.totalorder %s122, %s123
    %p134 = scmp.eq.s32.totalorder %s16, 0
    %p135 = por %p133, %p134
    %p136 = scmp.ne.s32.totalorder %s122, %s123
    %p137 = scmp.eq.s32.totalorder %s17, 1
    %p138 = por %p136, %p137
    %p140 = scmp.ne.s32.totalorder %s123, %s139
    %p141 = scmp.eq.s32.totalorder %s17, 0
    %p142 = por %p140, %p141
    %s143 = ssub.s32 %s18, %s30
    %s144 = ssub.s32 %s19, %s26
    %s145 = sor.u32 %s143, %s144
    %p146 = scmp.eq.s32.totalorder %s145, 0
    %s148 = sadd.s32 %s147, 1
    %s149 = scalar_select %p146, %s147, %s148
    %p152 = pneg %p146
    %p153 = scmp.eq.s32.totalorder %s11, 1
    %p154 = por %p152, %p153
    %p155 = scmp.ne.s32.totalorder %s147, %s150
    %p156 = scmp.eq.s32.totalorder %s11, 0
    %p157 = por %p155, %p156
    %p158 = scmp.ne.s32.totalorder %s147, %s150
    %p159 = scmp.eq.s32.totalorder %s16, 1
    %p160 = por %p158, %p159
    %p161 = scmp.ne.s32.totalorder %s150, %s151
    %p162 = scmp.eq.s32.totalorder %s16, 0
    %p163 = por %p161, %p162
    %p164 = scmp.ne.s32.totalorder %s150, %s151
    %p165 = scmp.eq.s32.totalorder %s17, 1
    %p166 = por %p164, %p165
    %p168 = scmp.ne.s32.totalorder %s151, %s167
    %p169 = scmp.eq.s32.totalorder %s17, 0
    %p170 = por %p168, %p169
    %p171 = scmp.le.s32.totalorder 1, %s11
    %p172 = scmp.lt.s32.totalorder %s11, 3
    %p173 = pnand %p171, %p172
    %p174 = pneg %p173
    // Predicated region
    $region9: #{distributed_block_forward.6} parent=5 // pred_check
      _
    $region10: #{distributed_block_forward.6} parent=5 // pred_check_branch
      %176 = sbr.rel (%p173) target = $region12
    $region11: #{distributed_block_forward.6} parent=5 // pred_region
      %s177 = ssub.s32 %s11, 1
    $region12: #{distributed_block_forward.6} parent=5 // pred_fallthru
      _
    %p178 = scmp.lt.s32.totalorder %s11, 2
    // Predicated region
    $region13: #{distributed_block_forward.6} parent=5 // pred_check
      %p179 = pneg %p178
    $region14: #{distributed_block_forward.6} parent=5 // pred_check_branch
      %181 = sbr.rel (%p179) target = $region16
    $region15: #{distributed_block_forward.6} parent=5 // pred_region
      // Predicated region
      $region17: #{distributed_block_forward.6} parent=15 // pred_check
        %p182 = pneg %p45
      $region18: #{distributed_block_forward.6} parent=15 // pred_check_branch
        %184 = sbr.rel (%p182) target = $region20
      $region19: #{distributed_block_forward.6} parent=15 // pred_region
        %s185 = smul.u32 4, %s19
        %p186 = scmp.lt.s32.totalorder %s18, 1
        %s187 = scalar_select %p186, %s18, 1
        %p188 = scmp.lt.s32.totalorder %s185, 3
        %s189 = scalar_select %p188, %s185, 3
        %s190 = smul.addr %s189, 2
        %s191 = smul.addr %s187, 8
        %s192 = sadd.s32 %s190, %s191
        %s193 = smul.addr %s192, 8
        %s194 = scalar_lea.vmem %s0, %s193
        %s195 = smul.u32 4, %s19
      $region20: #{distributed_block_forward.6} parent=15 // pred_fallthru
        _
      // Predicated region
      $region21: #{distributed_block_forward.6} parent=15 // pred_check
        %p196 = pneg %p73
      $region22: #{distributed_block_forward.6} parent=15 // pred_check_branch
        %198 = sbr.rel (%p196) target = $region24
      $region23: #{distributed_block_forward.6} parent=15 // pred_region
        %s199 = smul.u32 4, %s19
        %p200 = scmp.lt.s32.totalorder %s18, 1
        %s201 = scalar_select %p200, %s18, 1
        %p202 = scmp.lt.s32.totalorder %s199, 3
        %s203 = scalar_select %p202, %s199, 3
        %s204 = smul.addr %s203, 2
        %s205 = smul.addr %s201, 8
        %s206 = sadd.s32 %s204, %s205
        %s207 = smul.addr %s206, 8
        %s208 = scalar_lea.vmem %s1, %s207
        %s209 = smul.u32 4, %s19
      $region24: #{distributed_block_forward.6} parent=15 // pred_fallthru
        _
      // Predicated region
      $region25: #{distributed_block_forward.6} parent=15 // pred_check
        %p210 = pneg %p101
      $region26: #{distributed_block_forward.6} parent=15 // pred_check_branch
        %212 = sbr.rel (%p210) target = $region28
      $region27: #{distributed_block_forward.6} parent=15 // pred_region
        %s213 = smul.u32 4, %s19
        %p214 = scmp.lt.s32.totalorder %s18, 1
        %s215 = scalar_select %p214, %s18, 1
        %p216 = scmp.lt.s32.totalorder %s213, 3
        %s217 = scalar_select %p216, %s213, 3
        %s218 = smul.addr %s217, 2
        %s219 = smul.addr %s215, 8
        %s220 = sadd.s32 %s218, %s219
        %s221 = smul.addr %s220, 8
        %s222 = scalar_lea.vmem %s2, %s221
        %s223 = smul.u32 4, %s19
      $region28: #{distributed_block_forward.6} parent=15 // pred_fallthru
        _
    $region16: #{distributed_block_forward.6} parent=5 // pred_fallthru
      _
    %p224 = scmp.le.s32.totalorder 1, %s11
    %p225 = scmp.lt.s32.totalorder %s11, 3
    %p226 = pnand %p224, %p225
    %p227 = pneg %p226
    // Predicated region
    $region29: #{distributed_block_forward.6} parent=5 // pred_check
      _
    $region30: #{distributed_block_forward.6} parent=5 // pred_check_branch
      %229 = sbr.rel (%p226) target = $region32
    $region31: #{distributed_block_forward.6} parent=5 // pred_region
      %s230 = ssub.s32 %s11, 1
      %s231 = smul.u32 4, %s21
      %p232 = scmp.lt.s32.totalorder %s20, 1
      %s233 = scalar_select %p232, %s20, 1
      %p234 = scmp.lt.s32.totalorder %s231, 3
      %s235 = scalar_select %p234, %s231, 3
      %s236 = smul.addr %s235, 2
      %s237 = smul.addr %s233, 8
      %s238 = sadd.s32 %s236, %s237
      %s239 = smul.addr %s238, 8
      %s240 = scalar_lea.vmem %s0, %s239
      %p241 = pneg %p51
      %p242 = pneg %p48
      %s243 = smul.u32 4, %s21
      %p244 = scmp.lt.s32.totalorder %s20, 1
      %s245 = scalar_select %p244, %s20, 1
      %p246 = scmp.lt.s32.totalorder %s243, 3
      %s247 = scalar_select %p246, %s243, 3
      %s248 = smul.addr %s247, 2
      %s249 = smul.addr %s245, 8
      %s250 = sadd.s32 %s248, %s249
      %s251 = smul.addr %s250, 8
      %s252 = scalar_lea.vmem %s1, %s251
      %p253 = pneg %p79
      %p254 = pneg %p76
      %s255 = smul.u32 4, %s21
      %p256 = scmp.lt.s32.totalorder %s20, 1
      %s257 = scalar_select %p256, %s20, 1
      %p258 = scmp.lt.s32.totalorder %s255, 3
      %s259 = scalar_select %p258, %s255, 3
      %s260 = smul.addr %s259, 2
      %s261 = smul.addr %s257, 8
      %s262 = sadd.s32 %s260, %s261
      %s263 = smul.addr %s262, 8
      %s264 = scalar_lea.vmem %s2, %s263
      %p265 = pneg %p107
      %p266 = pneg %p104
      %p267 = pneg %p135
      %p268 = pneg %p132
      %s269 = smul.u32 4, %s21
      %p270 = scmp.lt.s32.totalorder %s20, 1
      %s271 = scalar_select %p270, %s20, 1
      %p272 = scmp.lt.s32.totalorder %s269, 3
      %s273 = scalar_select %p272, %s269, 3
      %s274 = smul.addr %s271, 4
      %s275 = sadd.s32 %s273, %s274
      %s276 = smul.addr %s275, 8
      %s277 = scalar_lea.vmem %s3, %s276
      %p278 = pneg %p163
      %p279 = pneg %p160
      %s280 = smul.u32 4, %s21
      %p281 = scmp.lt.s32.totalorder %s20, 1
      %s282 = scalar_select %p281, %s20, 1
      %p283 = scmp.lt.s32.totalorder %s280, 3
      %s284 = scalar_select %p283, %s280, 3
      %s285 = smul.addr %s282, 4
      %s286 = sadd.s32 %s284, %s285
      %s287 = smul.addr %s286, 8
      %s288 = scalar_lea.vmem %s4, %s287
      %s289 = smul.u32 4, %s21
      %p290 = scmp.lt.s32.totalorder %s20, 1
      %s291 = scalar_select %p290, %s20, 1
      %p292 = scmp.lt.s32.totalorder %s289, 3
      %s293 = scalar_select %p292, %s289, 3
      %s294 = smul.addr %s293, 2
      %s295 = smul.addr %s291, 8
      %s296 = sadd.s32 %s294, %s295
      %s297 = smul.addr %s296, 8
      %s298 = scalar_lea.vmem %s0, %s297
      %s299 = smul.u32 4, %s21
      %s300 = smul.u32 4, %s21
      %p301 = scmp.lt.s32.totalorder %s20, 1
      %s302 = scalar_select %p301, %s20, 1
      %p303 = scmp.lt.s32.totalorder %s300, 3
      %s304 = scalar_select %p303, %s300, 3
      %s305 = smul.addr %s304, 2
      %s306 = smul.addr %s302, 8
      %s307 = sadd.s32 %s305, %s306
      %s308 = smul.addr %s307, 8
      %s309 = scalar_lea.vmem %s1, %s308
      %s310 = smul.u32 4, %s21
      %s311 = smul.u32 4, %s21
      %p312 = scmp.lt.s32.totalorder %s20, 1
      %s313 = scalar_select %p312, %s20, 1
      %p314 = scmp.lt.s32.totalorder %s311, 3
      %s315 = scalar_select %p314, %s311, 3
      %s316 = smul.addr %s315, 2
      %s317 = smul.addr %s313, 8
      %s318 = sadd.s32 %s316, %s317
      %s319 = smul.addr %s318, 8
      %s320 = scalar_lea.vmem %s2, %s319
      %s321 = smul.u32 4, %s21
      %s322 = smul.u32 4, %s21
      %p323 = scmp.lt.s32.totalorder %s20, 1
      %s324 = scalar_select %p323, %s20, 1
      %p325 = scmp.lt.s32.totalorder %s322, 3
      %s326 = scalar_select %p325, %s322, 3
      %s327 = smul.addr %s324, 4
      %s328 = sadd.s32 %s326, %s327
      %s329 = smul.addr %s328, 8
      %s330 = scalar_lea.vmem %s3, %s329
      %s331 = smul.u32 4, %s21
      %s332 = smul.u32 4, %s21
      %p333 = scmp.lt.s32.totalorder %s20, 1
      %s334 = scalar_select %p333, %s20, 1
      %p335 = scmp.lt.s32.totalorder %s332, 3
      %s336 = scalar_select %p335, %s332, 3
      %s337 = smul.addr %s334, 4
      %s338 = sadd.s32 %s336, %s337
      %s339 = smul.addr %s338, 8
      %s340 = scalar_lea.vmem %s4, %s339
      %s341 = smul.u32 4, %s21
      %v342 = vld [vmem:[%s298] sm:$0xff]
      %v343 = vld [vmem:[%s298 + $0x8] sm:$0xff]
      %v344 = vld [vmem:[%s298 + $0x10] sm:$0xff]
      %v345 = vld [vmem:[%s298 + $0x18] sm:$0xff]
      %v346 = vld [vmem:[%s298 + $0x20] sm:$0xff]
      %v347 = vld [vmem:[%s298 + $0x28] sm:$0xff]
      %v348 = vld [vmem:[%s298 + $0x30] sm:$0xff]
      %v349 = vld [vmem:[%s298 + $0x38] sm:$0xff]
      %v350 = vld [vmem:[%s309] sm:$0xff]
      %v351 = vld [vmem:[%s309 + $0x8] sm:$0xff]
      %v352 = vld [vmem:[%s309 + $0x10] sm:$0xff]
      %v353 = vld [vmem:[%s309 + $0x18] sm:$0xff]
      %v354 = vld [vmem:[%s309 + $0x20] sm:$0xff]
      %v355 = vld [vmem:[%s309 + $0x28] sm:$0xff]
      %v356 = vld [vmem:[%s309 + $0x30] sm:$0xff]
      %v357 = vld [vmem:[%s309 + $0x38] sm:$0xff]
      %v358 = vadd.f32 %v342, %v350
      %v359 = vadd.f32 %v343, %v351
      %v360 = vadd.f32 %v344, %v352
      %v361 = vadd.f32 %v345, %v353
      %v362 = vadd.f32 %v346, %v354
      %v363 = vadd.f32 %v347, %v355
      %v364 = vadd.f32 %v348, %v356
      %v365 = vadd.f32 %v349, %v357
      %v366 = vld [vmem:[%s320] sm:$0xff]
      %v367 = vld [vmem:[%s320 + $0x8] sm:$0xff]
      %v368 = vld [vmem:[%s320 + $0x10] sm:$0xff]
      %v369 = vld [vmem:[%s320 + $0x18] sm:$0xff]
      %v370 = vld [vmem:[%s320 + $0x20] sm:$0xff]
      %v371 = vld [vmem:[%s320 + $0x28] sm:$0xff]
      %v372 = vld [vmem:[%s320 + $0x30] sm:$0xff]
      %v373 = vld [vmem:[%s320 + $0x38] sm:$0xff]
      %v374 = vadd.f32 %v358, %v366
      %v375 = vadd.f32 %v359, %v367
      %v376 = vadd.f32 %v360, %v368
      %v377 = vadd.f32 %v361, %v369
      %v378 = vadd.f32 %v362, %v370
      %v379 = vadd.f32 %v363, %v371
      %v380 = vadd.f32 %v364, %v372
      %v381 = vadd.f32 %v365, %v373
      %v382 = vadd.f32 %v374, %v375
      %383 = vadd.xlane.f32.xlu0 %v382
      %v384 = vpop.xlane.xlu0 %383
      %v385 = vadd.f32 %v376, %v377
      %386 = vadd.xlane.f32.xlu0 %v385
      %v387 = vpop.xlane.xlu0 %386
      %v388 = vadd.f32 %v378, %v379
      %389 = vadd.xlane.f32.xlu0 %v388
      %v390 = vpop.xlane.xlu0 %389
      %v391 = vadd.f32 %v380, %v381
      %392 = vadd.xlane.f32.xlu0 %v391
      %v393 = vpop.xlane.xlu0 %392
      %v394 = vrcp.pop 256.0
      %v395 = vmul.f32 %v384, %v394
      %v396 = vmul.f32 %v387, %v394
      %v397 = vmul.f32 %v390, %v394
      %v398 = vmul.f32 %v393, %v394
      %v399 = vmul.f32 %v374, %v374
      %v400 = vmul.f32 %v375, %v375
      %v401 = vmul.f32 %v376, %v376
      %v402 = vmul.f32 %v377, %v377
      %v403 = vmul.f32 %v378, %v378
      %v404 = vmul.f32 %v379, %v379
      %v405 = vmul.f32 %v380, %v380
      %v406 = vmul.f32 %v381, %v381
      %v407 = vadd.f32 %v399, %v400
      %408 = vadd.xlane.f32.xlu0 %v407
      %v409 = vpop.xlane.xlu0 %408
      %v410 = vadd.f32 %v401, %v402
      %411 = vadd.xlane.f32.xlu0 %v410
      %v412 = vpop.xlane.xlu0 %411
      %v413 = vadd.f32 %v403, %v404
      %414 = vadd.xlane.f32.xlu0 %v413
      %v415 = vpop.xlane.xlu0 %414
      %v416 = vadd.f32 %v405, %v406
      %417 = vadd.xlane.f32.xlu0 %v416
      %v418 = vpop.xlane.xlu0 %417
      %v419 = vmul.f32 %v409, %v394
      %v420 = vmul.f32 %v412, %v394
      %v421 = vmul.f32 %v415, %v394
      %v422 = vmul.f32 %v418, %v394
      %v423 = vmul.f32 %v395, %v395
      %v424 = vmul.f32 %v396, %v396
      %v425 = vmul.f32 %v397, %v397
      %v426 = vmul.f32 %v398, %v398
      %v427 = vsub.f32 %v419, %v423
      %v428 = vsub.f32 %v420, %v424
      %v429 = vsub.f32 %v421, %v425
      %v430 = vsub.f32 %v422, %v426
      %vm431 = vcmask 7168
      %432 = vst.msk [vmem:[%s330] sm:$0xff] %vm431, %v395
      %433 = vst.msk [vmem:[%s330 + $0x8] sm:$0xff] %vm431, %v396
      %434 = vst.msk [vmem:[%s330 + $0x10] sm:$0xff] %vm431, %v397
      %435 = vst.msk [vmem:[%s330 + $0x18] sm:$0xff] %vm431, %v398
      %v436 = vadd.f32 %v427, 1e-05
      %v437 = vadd.f32 %v428, 1e-05
      %v438 = vadd.f32 %v429, 1e-05
      %v439 = vadd.f32 %v430, 1e-05
      %v440 = vrsqrt.pop %v436
      %v441 = vrsqrt.pop %v437
      %v442 = vrsqrt.pop %v438
      %v443 = vrsqrt.pop %v439
      %444 = vst.msk [vmem:[%s340] sm:$0xff] %vm431, %v440
      %445 = vst.msk [vmem:[%s340 + $0x8] sm:$0xff] %vm431, %v441
      %446 = vst.msk [vmem:[%s340 + $0x10] sm:$0xff] %vm431, %v442
      %447 = vst.msk [vmem:[%s340 + $0x18] sm:$0xff] %vm431, %v443
      %s448 = smul.u32 4, %s21
      %p449 = scmp.lt.s32.totalorder %s20, 1
      %s450 = scalar_select %p449, %s20, 1
      %p451 = scmp.lt.s32.totalorder %s448, 3
      %s452 = scalar_select %p451, %s448, 3
      %s453 = smul.addr %s450, 4
      %s454 = sadd.s32 %s452, %s453
      %s455 = smul.addr %s454, 8
      %s456 = scalar_lea.vmem %s3, %s455
      %s457 = smul.u32 4, %s21
      %p458 = scmp.lt.s32.totalorder %s20, 1
      %s459 = scalar_select %p458, %s20, 1
      %p460 = scmp.lt.s32.totalorder %s457, 3
      %s461 = scalar_select %p460, %s457, 3
      %s462 = smul.addr %s459, 4
      %s463 = sadd.s32 %s461, %s462
      %s464 = smul.addr %s463, 8
      %s465 = scalar_lea.vmem %s4, %s464
      // Predicated region
      $region33: #{distributed_block_forward.6} parent=31 // pred_check
        %p466 = pneg %p132
      $region34: #{distributed_block_forward.6} parent=31 // pred_check_branch
        %468 = sbr.rel (%p466) target = $region36
      $region35: #{distributed_block_forward.6} parent=31 // pred_region
        %s469 = smul.u32 4, %s21
      $region36: #{distributed_block_forward.6} parent=31 // pred_fallthru
        _
      // Predicated region
      $region37: #{distributed_block_forward.6} parent=31 // pred_check
        %p470 = pneg %p160
      $region38: #{distributed_block_forward.6} parent=31 // pred_check_branch
        %472 = sbr.rel (%p470) target = $region40
      $region39: #{distributed_block_forward.6} parent=31 // pred_region
        %s473 = smul.u32 4, %s21
      $region40: #{distributed_block_forward.6} parent=31 // pred_fallthru
        _
    $region32: #{distributed_block_forward.6} parent=5 // pred_fallthru
      _
    %p474 = scmp.le.s32.totalorder 2, %s11
    // Predicated region
    $region41: #{distributed_block_forward.6} parent=5 // pred_check
      %p475 = pneg %p474
    $region42: #{distributed_block_forward.6} parent=5 // pred_check_branch
      %477 = sbr.rel (%p475) target = $region44
    $region43: #{distributed_block_forward.6} parent=5 // pred_region
      %s478 = ssub.s32 %s11, 2
      // Predicated region
      $region45: #{distributed_block_forward.6} parent=43 // pred_check
        %p479 = pneg %p138
      $region46: #{distributed_block_forward.6} parent=43 // pred_check_branch
        %481 = sbr.rel (%p479) target = $region48
      $region47: #{distributed_block_forward.6} parent=43 // pred_region
        %s482 = smul.u32 4, %s23
        %p483 = scmp.lt.s32.totalorder %s22, 1
        %s484 = scalar_select %p483, %s22, 1
        %p485 = scmp.lt.s32.totalorder %s482, 3
        %s486 = scalar_select %p485, %s482, 3
        %s487 = smul.addr %s484, 4
        %s488 = sadd.s32 %s486, %s487
        %s489 = smul.addr %s488, 8
        %s490 = scalar_lea.vmem %s3, %s489
      $region48: #{distributed_block_forward.6} parent=43 // pred_fallthru
        _
      // Predicated region
      $region49: #{distributed_block_forward.6} parent=43 // pred_check
        %p491 = pneg %p166
      $region50: #{distributed_block_forward.6} parent=43 // pred_check_branch
        %493 = sbr.rel (%p491) target = $region52
      $region51: #{distributed_block_forward.6} parent=43 // pred_region
        %s494 = smul.u32 4, %s23
        %p495 = scmp.lt.s32.totalorder %s22, 1
        %s496 = scalar_select %p495, %s22, 1
        %p497 = scmp.lt.s32.totalorder %s494, 3
        %s498 = scalar_select %p497, %s494, 3
        %s499 = smul.addr %s496, 4
        %s500 = sadd.s32 %s498, %s499
        %s501 = smul.addr %s500, 8
        %s502 = scalar_lea.vmem %s4, %s501
      $region52: #{distributed_block_forward.6} parent=43 // pred_fallthru
        _
    $region44: #{distributed_block_forward.6} parent=5 // pred_fallthru
      _
  $region6: #{distributed_block_forward.6} parent=0 // loop_footer
    %s15 = sadd.s32 1, %s11
  $region7: #{distributed_block_forward.6} parent=0 // loop_footer_branch
    %10 = sbr.rel target = $region3
  $region8: #{distributed_block_forward.6} parent=0 // loop_exit
    _

// kernel: distributed_block_forward.7
$region0: #{distributed_block_forward.7}
  #allocation0 [shape = 'u32[]', space=smem, size = 0x4, offset = 0x4, fixed_abs, tag = 'smem constant byte address 0x4 - core index']
  #allocation1 [shape = 'u32[144,128]{1,0:T(1,128)}', space=vmem, size = 0x12000, scoped, tag = 'internal scratch']
  %s0 = inlined_call_operand.vmem [shape: f32[2,32,256], index: 0, kind: input, shape index: {}]
  %s1 = inlined_call_operand.vmem [shape: f32[2,32,256], index: 1, kind: input, shape index: {}]
  %s2 = inlined_call_operand.vmem [shape: f32[2,32,256], index: 2, kind: input, shape index: {}]
  %s3 = inlined_call_operand.vmem [shape: f32[2,32,1], index: 3, kind: input, shape index: {}]
  %s4 = inlined_call_operand.vmem [shape: f32[2,32,1], index: 4, kind: input, shape index: {}]
  %s5 = inlined_call_operand.vmem [shape: f32[1,256], index: 5, kind: input, shape index: {}]
  %s6 = inlined_call_operand.vmem [shape: f32[1,256], index: 6, kind: input, shape index: {}]
  %s7 = inlined_call_operand.vmem [shape: bf16[128,32], index: 7, kind: input, shape index: {}]
  %s8 = inlined_call_operand.vmem [shape: f32[128,1], index: 8, kind: input, shape index: {}]
  %s9 = inlined_call_operand.vmem [shape: bf16[32,128], index: 9, kind: input, shape index: {}]
  %s10 = inlined_call_operand.vmem [shape: f32[32,1], index: 10, kind: input, shape index: {}]
  %s11 = inlined_call_operand.vmem [shape: f32[2,32,256], index: 11, kind: output, shape index: {}]
  %s12 = sld [smem:[#allocation0]]
  $region77: #{distributed_block_forward.7} parent=0
    _
  %s14 = ssub.s32 1, %s12
  %s15 = scalar_select 0, %s14, %s12
  loop: start=0, step=1, limit=4
  $region2: #{distributed_block_forward.7} parent=0 // loop_pre_header
    _
  $region3: #{distributed_block_forward.7} parent=0 // loop_header
    %s17 = sphi 0, %s21
    %p18 = scmp.ge.s32.totalorder %s17, 4
    %s24 = sphi 0, %s36
    %s25 = sphi 0, %s32
    %s26 = sphi 0, %s24
    %s27 = sphi 0, %s25
    %s28 = sphi 0, %s26
    %s29 = sphi 0, %s27
    %s41 = sphi 0, %s43
    %s44 = sphi 0, %s41
    %s45 = sphi 0, %s44
    %s61 = sphi 0, %s45
    %s69 = sphi 0, %s71
    %s72 = sphi 0, %s69
    %s73 = sphi 0, %s72
    %s89 = sphi 0, %s73
    %s97 = sphi 0, %s99
    %s100 = sphi 0, %s97
    %s101 = sphi 0, %s100
    %s117 = sphi 0, %s101
    %s123 = sphi 0, %s125
    %s126 = sphi 0, %s123
    %s127 = sphi 0, %s126
    %s143 = sphi 0, %s127
    %s149 = sphi 0, %s151
    %s152 = sphi 0, %s149
    %s153 = sphi 0, %s152
    %s169 = sphi 0, %s153
    %s175 = sphi 0, %s177
    %s178 = sphi 0, %s175
    %s179 = sphi 0, %s178
    %s195 = sphi 0, %s179
    %s201 = sphi 0, %s203
    %s204 = sphi 0, %s201
    %s205 = sphi 0, %s204
    %s221 = sphi 0, %s205
    %s225 = sphi 0, %s225
    %s227 = sphi 0, %s225
    %s228 = sphi 0, %s227
    %s242 = sphi 0, %s228
    %s246 = sphi 0, %s246
    %s248 = sphi 0, %s246
    %s249 = sphi 0, %s248
    %s263 = sphi 0, %s249
    %s267 = sphi 0, %s267
    %s269 = sphi 0, %s267
    %s270 = sphi 0, %s269
    %s284 = sphi 0, %s270
    %s288 = sphi 0, %s288
    %s290 = sphi 0, %s288
    %s291 = sphi 0, %s290
    %s305 = sphi 0, %s291
    %s313 = sphi 0, %s315
    %s316 = sphi 0, %s313
    %s317 = sphi 0, %s316
    %s333 = sphi 0, %s317
  $region4: #{distributed_block_forward.7} parent=0 // loop_header_branch
    %20 = sbr.rel (%p18) target = $region8
  $region5: #{distributed_block_forward.7} parent=0 // loop_body
    %s22 = ssub.s32 %s17, 1
    %s23 = ssub.s32 %s17, 2
    %s30 = sadd.s32 1, %s25
    %p31 = scmp.ge.s32.totalorder %s30, 1
    %s32 = scalar_select %p31, 0, %s30
    %s33 = sadd.s32 1, %s24
    %s34 = scalar_select %p31, %s33, %s24
    %p35 = scmp.ge.s32.totalorder %s34, 2
    %s36 = scalar_select %p35, 0, %s34
    %s37 = ssub.s32 %s24, %s36
    %s38 = ssub.s32 %s25, %s32
    %s39 = sor.u32 %s37, %s38
    %p40 = scmp.eq.s32.totalorder %s39, 0
    %s42 = sadd.s32 %s41, 1
    %s43 = scalar_select %p40, %s41, %s42
    %p46 = pneg %p40
    %p47 = scmp.eq.s32.totalorder %s17, 1
    %p48 = por %p46, %p47
    %p49 = scmp.ne.s32.totalorder %s41, %s44
    %p50 = scmp.eq.s32.totalorder %s17, 0
    %p51 = por %p49, %p50
    %p52 = scmp.ne.s32.totalorder %s41, %s44
    %p53 = scmp.eq.s32.totalorder %s22, 1
    %p54 = por %p52, %p53
    %p55 = scmp.ne.s32.totalorder %s44, %s45
    %p56 = scmp.eq.s32.totalorder %s22, 0
    %p57 = por %p55, %p56
    %p58 = scmp.ne.s32.totalorder %s44, %s45
    %p59 = scmp.eq.s32.totalorder %s23, 1
    %p60 = por %p58, %p59
    %p62 = scmp.ne.s32.totalorder %s45, %s61
    %p63 = scmp.eq.s32.totalorder %s23, 0
    %p64 = por %p62, %p63
    %s65 = ssub.s32 %s24, %s36
    %s66 = ssub.s32 %s25, %s32
    %s67 = sor.u32 %s65, %s66
    %p68 = scmp.eq.s32.totalorder %s67, 0
    %s70 = sadd.s32 %s69, 1
    %s71 = scalar_select %p68, %s69, %s70
    %p74 = pneg %p68
    %p75 = scmp.eq.s32.totalorder %s17, 1
    %p76 = por %p74, %p75
    %p77 = scmp.ne.s32.totalorder %s69, %s72
    %p78 = scmp.eq.s32.totalorder %s17, 0
    %p79 = por %p77, %p78
    %p80 = scmp.ne.s32.totalorder %s69, %s72
    %p81 = scmp.eq.s32.totalorder %s22, 1
    %p82 = por %p80, %p81
    %p83 = scmp.ne.s32.totalorder %s72, %s73
    %p84 = scmp.eq.s32.totalorder %s22, 0
    %p85 = por %p83, %p84
    %p86 = scmp.ne.s32.totalorder %s72, %s73
    %p87 = scmp.eq.s32.totalorder %s23, 1
    %p88 = por %p86, %p87
    %p90 = scmp.ne.s32.totalorder %s73, %s89
    %p91 = scmp.eq.s32.totalorder %s23, 0
    %p92 = por %p90, %p91
    %s93 = ssub.s32 %s24, %s36
    %s94 = ssub.s32 %s25, %s32
    %s95 = sor.u32 %s93, %s94
    %p96 = scmp.eq.s32.totalorder %s95, 0
    %s98 = sadd.s32 %s97, 1
    %s99 = scalar_select %p96, %s97, %s98
    %p102 = pneg %p96
    %p103 = scmp.eq.s32.totalorder %s17, 1
    %p104 = por %p102, %p103
    %p105 = scmp.ne.s32.totalorder %s97, %s100
    %p106 = scmp.eq.s32.totalorder %s17, 0
    %p107 = por %p105, %p106
    %p108 = scmp.ne.s32.totalorder %s97, %s100
    %p109 = scmp.eq.s32.totalorder %s22, 1
    %p110 = por %p108, %p109
    %p111 = scmp.ne.s32.totalorder %s100, %s101
    %p112 = scmp.eq.s32.totalorder %s22, 0
    %p113 = por %p111, %p112
    %p114 = scmp.ne.s32.totalorder %s100, %s101
    %p115 = scmp.eq.s32.totalorder %s23, 1
    %p116 = por %p114, %p115
    %p118 = scmp.ne.s32.totalorder %s101, %s117
    %p119 = scmp.eq.s32.totalorder %s23, 0
    %p120 = por %p118, %p119
    %s121 = ssub.s32 %s24, %s36
    %p122 = scmp.eq.s32.totalorder %s121, 0
    %s124 = sadd.s32 %s123, 1
    %s125 = scalar_select %p122, %s123, %s124
    %p128 = pneg %p122
    %p129 = scmp.eq.s32.totalorder %s17, 1
    %p130 = por %p128, %p129
    %p131 = scmp.ne.s32.totalorder %s123, %s126
    %p132 = scmp.eq.s32.totalorder %s17, 0
    %p133 = por %p131, %p132
    %p134 = scmp.ne.s32.totalorder %s123, %s126
    %p135 = scmp.eq.s32.totalorder %s22, 1
    %p136 = por %p134, %p135
    %p137 = scmp.ne.s32.totalorder %s126, %s127
    %p138 = scmp.eq.s32.totalorder %s22, 0
    %p139 = por %p137, %p138
    %p140 = scmp.ne.s32.totalorder %s126, %s127
    %p141 = scmp.eq.s32.totalorder %s23, 1
    %p142 = por %p140, %p141
    %p144 = scmp.ne.s32.totalorder %s127, %s143
    %p145 = scmp.eq.s32.totalorder %s23, 0
    %p146 = por %p144, %p145
    %s147 = ssub.s32 %s24, %s36
    %p148 = scmp.eq.s32.totalorder %s147, 0
    %s150 = sadd.s32 %s149, 1
    %s151 = scalar_select %p148, %s149, %s150
    %p154 = pneg %p148
    %p155 = scmp.eq.s32.totalorder %s17, 1
    %p156 = por %p154, %p155
    %p157 = scmp.ne.s32.totalorder %s149, %s152
    %p158 = scmp.eq.s32.totalorder %s17, 0
    %p159 = por %p157, %p158
    %p160 = scmp.ne.s32.totalorder %s149, %s152
    %p161 = scmp.eq.s32.totalorder %s22, 1
    %p162 = por %p160, %p161
    %p163 = scmp.ne.s32.totalorder %s152, %s153
    %p164 = scmp.eq.s32.totalorder %s22, 0
    %p165 = por %p163, %p164
    %p166 = scmp.ne.s32.totalorder %s152, %s153
    %p167 = scmp.eq.s32.totalorder %s23, 1
    %p168 = por %p166, %p167
    %p170 = scmp.ne.s32.totalorder %s153, %s169
    %p171 = scmp.eq.s32.totalorder %s23, 0
    %p172 = por %p170, %p171
    %s173 = ssub.s32 %s25, %s32
    %p174 = scmp.eq.s32.totalorder %s173, 0
    %s176 = sadd.s32 %s175, 1
    %s177 = scalar_select %p174, %s175, %s176
    %p180 = pneg %p174
    %p181 = scmp.eq.s32.totalorder %s17, 1
    %p182 = por %p180, %p181
    %p183 = scmp.ne.s32.totalorder %s175, %s178
    %p184 = scmp.eq.s32.totalorder %s17, 0
    %p185 = por %p183, %p184
    %p186 = scmp.ne.s32.totalorder %s175, %s178
    %p187 = scmp.eq.s32.totalorder %s22, 1
    %p188 = por %p186, %p187
    %p189 = scmp.ne.s32.totalorder %s178, %s179
    %p190 = scmp.eq.s32.totalorder %s22, 0
    %p191 = por %p189, %p190
    %p192 = scmp.ne.s32.totalorder %s178, %s179
    %p193 = scmp.eq.s32.totalorder %s23, 1
    %p194 = por %p192, %p193
    %p196 = scmp.ne.s32.totalorder %s179, %s195
    %p197 = scmp.eq.s32.totalorder %s23, 0
    %p198 = por %p196, %p197
    %s199 = ssub.s32 %s25, %s32
    %p200 = scmp.eq.s32.totalorder %s199, 0
    %s202 = sadd.s32 %s201, 1
    %s203 = scalar_select %p200, %s201, %s202
    %p206 = pneg %p200
    %p207 = scmp.eq.s32.totalorder %s17, 1
    %p208 = por %p206, %p207
    %p209 = scmp.ne.s32.totalorder %s201, %s204
    %p210 = scmp.eq.s32.totalorder %s17, 0
    %p211 = por %p209, %p210
    %p212 = scmp.ne.s32.totalorder %s201, %s204
    %p213 = scmp.eq.s32.totalorder %s22, 1
    %p214 = por %p212, %p213
    %p215 = scmp.ne.s32.totalorder %s204, %s205
    %p216 = scmp.eq.s32.totalorder %s22, 0
    %p217 = por %p215, %p216
    %p218 = scmp.ne.s32.totalorder %s204, %s205
    %p219 = scmp.eq.s32.totalorder %s23, 1
    %p220 = por %p218, %p219
    %p222 = scmp.ne.s32.totalorder %s205, %s221
    %p223 = scmp.eq.s32.totalorder %s23, 0
    %p224 = por %p222, %p223
    %s226 = sadd.s32 %s225, 1
    %p229 = scmp.eq.s32.totalorder %s17, 1
    %p230 = scmp.ne.s32.totalorder %s225, %s227
    %p231 = scmp.eq.s32.totalorder %s17, 0
    %p232 = por %p230, %p231
    %p233 = scmp.ne.s32.totalorder %s225, %s227
    %p234 = scmp.eq.s32.totalorder %s22, 1
    %p235 = por %p233, %p234
    %p236 = scmp.ne.s32.totalorder %s227, %s228
    %p237 = scmp.eq.s32.totalorder %s22, 0
    %p238 = por %p236, %p237
    %p239 = scmp.ne.s32.totalorder %s227, %s228
    %p240 = scmp.eq.s32.totalorder %s23, 1
    %p241 = por %p239, %p240
    %p243 = scmp.ne.s32.totalorder %s228, %s242
    %p244 = scmp.eq.s32.totalorder %s23, 0
    %p245 = por %p243, %p244
    %s247 = sadd.s32 %s246, 1
    %p250 = scmp.eq.s32.totalorder %s17, 1
    %p251 = scmp.ne.s32.totalorder %s246, %s248
    %p252 = scmp.eq.s32.totalorder %s17, 0
    %p253 = por %p251, %p252
    %p254 = scmp.ne.s32.totalorder %s246, %s248
    %p255 = scmp.eq.s32.totalorder %s22, 1
    %p256 = por %p254, %p255
    %p257 = scmp.ne.s32.totalorder %s248, %s249
    %p258 = scmp.eq.s32.totalorder %s22, 0
    %p259 = por %p257, %p258
    %p260 = scmp.ne.s32.totalorder %s248, %s249
    %p261 = scmp.eq.s32.totalorder %s23, 1
    %p262 = por %p260, %p261
    %p264 = scmp.ne.s32.totalorder %s249, %s263
    %p265 = scmp.eq.s32.totalorder %s23, 0
    %p266 = por %p264, %p265
    %s268 = sadd.s32 %s267, 1
    %p271 = scmp.eq.s32.totalorder %s17, 1
    %p272 = scmp.ne.s32.totalorder %s267, %s269
    %p273 = scmp.eq.s32.totalorder %s17, 0
    %p274 = por %p272, %p273
    %p275 = scmp.ne.s32.totalorder %s267, %s269
    %p276 = scmp.eq.s32.totalorder %s22, 1
    %p277 = por %p275, %p276
    %p278 = scmp.ne.s32.totalorder %s269, %s270
    %p279 = scmp.eq.s32.totalorder %s22, 0
    %p280 = por %p278, %p279
    %p281 = scmp.ne.s32.totalorder %s269, %s270
    %p282 = scmp.eq.s32.totalorder %s23, 1
    %p283 = por %p281, %p282
    %p285 = scmp.ne.s32.totalorder %s270, %s284
    %p286 = scmp.eq.s32.totalorder %s23, 0
    %p287 = por %p285, %p286
    %s289 = sadd.s32 %s288, 1
    %p292 = scmp.eq.s32.totalorder %s17, 1
    %p293 = scmp.ne.s32.totalorder %s288, %s290
    %p294 = scmp.eq.s32.totalorder %s17, 0
    %p295 = por %p293, %p294
    %p296 = scmp.ne.s32.totalorder %s288, %s290
    %p297 = scmp.eq.s32.totalorder %s22, 1
    %p298 = por %p296, %p297
    %p299 = scmp.ne.s32.totalorder %s290, %s291
    %p300 = scmp.eq.s32.totalorder %s22, 0
    %p301 = por %p299, %p300
    %p302 = scmp.ne.s32.totalorder %s290, %s291
    %p303 = scmp.eq.s32.totalorder %s23, 1
    %p304 = por %p302, %p303
    %p306 = scmp.ne.s32.totalorder %s291, %s305
    %p307 = scmp.eq.s32.totalorder %s23, 0
    %p308 = por %p306, %p307
    %s309 = ssub.s32 %s24, %s36
    %s310 = ssub.s32 %s25, %s32
    %s311 = sor.u32 %s309, %s310
    %p312 = scmp.eq.s32.totalorder %s311, 0
    %s314 = sadd.s32 %s313, 1
    %s315 = scalar_select %p312, %s313, %s314
    %p318 = pneg %p312
    %p319 = scmp.eq.s32.totalorder %s17, 1
    %p320 = por %p318, %p319
    %p321 = scmp.ne.s32.totalorder %s313, %s316
    %p322 = scmp.eq.s32.totalorder %s17, 0
    %p323 = por %p321, %p322
    %p324 = scmp.ne.s32.totalorder %s313, %s316
    %p325 = scmp.eq.s32.totalorder %s22, 1
    %p326 = por %p324, %p325
    %p327 = scmp.ne.s32.totalorder %s316, %s317
    %p328 = scmp.eq.s32.totalorder %s22, 0
    %p329 = por %p327, %p328
    %p330 = scmp.ne.s32.totalorder %s316, %s317
    %p331 = scmp.eq.s32.totalorder %s23, 1
    %p332 = por %p330, %p331
    %p334 = scmp.ne.s32.totalorder %s317, %s333
    %p335 = scmp.eq.s32.totalorder %s23, 0
    %p336 = por %p334, %p335
    %p337 = scmp.le.s32.totalorder 1, %s17
    %p338 = scmp.lt.s32.totalorder %s17, 3
    %p339 = pnand %p337, %p338
    %p340 = pneg %p339
    // Predicated region
    $region9: #{distributed_block_forward.7} parent=5 // pred_check
      _
    $region10: #{distributed_block_forward.7} parent=5 // pred_check_branch
      %342 = sbr.rel (%p339) target = $region12
    $region11: #{distributed_block_forward.7} parent=5 // pred_region
      %s343 = ssub.s32 %s17, 1
      // Predicated region
      $region13: #{distributed_block_forward.7} parent=11 // pred_check
        %p344 = pneg %p191
      $region14: #{distributed_block_forward.7} parent=11 // pred_check_branch
        %346 = sbr.rel (%p344) target = $region16
      $region15: #{distributed_block_forward.7} parent=11 // pred_region
        %s347 = smul.u32 2, %s27
        %p348 = scmp.lt.s32.totalorder %s347, 1
        %s349 = scalar_select %p348, %s347, 1
        %s350 = scalar_lea.vmem %s5, %s349
        %s351 = smul.u32 2, %s27
      $region16: #{distributed_block_forward.7} parent=11 // pred_fallthru
        _
      // Predicated region
      $region17: #{distributed_block_forward.7} parent=11 // pred_check
        %p352 = pneg %p217
      $region18: #{distributed_block_forward.7} parent=11 // pred_check_branch
        %354 = sbr.rel (%p352) target = $region20
      $region19: #{distributed_block_forward.7} parent=11 // pred_region
        %s355 = smul.u32 2, %s27
        %p356 = scmp.lt.s32.totalorder %s355, 1
        %s357 = scalar_select %p356, %s355, 1
        %s358 = scalar_lea.vmem %s6, %s357
        %s359 = smul.u32 2, %s27
      $region20: #{distributed_block_forward.7} parent=11 // pred_fallthru
        _
      // Predicated region
      $region21: #{distributed_block_forward.7} parent=11 // pred_check
        %p360 = pneg %p238
      $region22: #{distributed_block_forward.7} parent=11 // pred_check_branch
        %362 = sbr.rel (%p360) target = $region24
      $region23: #{distributed_block_forward.7} parent=11 // pred_region
        _
      $region24: #{distributed_block_forward.7} parent=11 // pred_fallthru
        _
      // Predicated region
      $region25: #{distributed_block_forward.7} parent=11 // pred_check
        %p363 = pneg %p259
      $region26: #{distributed_block_forward.7} parent=11 // pred_check_branch
        %365 = sbr.rel (%p363) target = $region28
      $region27: #{distributed_block_forward.7} parent=11 // pred_region
        _
      $region28: #{distributed_block_forward.7} parent=11 // pred_fallthru
        _
      // Predicated region
      $region29: #{distributed_block_forward.7} parent=11 // pred_check
        %p366 = pneg %p280
      $region30: #{distributed_block_forward.7} parent=11 // pred_check_branch
        %368 = sbr.rel (%p366) target = $region32
      $region31: #{distributed_block_forward.7} parent=11 // pred_region
        _
      $region32: #{distributed_block_forward.7} parent=11 // pred_fallthru
        _
      // Predicated region
      $region33: #{distributed_block_forward.7} parent=11 // pred_check
        %p369 = pneg %p301
      $region34: #{distributed_block_forward.7} parent=11 // pred_check_branch
        %371 = sbr.rel (%p369) target = $region36
      $region35: #{distributed_block_forward.7} parent=11 // pred_region
        _
      $region36: #{distributed_block_forward.7} parent=11 // pred_fallthru
        _
    $region12: #{distributed_block_forward.7} parent=5 // pred_fallthru
      _
    %p372 = scmp.lt.s32.totalorder %s17, 2
    // Predicated region
    $region37: #{distributed_block_forward.7} parent=5 // pred_check
      %p373 = pneg %p372
    $region38: #{distributed_block_forward.7} parent=5 // pred_check_branch
      %375 = sbr.rel (%p373) target = $region40
    $region39: #{distributed_block_forward.7} parent=5 // pred_region
      // Predicated region
      $region41: #{distributed_block_forward.7} parent=39 // pred_check
        %p376 = pneg %p51
      $region42: #{distributed_block_forward.7} parent=39 // pred_check_branch
        %378 = sbr.rel (%p376) target = $region44
      $region43: #{distributed_block_forward.7} parent=39 // pred_region
        %s379 = smul.u32 2, %s25
        %p380 = scmp.lt.s32.totalorder %s24, 1
        %s381 = scalar_select %p380, %s24, 1
        %p382 = scmp.lt.s32.totalorder %s379, 1
        %s383 = scalar_select %p382, %s379, 1
        %s384 = smul.addr %s381, 8
        %s385 = sadd.s32 %s383, %s384
        %s386 = smul.addr %s385, 8
        %s387 = scalar_lea.vmem %s0, %s386
        %s388 = smul.u32 2, %s25
      $region44: #{distributed_block_forward.7} parent=39 // pred_fallthru
        _
      // Predicated region
      $region45: #{distributed_block_forward.7} parent=39 // pred_check
        %p389 = pneg %p79
      $region46: #{distributed_block_forward.7} parent=39 // pred_check_branch
        %391 = sbr.rel (%p389) target = $region48
      $region47: #{distributed_block_forward.7} parent=39 // pred_region
        %s392 = smul.u32 2, %s25
        %p393 = scmp.lt.s32.totalorder %s24, 1
        %s394 = scalar_select %p393, %s24, 1
        %p395 = scmp.lt.s32.totalorder %s392, 1
        %s396 = scalar_select %p395, %s392, 1
        %s397 = smul.addr %s394, 8
        %s398 = sadd.s32 %s396, %s397
        %s399 = smul.addr %s398, 8
        %s400 = scalar_lea.vmem %s1, %s399
        %s401 = smul.u32 2, %s25
      $region48: #{distributed_block_forward.7} parent=39 // pred_fallthru
        _
      // Predicated region
      $region49: #{distributed_block_forward.7} parent=39 // pred_check
        %p402 = pneg %p107
      $region50: #{distributed_block_forward.7} parent=39 // pred_check_branch
        %404 = sbr.rel (%p402) target = $region52
      $region51: #{distributed_block_forward.7} parent=39 // pred_region
        %s405 = smul.u32 2, %s25
        %p406 = scmp.lt.s32.totalorder %s24, 1
        %s407 = scalar_select %p406, %s24, 1
        %p408 = scmp.lt.s32.totalorder %s405, 1
        %s409 = scalar_select %p408, %s405, 1
        %s410 = smul.addr %s407, 8
        %s411 = sadd.s32 %s409, %s410
        %s412 = smul.addr %s411, 8
        %s413 = scalar_lea.vmem %s2, %s412
        %s414 = smul.u32 2, %s25
      $region52: #{distributed_block_forward.7} parent=39 // pred_fallthru
        _
      // Predicated region
      $region53: #{distributed_block_forward.7} parent=39 // pred_check
        %p415 = pneg %p133
      $region54: #{distributed_block_forward.7} parent=39 // pred_check_branch
        %417 = sbr.rel (%p415) target = $region56
      $region55: #{distributed_block_forward.7} parent=39 // pred_region
        %p418 = scmp.lt.s32.totalorder %s24, 1
        %s419 = scalar_select %p418, %s24, 1
        %s420 = smul.addr %s419, 4
        %s421 = smul.addr %s420, 8
        %s422 = scalar_lea.vmem %s3, %s421
      $region56: #{distributed_block_forward.7} parent=39 // pred_fallthru
        _
      // Predicated region
      $region57: #{distributed_block_forward.7} parent=39 // pred_check
        %p423 = pneg %p159
      $region58: #{distributed_block_forward.7} parent=39 // pred_check_branch
        %425 = sbr.rel (%p423) target = $region60
      $region59: #{distributed_block_forward.7} parent=39 // pred_region
        %p426 = scmp.lt.s32.totalorder %s24, 1
        %s427 = scalar_select %p426, %s24, 1
        %s428 = smul.addr %s427, 4
        %s429 = smul.addr %s428, 8
        %s430 = scalar_lea.vmem %s4, %s429
      $region60: #{distributed_block_forward.7} parent=39 // pred_fallthru
        _
    $region40: #{distributed_block_forward.7} parent=5 // pred_fallthru
      _
    %p431 = scmp.le.s32.totalorder 1, %s17
    %p432 = scmp.lt.s32.totalorder %s17, 3
    %p433 = pnand %p431, %p432
    %p434 = pneg %p433
    // Predicated region
    $region61: #{distributed_block_forward.7} parent=5 // pred_check
      _
    $region62: #{distributed_block_forward.7} parent=5 // pred_check_branch
      %436 = sbr.rel (%p433) target = $region64
    $region63: #{distributed_block_forward.7} parent=5 // pred_region
      %s437 = ssub.s32 %s17, 1
      %s438 = smul.u32 2, %s27
      %p439 = scmp.lt.s32.totalorder %s26, 1
      %s440 = scalar_select %p439, %s26, 1
      %p441 = scmp.lt.s32.totalorder %s438, 1
      %s442 = scalar_select %p441, %s438, 1
      %s443 = smul.addr %s440, 8
      %s444 = sadd.s32 %s442, %s443
      %s445 = smul.addr %s444, 8
      %s446 = scalar_lea.vmem %s0, %s445
      %p447 = pneg %p57
      %p448 = pneg %p54
      %s449 = smul.u32 2, %s27
      %p450 = scmp.lt.s32.totalorder %s26, 1
      %s451 = scalar_select %p450, %s26, 1
      %p452 = scmp.lt.s32.totalorder %s449, 1
      %s453 = scalar_select %p452, %s449, 1
      %s454 = smul.addr %s451, 8
      %s455 = sadd.s32 %s453, %s454
      %s456 = smul.addr %s455, 8
      %s457 = scalar_lea.vmem %s1, %s456
      %p458 = pneg %p85
      %p459 = pneg %p82
      %s460 = smul.u32 2, %s27
      %p461 = scmp.lt.s32.totalorder %s26, 1
      %s462 = scalar_select %p461, %s26, 1
      %p463 = scmp.lt.s32.totalorder %s460, 1
      %s464 = scalar_select %p463, %s460, 1
      %s465 = smul.addr %s462, 8
      %s466 = sadd.s32 %s464, %s465
      %s467 = smul.addr %s466, 8
      %s468 = scalar_lea.vmem %s2, %s467
      %p469 = pneg %p113
      %p470 = pneg %p110
      %p471 = scmp.lt.s32.totalorder %s26, 1
      %s472 = scalar_select %p471, %s26, 1
      %s473 = smul.addr %s472, 4
      %s474 = smul.addr %s473, 8
      %s475 = scalar_lea.vmem %s3, %s474
      %p476 = pneg %p139
      %p477 = pneg %p136
      %p478 = scmp.lt.s32.totalorder %s26, 1
      %s479 = scalar_select %p478, %s26, 1
      %s480 = smul.addr %s479, 4
      %s481 = smul.addr %s480, 8
      %s482 = scalar_lea.vmem %s4, %s481
      %p483 = pneg %p165
      %p484 = pneg %p162
      %s485 = smul.u32 2, %s27
      %p486 = scmp.lt.s32.totalorder %s485, 1
      %s487 = scalar_select %p486, %s485, 1
      %s488 = scalar_lea.vmem %s5, %s487
      %p489 = pneg %p191
      %p490 = pneg %p188
      %s491 = smul.u32 2, %s27
      %p492 = scmp.lt.s32.totalorder %s491, 1
      %s493 = scalar_select %p492, %s491, 1
      %s494 = scalar_lea.vmem %s6, %s493
      %p495 = pneg %p217
      %p496 = pneg %p214
      %p497 = pneg %p238
      %p498 = pneg %p235
      %p499 = pneg %p259
      %p500 = pneg %p256
      %p501 = pneg %p280
      %p502 = pneg %p277
      %p503 = pneg %p301
      %p504 = pneg %p298
      %p505 = pneg %p329
      %p506 = pneg %p326
      %s507 = smul.u32 2, %s27
      %p508 = scmp.lt.s32.totalorder %s26, 1
      %s509 = scalar_select %p508, %s26, 1
      %p510 = scmp.lt.s32.totalorder %s507, 1
      %s511 = scalar_select %p510, %s507, 1
      %s512 = smul.addr %s509, 8
      %s513 = sadd.s32 %s511, %s512
      %s514 = smul.addr %s513, 8
      %s515 = scalar_lea.vmem %s11, %s514
      %s516 = smul.u32 2, %s27
      %p517 = scmp.lt.s32.totalorder %s26, 1
      %s518 = scalar_select %p517, %s26, 1
      %p519 = scmp.lt.s32.totalorder %s516, 1
      %s520 = scalar_select %p519, %s516, 1
      %s521 = smul.addr %s518, 8
      %s522 = sadd.s32 %s520, %s521
      %s523 = smul.addr %s522, 8
      %s524 = scalar_lea.vmem %s0, %s523
      %s525 = smul.u32 2, %s27
      %s526 = smul.u32 2, %s27
      %p527 = scmp.lt.s32.totalorder %s26, 1
      %s528 = scalar_select %p527, %s26, 1
      %p529 = scmp.lt.s32.totalorder %s526, 1
      %s530 = scalar_select %p529, %s526, 1
      %s531 = smul.addr %s528, 8
      %s532 = sadd.s32 %s530, %s531
      %s533 = smul.addr %s532, 8
      %s534 = scalar_lea.vmem %s1, %s533
      %s535 = smul.u32 2, %s27
      %s536 = smul.u32 2, %s27
      %p537 = scmp.lt.s32.totalorder %s26, 1
      %s538 = scalar_select %p537, %s26, 1
      %p539 = scmp.lt.s32.totalorder %s536, 1
      %s540 = scalar_select %p539, %s536, 1
      %s541 = smul.addr %s538, 8
      %s542 = sadd.s32 %s540, %s541
      %s543 = smul.addr %s542, 8
      %s544 = scalar_lea.vmem %s2, %s543
      %s545 = smul.u32 2, %s27
      %p546 = scmp.lt.s32.totalorder %s26, 1
      %s547 = scalar_select %p546, %s26, 1
      %s548 = smul.addr %s547, 4
      %s549 = smul.addr %s548, 8
      %s550 = scalar_lea.vmem %s3, %s549
      %p551 = scmp.lt.s32.totalorder %s26, 1
      %s552 = scalar_select %p551, %s26, 1
      %s553 = smul.addr %s552, 4
      %s554 = smul.addr %s553, 8
      %s555 = scalar_lea.vmem %s4, %s554
      %s556 = smul.u32 2, %s27
      %p557 = scmp.lt.s32.totalorder %s556, 1
      %s558 = scalar_select %p557, %s556, 1
      %s559 = scalar_lea.vmem %s5, %s558
      %s560 = smul.u32 2, %s27
      %s561 = smul.u32 2, %s27
      %p562 = scmp.lt.s32.totalorder %s561, 1
      %s563 = scalar_select %p562, %s561, 1
      %s564 = scalar_lea.vmem %s6, %s563
      %s565 = smul.u32 2, %s27
      %s566 = smul.u32 2, %s27
      %p567 = scmp.lt.s32.totalorder %s26, 1
      %s568 = scalar_select %p567, %s26, 1
      %p569 = scmp.lt.s32.totalorder %s566, 1
      %s570 = scalar_select %p569, %s566, 1
      %s571 = smul.addr %s568, 8
      %s572 = sadd.s32 %s570, %s571
      %s573 = smul.addr %s572, 8
      %s574 = scalar_lea.vmem %s11, %s573
      %s575 = smul.u32 2, %s27
      %v577 = vld [vmem:[%s524] sm:$0xff]
      %v578 = vld [vmem:[%s524 + $0x8] sm:$0xff]
      %v579 = vld [vmem:[%s524 + $0x10] sm:$0xff]
      %v580 = vld [vmem:[%s524 + $0x18] sm:$0xff]
      %v581 = vld [vmem:[%s524 + $0x20] sm:$0xff]
      %v582 = vld [vmem:[%s524 + $0x28] sm:$0xff]
      %v583 = vld [vmem:[%s524 + $0x30] sm:$0xff]
      %v584 = vld [vmem:[%s524 + $0x38] sm:$0xff]
      %v585 = vld [vmem:[%s534] sm:$0xff]
      %v586 = vld [vmem:[%s534 + $0x8] sm:$0xff]
      %v587 = vld [vmem:[%s534 + $0x10] sm:$0xff]
      %v588 = vld [vmem:[%s534 + $0x18] sm:$0xff]
      %v589 = vld [vmem:[%s534 + $0x20] sm:$0xff]
      %v590 = vld [vmem:[%s534 + $0x28] sm:$0xff]
      %v591 = vld [vmem:[%s534 + $0x30] sm:$0xff]
      %v592 = vld [vmem:[%s534 + $0x38] sm:$0xff]
      %v593 = vld [vmem:[%s544] sm:$0xff]
      %v594 = vld [vmem:[%s544 + $0x8] sm:$0xff]
      %v595 = vld [vmem:[%s544 + $0x10] sm:$0xff]
      %v596 = vld [vmem:[%s544 + $0x18] sm:$0xff]
      %v597 = vld [vmem:[%s544 + $0x20] sm:$0xff]
      %v598 = vld [vmem:[%s544 + $0x28] sm:$0xff]
      %v599 = vld [vmem:[%s544 + $0x30] sm:$0xff]
      %v600 = vld [vmem:[%s544 + $0x38] sm:$0xff]
      %v601 = vadd.f32 %v577, %v585
      %v602 = vadd.f32 %v578, %v586
      %v603 = vadd.f32 %v579, %v587
      %v604 = vadd.f32 %v580, %v588
      %v605 = vadd.f32 %v581, %v589
      %v606 = vadd.f32 %v582, %v590
      %v607 = vadd.f32 %v583, %v591
      %v608 = vadd.f32 %v584, %v592
      %v609 = vadd.f32 %v601, %v593
      %v610 = vadd.f32 %v602, %v594
      %v611 = vadd.f32 %v603, %v595
      %v612 = vadd.f32 %v604, %v596
      %v613 = vadd.f32 %v605, %v597
      %v614 = vadd.f32 %v606, %v598
      %v615 = vadd.f32 %v607, %v599
      %v616 = vadd.f32 %v608, %v600
      %v617 = vld [vmem:[%s550] sm:$0xff]
      %v618 = vld [vmem:[%s550 + $0x8] sm:$0xff]
      %v619 = vld [vmem:[%s550 + $0x10] sm:$0xff]
      %v620 = vld [vmem:[%s550 + $0x18] sm:$0xff]
      %622 = vset.pattern.permute.xlu0 0
      %623 = vperm.xlu0 %622, %v617
      %v624 = vpop.permute.xlu0 %623
      %627 = vset.pattern.permute.xlu0 0
      %628 = vperm.xlu0 %627, %v618
      %v629 = vpop.permute.xlu0 %628
      %632 = vset.pattern.permute.xlu0 0
      %633 = vperm.xlu0 %632, %v619
      %v634 = vpop.permute.xlu0 %633
      %637 = vset.pattern.permute.xlu0 0
      %638 = vperm.xlu0 %637, %v620
      %v639 = vpop.permute.xlu0 %638
      %v641 = vsub.f32 %v609, %v624
      %v642 = vsub.f32 %v610, %v624
      %v643 = vsub.f32 %v611, %v629
      %v644 = vsub.f32 %v612, %v629
      %v645 = vsub.f32 %v613, %v634
      %v646 = vsub.f32 %v614, %v634
      %v647 = vsub.f32 %v615, %v639
      %v648 = vsub.f32 %v616, %v639
      %v649 = vld [vmem:[%s555] sm:$0xff]
      %v650 = vld [vmem:[%s555 + $0x8] sm:$0xff]
      %v651 = vld [vmem:[%s555 + $0x10] sm:$0xff]
      %v652 = vld [vmem:[%s555 + $0x18] sm:$0xff]
      %654 = vset.pattern.permute.xlu0 0
      %655 = vperm.xlu0 %654, %v649
      %v656 = vpop.permute.xlu0 %655
      %659 = vset.pattern.permute.xlu0 0
      %660 = vperm.xlu0 %659, %v650
      %v661 = vpop.permute.xlu0 %660
      %664 = vset.pattern.permute.xlu0 0
      %665 = vperm.xlu0 %664, %v651
      %v666 = vpop.permute.xlu0 %665
      %669 = vset.pattern.permute.xlu0 0
      %670 = vperm.xlu0 %669, %v652
      %v671 = vpop.permute.xlu0 %670
      %v673 = vmul.f32 %v641, %v656
      %v674 = vmul.f32 %v642, %v656
      %v675 = vmul.f32 %v643, %v661
      %v676 = vmul.f32 %v644, %v661
      %v677 = vmul.f32 %v645, %v666
      %v678 = vmul.f32 %v646, %v666
      %v679 = vmul.f32 %v647, %v671
      %v680 = vmul.f32 %v648, %v671
      %v681 = vld [vmem:[%s559] sm:$0x3]
      %v683 = vlaneseq
      %v684 = vshrl.u32 %v683, 7
      %v685 = vsub.s32 0, %v684
      %v686 = vrot.slane %v681, %v685
      %v687 = vlaneseq
      %v688 = vshrl.u32 %v687, 7
      %v689 = vsub.s32 1, %v688
      %v690 = vrot.slane %v681, %v689
      %v693 = vmul.f32 %v673, %v686
      %v694 = vmul.f32 %v674, %v690
      %v695 = vmul.f32 %v675, %v686
      %v696 = vmul.f32 %v676, %v690
      %v697 = vmul.f32 %v677, %v686
      %v698 = vmul.f32 %v678, %v690
      %v699 = vmul.f32 %v679, %v686
      %v700 = vmul.f32 %v680, %v690
      %v701 = vld [vmem:[%s564] sm:$0x3]
      %v703 = vlaneseq
      %v704 = vshrl.u32 %v703, 7
      %v705 = vsub.s32 0, %v704
      %v706 = vrot.slane %v701, %v705
      %v707 = vlaneseq
      %v708 = vshrl.u32 %v707, 7
      %v709 = vsub.s32 1, %v708
      %v710 = vrot.slane %v701, %v709
      %v713 = vadd.f32 %v693, %v706
      %v714 = vadd.f32 %v694, %v710
      %v715 = vadd.f32 %v695, %v706
      %v716 = vadd.f32 %v696, %v710
      %v717 = vadd.f32 %v697, %v706
      %v718 = vadd.f32 %v698, %v710
      %v719 = vadd.f32 %v699, %v706
      %v720 = vadd.f32 %v700, %v710
      %v721 = vld [vmem:[%s7] sm:$0xf]
      %v722 = vld [vmem:[%s7 + $0x4] sm:$0xf]
      %v723 = vld [vmem:[%s7 + $0x8] sm:$0xf]
      %v724 = vld [vmem:[%s7 + $0xc] sm:$0xf]
      %v725 = vld [vmem:[%s7 + $0x10] sm:$0xf]
      %v726 = vld [vmem:[%s7 + $0x14] sm:$0xf]
      %v727 = vld [vmem:[%s7 + $0x18] sm:$0xf]
      %v728 = vld [vmem:[%s7 + $0x1c] sm:$0xf]
      %v729 = vld [vmem:[%s7 + $0x20] sm:$0xf]
      %v730 = vld [vmem:[%s7 + $0x24] sm:$0xf]
      %v731 = vld [vmem:[%s7 + $0x28] sm:$0xf]
      %v732 = vld [vmem:[%s7 + $0x2c] sm:$0xf]
      %v733 = vld [vmem:[%s7 + $0x30] sm:$0xf]
      %v734 = vld [vmem:[%s7 + $0x34] sm:$0xf]
      %v735 = vld [vmem:[%s7 + $0x38] sm:$0xf]
      %v736 = vld [vmem:[%s7 + $0x3c] sm:$0xf]
      %v737 = vpack.c.bf16 %v715, %v713
      %v738 = vpack.c.bf16 %v716, %v714
      %v739 = vpack.c.bf16 %v719, %v717
      %v740 = vpack.c.bf16 %v720, %v718
      %v741 = vld [vmem:[%s8] sm:$0xff]
      %v742 = vld [vmem:[%s8 + $0x8] sm:$0xff]
      %v743 = vld [vmem:[%s8 + $0x10] sm:$0xff]
      %v744 = vld [vmem:[%s8 + $0x18] sm:$0xff]
      %v745 = vld [vmem:[%s8 + $0x20] sm:$0xff]
      %v746 = vld [vmem:[%s8 + $0x28] sm:$0xff]
      %v747 = vld [vmem:[%s8 + $0x30] sm:$0xff]
      %v748 = vld [vmem:[%s8 + $0x38] sm:$0xff]
      %v749 = vld [vmem:[%s8 + $0x40] sm:$0xff]
      %v750 = vld [vmem:[%s8 + $0x48] sm:$0xff]
      %v751 = vld [vmem:[%s8 + $0x50] sm:$0xff]
      %v752 = vld [vmem:[%s8 + $0x58] sm:$0xff]
      %v753 = vld [vmem:[%s8 + $0x60] sm:$0xff]
      %v754 = vld [vmem:[%s8 + $0x68] sm:$0xff]
      %v755 = vld [vmem:[%s8 + $0x70] sm:$0xff]
      %v756 = vld [vmem:[%s8 + $0x78] sm:$0xff]
      %758 = vset.pattern.permute.xlu0 0
      %759 = vperm.xlu0 %758, %v741
      %v760 = vpop.permute.xlu0 %759
      %763 = vset.pattern.permute.xlu0 0
      %764 = vperm.xlu0 %763, %v742
      %v765 = vpop.permute.xlu0 %764
      %768 = vset.pattern.permute.xlu0 0
      %769 = vperm.xlu0 %768, %v743
      %v770 = vpop.permute.xlu0 %769
      %773 = vset.pattern.permute.xlu0 0
      %774 = vperm.xlu0 %773, %v744
      %v775 = vpop.permute.xlu0 %774
      %778 = vset.pattern.permute.xlu0 0
      %779 = vperm.xlu0 %778, %v745
      %v780 = vpop.permute.xlu0 %779
      %783 = vset.pattern.permute.xlu0 0
      %784 = vperm.xlu0 %783, %v746
      %v785 = vpop.permute.xlu0 %784
      %788 = vset.pattern.permute.xlu0 0
      %789 = vperm.xlu0 %788, %v747
      %v790 = vpop.permute.xlu0 %789
      %793 = vset.pattern.permute.xlu0 0
      %794 = vperm.xlu0 %793, %v748
      %v795 = vpop.permute.xlu0 %794
      %798 = vset.pattern.permute.xlu0 0
      %799 = vperm.xlu0 %798, %v749
      %v800 = vpop.permute.xlu0 %799
      %803 = vset.pattern.permute.xlu0 0
      %804 = vperm.xlu0 %803, %v750
      %v805 = vpop.permute.xlu0 %804
      %808 = vset.pattern.permute.xlu0 0
      %809 = vperm.xlu0 %808, %v751
      %v810 = vpop.permute.xlu0 %809
      %813 = vset.pattern.permute.xlu0 0
      %814 = vperm.xlu0 %813, %v752
      %v815 = vpop.permute.xlu0 %814
      %818 = vset.pattern.permute.xlu0 0
      %819 = vperm.xlu0 %818, %v753
      %v820 = vpop.permute.xlu0 %819
      %823 = vset.pattern.permute.xlu0 0
      %824 = vperm.xlu0 %823, %v754
      %v825 = vpop.permute.xlu0 %824
      %828 = vset.pattern.permute.xlu0 0
      %829 = vperm.xlu0 %828, %v755
      %v830 = vpop.permute.xlu0 %829
      %833 = vset.pattern.permute.xlu0 0
      %834 = vperm.xlu0 %833, %v756
      %v835 = vpop.permute.xlu0 %834
      %v853 = vunpack.c.l.b16 %v721
      %v854 = vunpack.c.l.b16 %v722
      %v855 = vunpack.c.l.b16 %v723
      %v856 = vunpack.c.l.b16 %v724
      %v857 = vunpack.c.l.b16 %v725
      %v858 = vunpack.c.l.b16 %v726
      %v859 = vunpack.c.l.b16 %v727
      %v860 = vunpack.c.l.b16 %v728
      %v861 = vunpack.c.l.b16 %v729
      %v862 = vunpack.c.l.b16 %v730
      %v863 = vunpack.c.l.b16 %v731
      %v864 = vunpack.c.l.b16 %v732
      %v865 = vunpack.c.l.b16 %v733
      %v866 = vunpack.c.l.b16 %v734
      %v867 = vunpack.c.l.b16 %v735
      %v868 = vunpack.c.l.b16 %v736
      %v869 = vpack.c.b16 %v854, %v853
      %v870 = vpack.c.b16 %v856, %v855
      %v871 = vpack.c.b16 %v858, %v857
      %v872 = vpack.c.b16 %v860, %v859
      %v873 = vpack.c.b16 %v862, %v861
      %v874 = vpack.c.b16 %v864, %v863
      %v875 = vpack.c.b16 %v866, %v865
      %v876 = vpack.c.b16 %v868, %v867
      %vm877 = vcmask 261120
      %v879 = vsel %vm877, %v869, 0
      %v882 = vsel %vm877, %v870, 0
      %v885 = vsel %vm877, %v871, 0
      %v888 = vsel %vm877, %v872, 0
      %v891 = vsel %vm877, %v873, 0
      %v894 = vsel %vm877, %v874, 0
      %v897 = vsel %vm877, %v875, 0
      %v900 = vsel %vm877, %v876, 0
      %902 = vmatprep.subr.bf16.mxu0 0
      %903 = vmatpush1.bf16.msra.mxu0 0
      %904 = vmatprep.subr.bf16.mxu0 0
      %905 = vmatpush1.bf16.msra.mxu0 0
      %906 = vmatprep.subr.bf16.mxu0 0
      %907 = vmatpush1.bf16.msra.mxu0 0
      %908 = vmatprep.subr.bf16.mxu0 0
      %909 = vmatpush1.bf16.msra.mxu0 0
      %910 = vmatprep.subr.bf16.mxu0 0
      %911 = vmatpush1.bf16.msra.mxu0 0
      %912 = vmatprep.subr.bf16.mxu0 0
      %913 = vmatpush1.bf16.msra.mxu0 0
      %914 = vmatprep.subr.bf16.mxu0 %v740
      %915 = vmatpush1.bf16.msra.mxu0 %v739
      %916 = vmatprep.subr.bf16.mxu0 %v738
      %917 = vmatpush1.bf16.msra.mxu0 %v737
      %918 = vmatprep.subr.bf16.mxu0 0
      %919 = vmatpush2.bf16.msra.mxu0 0
      %920 = vmatprep.subr.bf16.mxu0 0
      %921 = vmatpush2.bf16.msra.mxu0 0
      %922 = vmatprep.subr.bf16.mxu0 0
      %923 = vmatpush2.bf16.msra.mxu0 0
      %924 = vmatprep.subr.bf16.mxu0 0
      %925 = vmatpush2.bf16.msra.mxu0 0
      %926 = vmatprep.subr.bf16.mxu0 0
      %927 = vmatpush2.bf16.msra.mxu0 0
      %928 = vmatprep.subr.bf16.mxu0 0
      %929 = vmatpush2.bf16.msra.mxu0 0
      %930 = vmatprep.subr.bf16.mxu0 0
      %931 = vmatpush2.bf16.msra.mxu0 0
      %932 = vmatprep.subr.bf16.mxu0 0
      %933 = vmatpush2.bf16.msra.mxu0 0
      %934 = vmatprep.mubr.bf16.mxu0 0
      %935 = vmatmul.mubr.bf16.gmra.mxu0 %v879
      %v936 = vpop.f32.mrf.mxu0
      %v937 = vadd.f32 %v760, %v936
      %v938 = vpop.f32.mrf.mxu0
      %v939 = vadd.f32 %v760, %v938
      %v940 = vpop.f32.mrf.mxu0
      %v941 = vadd.f32 %v765, %v940
      %v942 = vpop.f32.mrf.mxu0
      %v943 = vadd.f32 %v765, %v942
      %944 = vmatprep.mubr.bf16.mxu0 0
      %945 = vmatmul.mubr.bf16.gmra.mxu0 %v882
      %v946 = vpop.f32.mrf.mxu0
      %v947 = vadd.f32 %v770, %v946
      %v948 = vpop.f32.mrf.mxu0
      %v949 = vadd.f32 %v770, %v948
      %v950 = vpop.f32.mrf.mxu0
      %v951 = vadd.f32 %v775, %v950
      %v952 = vpop.f32.mrf.mxu0
      %v953 = vadd.f32 %v775, %v952
      %954 = vmatprep.mubr.bf16.mxu0 0
      %955 = vmatmul.mubr.bf16.gmra.mxu0 %v885
      %v956 = vpop.f32.mrf.mxu0
      %v957 = vadd.f32 %v780, %v956
      %v958 = vpop.f32.mrf.mxu0
      %v959 = vadd.f32 %v780, %v958
      %v960 = vpop.f32.mrf.mxu0
      %v961 = vadd.f32 %v785, %v960
      %v962 = vpop.f32.mrf.mxu0
      %v963 = vadd.f32 %v785, %v962
      %964 = vmatprep.mubr.bf16.mxu0 0
      %965 = vmatmul.mubr.bf16.gmra.mxu0 %v888
      %v966 = vpop.f32.mrf.mxu0
      %v967 = vadd.f32 %v790, %v966
      %v968 = vpop.f32.mrf.mxu0
      %v969 = vadd.f32 %v790, %v968
      %v970 = vpop.f32.mrf.mxu0
      %v971 = vadd.f32 %v795, %v970
      %v972 = vpop.f32.mrf.mxu0
      %v973 = vadd.f32 %v795, %v972
      %974 = vmatprep.mubr.bf16.mxu0 0
      %975 = vmatmul.mubr.bf16.gmra.mxu0 %v891
      %v976 = vpop.f32.mrf.mxu0
      %v977 = vadd.f32 %v800, %v976
      %v978 = vpop.f32.mrf.mxu0
      %v979 = vadd.f32 %v800, %v978
      %v980 = vpop.f32.mrf.mxu0
      %v981 = vadd.f32 %v805, %v980
      %v982 = vpop.f32.mrf.mxu0
      %v983 = vadd.f32 %v805, %v982
      %984 = vmatprep.mubr.bf16.mxu0 0
      %985 = vmatmul.mubr.bf16.gmra.mxu0 %v894
      %v986 = vpop.f32.mrf.mxu0
      %v987 = vadd.f32 %v810, %v986
      %v988 = vpop.f32.mrf.mxu0
      %v989 = vadd.f32 %v810, %v988
      %v990 = vpop.f32.mrf.mxu0
      %v991 = vadd.f32 %v815, %v990
      %v992 = vpop.f32.mrf.mxu0
      %v993 = vadd.f32 %v815, %v992
      %994 = vmatprep.mubr.bf16.mxu0 0
      %995 = vmatmul.mubr.bf16.gmra.mxu0 %v897
      %v996 = vpop.f32.mrf.mxu0
      %v997 = vadd.f32 %v820, %v996
      %v998 = vpop.f32.mrf.mxu0
      %v999 = vadd.f32 %v820, %v998
      %v1000 = vpop.f32.mrf.mxu0
      %v1001 = vadd.f32 %v825, %v1000
      %v1002 = vpop.f32.mrf.mxu0
      %v1003 = vadd.f32 %v825, %v1002
      %1004 = vmatprep.mubr.bf16.mxu0 0
      %1005 = vmatmul.mubr.bf16.gmra.mxu0 %v900
      %v1006 = vpop.f32.mrf.mxu0
      %v1007 = vadd.f32 %v830, %v1006
      %v1008 = vpop.f32.mrf.mxu0
      %v1009 = vadd.f32 %v830, %v1008
      %v1010 = vpop.f32.mrf.mxu0
      %v1011 = vadd.f32 %v835, %v1010
      %v1012 = vpop.f32.mrf.mxu0
      %v1013 = vadd.f32 %v835, %v1012
      %1014 = vdwg.mxu0
      %v1015 = vmul.f32 %v937, 0.5
      %v1016 = vmul.f32 %v939, 0.5
      %v1017 = vmul.f32 %v941, 0.5
      %v1018 = vmul.f32 %v943, 0.5
      %v1019 = vmul.f32 %v947, 0.5
      %v1020 = vmul.f32 %v949, 0.5
      %v1021 = vmul.f32 %v951, 0.5
      %v1022 = vmul.f32 %v953, 0.5
      %v1023 = vmul.f32 %v957, 0.5
      %v1024 = vmul.f32 %v959, 0.5
      %v1025 = vmul.f32 %v961, 0.5
      %v1026 = vmul.f32 %v963, 0.5
      %v1027 = vmul.f32 %v967, 0.5
      %v1028 = vmul.f32 %v969, 0.5
      %v1029 = vmul.f32 %v971, 0.5
      %v1030 = vmul.f32 %v973, 0.5
      %v1031 = vmul.f32 %v977, 0.5
      %v1032 = vmul.f32 %v979, 0.5
      %v1033 = vmul.f32 %v981, 0.5
      %v1034 = vmul.f32 %v983, 0.5
      %v1035 = vmul.f32 %v987, 0.5
      %v1036 = vmul.f32 %v989, 0.5
      %v1037 = vmul.f32 %v991, 0.5
      %v1038 = vmul.f32 %v993, 0.5
      %v1039 = vmul.f32 %v997, 0.5
      %v1040 = vmul.f32 %v999, 0.5
      %v1041 = vmul.f32 %v1001, 0.5
      %v1042 = vmul.f32 %v1003, 0.5
      %v1043 = vmul.f32 %v1007, 0.5
      %v1044 = vmul.f32 %v1009, 0.5
      %v1045 = vmul.f32 %v1011, 0.5
      %v1046 = vmul.f32 %v1013, 0.5
      %v1047 = vmul.f32 %v937, 0.044715
      %v1048 = vmul.f32 %v939, 0.044715
      %v1049 = vmul.f32 %v941, 0.044715
      %v1050 = vmul.f32 %v943, 0.044715
      %v1051 = vmul.f32 %v947, 0.044715
      %v1052 = vmul.f32 %v949, 0.044715
      %v1053 = vmul.f32 %v951, 0.044715
      %v1054 = vmul.f32 %v953, 0.044715
      %v1055 = vmul.f32 %v957, 0.044715
      %v1056 = vmul.f32 %v959, 0.044715
      %v1057 = vmul.f32 %v961, 0.044715
      %v1058 = vmul.f32 %v963, 0.044715
      %v1059 = vmul.f32 %v967, 0.044715
      %v1060 = vmul.f32 %v969, 0.044715
      %v1061 = vmul.f32 %v971, 0.044715
      %v1062 = vmul.f32 %v973, 0.044715
      %v1063 = vmul.f32 %v977, 0.044715
      %v1064 = vmul.f32 %v979, 0.044715
      %v1065 = vmul.f32 %v981, 0.044715
      %v1066 = vmul.f32 %v983, 0.044715
      %v1067 = vmul.f32 %v987, 0.044715
      %v1068 = vmul.f32 %v989, 0.044715
      %v1069 = vmul.f32 %v991, 0.044715
      %v1070 = vmul.f32 %v993, 0.044715
      %v1071 = vmul.f32 %v997, 0.044715
      %v1072 = vmul.f32 %v999, 0.044715
      %v1073 = vmul.f32 %v1001, 0.044715
      %v1074 = vmul.f32 %v1003, 0.044715
      %v1075 = vmul.f32 %v1007, 0.044715
      %v1076 = vmul.f32 %v1009, 0.044715
      %v1077 = vmul.f32 %v1011, 0.044715
      %v1078 = vmul.f32 %v1013, 0.044715
      %v1079 = vmul.f32 %v1047, %v937
      %v1080 = vmul.f32 %v1048, %v939
      %v1081 = vmul.f32 %v1049, %v941
      %v1082 = vmul.f32 %v1050, %v943
      %v1083 = vmul.f32 %v1051, %v947
      %v1084 = vmul.f32 %v1052, %v949
      %v1085 = vmul.f32 %v1053, %v951
      %v1086 = vmul.f32 %v1054, %v953
      %v1087 = vmul.f32 %v1055, %v957
      %v1088 = vmul.f32 %v1056, %v959
      %v1089 = vmul.f32 %v1057, %v961
      %v1090 = vmul.f32 %v1058, %v963
      %v1091 = vmul.f32 %v1059, %v967
      %v1092 = vmul.f32 %v1060, %v969
      %v1093 = vmul.f32 %v1061, %v971
      %v1094 = vmul.f32 %v1062, %v973
      %v1095 = vmul.f32 %v1063, %v977
      %v1096 = vmul.f32 %v1064, %v979
      %v1097 = vmul.f32 %v1065, %v981
      %v1098 = vmul.f32 %v1066, %v983
      %v1099 = vmul.f32 %v1067, %v987
      %v1100 = vmul.f32 %v1068, %v989
      %v1101 = vmul.f32 %v1069, %v991
      %v1102 = vmul.f32 %v1070, %v993
      %v1103 = vmul.f32 %v1071, %v997
      %v1104 = vmul.f32 %v1072, %v999
      %v1105 = vmul.f32 %v1073, %v1001
      %v1106 = vmul.f32 %v1074, %v1003
      %v1107 = vmul.f32 %v1075, %v1007
      %v1108 = vmul.f32 %v1076, %v1009
      %v1109 = vmul.f32 %v1077, %v1011
      %v1110 = vmul.f32 %v1078, %v1013
      %v1111 = vmul.f32 %v1079, %v937
      %v1112 = vmul.f32 %v1080, %v939
      %v1113 = vmul.f32 %v1081, %v941
      %v1114 = vmul.f32 %v1082, %v943
      %v1115 = vmul.f32 %v1083, %v947
      %v1116 = vmul.f32 %v1084, %v949
      %v1117 = vmul.f32 %v1085, %v951
      %v1118 = vmul.f32 %v1086, %v953
      %v1119 = vmul.f32 %v1087, %v957
      %v1120 = vmul.f32 %v1088, %v959
      %v1121 = vmul.f32 %v1089, %v961
      %v1122 = vmul.f32 %v1090, %v963
      %v1123 = vmul.f32 %v1091, %v967
      %v1124 = vmul.f32 %v1092, %v969
      %v1125 = vmul.f32 %v1093, %v971
      %v1126 = vmul.f32 %v1094, %v973
      %v1127 = vmul.f32 %v1095, %v977
      %v1128 = vmul.f32 %v1096, %v979
      %v1129 = vmul.f32 %v1097, %v981
      %v1130 = vmul.f32 %v1098, %v983
      %v1131 = vmul.f32 %v1099, %v987
      %v1132 = vmul.f32 %v1100, %v989
      %v1133 = vmul.f32 %v1101, %v991
      %v1134 = vmul.f32 %v1102, %v993
      %v1135 = vmul.f32 %v1103, %v997
      %v1136 = vmul.f32 %v1104, %v999
      %v1137 = vmul.f32 %v1105, %v1001
      %v1138 = vmul.f32 %v1106, %v1003
      %v1139 = vmul.f32 %v1107, %v1007
      %v1140 = vmul.f32 %v1108, %v1009
      %v1141 = vmul.f32 %v1109, %v1011
      %v1142 = vmul.f32 %v1110, %v1013
      %v1143 = vadd.f32 %v937, %v1111
      %v1144 = vadd.f32 %v939, %v1112
      %v1145 = vadd.f32 %v941, %v1113
      %v1146 = vadd.f32 %v943, %v1114
      %v1147 = vadd.f32 %v947, %v1115
      %v1148 = vadd.f32 %v949, %v1116
      %v1149 = vadd.f32 %v951, %v1117
      %v1150 = vadd.f32 %v953, %v1118
      %v1151 = vadd.f32 %v957, %v1119
      %v1152 = vadd.f32 %v959, %v1120
      %v1153 = vadd.f32 %v961, %v1121
      %v1154 = vadd.f32 %v963, %v1122
      %v1155 = vadd.f32 %v967, %v1123
      %v1156 = vadd.f32 %v969, %v1124
      %v1157 = vadd.f32 %v971, %v1125
      %v1158 = vadd.f32 %v973, %v1126
      %v1159 = vadd.f32 %v977, %v1127
      %v1160 = vadd.f32 %v979, %v1128
      %v1161 = vadd.f32 %v981, %v1129
      %v1162 = vadd.f32 %v983, %v1130
      %v1163 = vadd.f32 %v987, %v1131
      %v1164 = vadd.f32 %v989, %v1132
      %v1165 = vadd.f32 %v991, %v1133
      %v1166 = vadd.f32 %v993, %v1134
      %v1167 = vadd.f32 %v997, %v1135
      %v1168 = vadd.f32 %v999, %v1136
      %v1169 = vadd.f32 %v1001, %v1137
      %v1170 = vadd.f32 %v1003, %v1138
      %v1171 = vadd.f32 %v1007, %v1139
      %v1172 = vadd.f32 %v1009, %v1140
      %v1173 = vadd.f32 %v1011, %v1141
      %v1174 = vadd.f32 %v1013, %v1142
      %v1175 = vmul.f32 %v1143, 0.7978846
      %v1176 = vmul.f32 %v1144, 0.7978846
      %v1177 = vmul.f32 %v1145, 0.7978846
      %v1178 = vmul.f32 %v1146, 0.7978846
      %v1179 = vmul.f32 %v1147, 0.7978846
      %v1180 = vmul.f32 %v1148, 0.7978846
      %v1181 = vmul.f32 %v1149, 0.7978846
      %v1182 = vmul.f32 %v1150, 0.7978846
      %v1183 = vmul.f32 %v1151, 0.7978846
      %v1184 = vmul.f32 %v1152, 0.7978846
      %v1185 = vmul.f32 %v1153, 0.7978846
      %v1186 = vmul.f32 %v1154, 0.7978846
      %v1187 = vmul.f32 %v1155, 0.7978846
      %v1188 = vmul.f32 %v1156, 0.7978846
      %v1189 = vmul.f32 %v1157, 0.7978846
      %v1190 = vmul.f32 %v1158, 0.7978846
      %v1191 = vmul.f32 %v1159, 0.7978846
      %v1192 = vmul.f32 %v1160, 0.7978846
      %v1193 = vmul.f32 %v1161, 0.7978846
      %v1194 = vmul.f32 %v1162, 0.7978846
      %v1195 = vmul.f32 %v1163, 0.7978846
      %v1196 = vmul.f32 %v1164, 0.7978846
      %v1197 = vmul.f32 %v1165, 0.7978846
      %v1198 = vmul.f32 %v1166, 0.7978846
      %v1199 = vmul.f32 %v1167, 0.7978846
      %v1200 = vmul.f32 %v1168, 0.7978846
      %v1201 = vmul.f32 %v1169, 0.7978846
      %v1202 = vmul.f32 %v1170, 0.7978846
      %v1203 = vmul.f32 %v1171, 0.7978846
      %v1204 = vmul.f32 %v1172, 0.7978846
      %v1205 = vmul.f32 %v1173, 0.7978846
      %v1206 = vmul.f32 %v1174, 0.7978846
      %v1207 = vtanh.pop %v1175
      %v1208 = vtanh.pop %v1176
      %v1209 = vtanh.pop %v1177
      %v1210 = vtanh.pop %v1178
      %v1211 = vtanh.pop %v1179
      %v1212 = vtanh.pop %v1180
      %v1213 = vtanh.pop %v1181
      %v1214 = vtanh.pop %v1182
      %v1215 = vtanh.pop %v1183
      %v1216 = vtanh.pop %v1184
      %v1217 = vtanh.pop %v1185
      %v1218 = vtanh.pop %v1186
      %v1219 = vtanh.pop %v1187
      %v1220 = vtanh.pop %v1188
      %v1221 = vtanh.pop %v1189
      %v1222 = vtanh.pop %v1190
      %v1223 = vtanh.pop %v1191
      %v1224 = vtanh.pop %v1192
      %v1225 = vtanh.pop %v1193
      %v1226 = vtanh.pop %v1194
      %v1227 = vtanh.pop %v1195
      %v1228 = vtanh.pop %v1196
      %v1229 = vtanh.pop %v1197
      %v1230 = vtanh.pop %v1198
      %v1231 = vtanh.pop %v1199
      %v1232 = vtanh.pop %v1200
      %v1233 = vtanh.pop %v1201
      %v1234 = vtanh.pop %v1202
      %v1235 = vtanh.pop %v1203
      %v1236 = vtanh.pop %v1204
      %v1237 = vtanh.pop %v1205
      %v1238 = vtanh.pop %v1206
      %v1239 = vadd.f32 %v1207, 1.0
      %v1240 = vadd.f32 %v1208, 1.0
      %v1241 = vadd.f32 %v1209, 1.0
      %v1242 = vadd.f32 %v1210, 1.0
      %v1243 = vadd.f32 %v1211, 1.0
      %v1244 = vadd.f32 %v1212, 1.0
      %v1245 = vadd.f32 %v1213, 1.0
      %v1246 = vadd.f32 %v1214, 1.0
      %v1247 = vadd.f32 %v1215, 1.0
      %v1248 = vadd.f32 %v1216, 1.0
      %v1249 = vadd.f32 %v1217, 1.0
      %v1250 = vadd.f32 %v1218, 1.0
      %v1251 = vadd.f32 %v1219, 1.0
      %v1252 = vadd.f32 %v1220, 1.0
      %v1253 = vadd.f32 %v1221, 1.0
      %v1254 = vadd.f32 %v1222, 1.0
      %v1255 = vadd.f32 %v1223, 1.0
      %v1256 = vadd.f32 %v1224, 1.0
      %v1257 = vadd.f32 %v1225, 1.0
      %v1258 = vadd.f32 %v1226, 1.0
      %v1259 = vadd.f32 %v1227, 1.0
      %v1260 = vadd.f32 %v1228, 1.0
      %v1261 = vadd.f32 %v1229, 1.0
      %v1262 = vadd.f32 %v1230, 1.0
      %v1263 = vadd.f32 %v1231, 1.0
      %v1264 = vadd.f32 %v1232, 1.0
      %v1265 = vadd.f32 %v1233, 1.0
      %v1266 = vadd.f32 %v1234, 1.0
      %v1267 = vadd.f32 %v1235, 1.0
      %v1268 = vadd.f32 %v1236, 1.0
      %v1269 = vadd.f32 %v1237, 1.0
      %v1270 = vadd.f32 %v1238, 1.0
      %v1271 = vmul.f32 %v1015, %v1239
      %v1272 = vmul.f32 %v1016, %v1240
      %v1273 = vmul.f32 %v1017, %v1241
      %v1274 = vmul.f32 %v1018, %v1242
      %v1275 = vmul.f32 %v1019, %v1243
      %v1276 = vmul.f32 %v1020, %v1244
      %v1277 = vmul.f32 %v1021, %v1245
      %v1278 = vmul.f32 %v1022, %v1246
      %v1279 = vmul.f32 %v1023, %v1247
      %v1280 = vmul.f32 %v1024, %v1248
      %v1281 = vmul.f32 %v1025, %v1249
      %v1282 = vmul.f32 %v1026, %v1250
      %v1283 = vmul.f32 %v1027, %v1251
      %v1284 = vmul.f32 %v1028, %v1252
      %v1285 = vmul.f32 %v1029, %v1253
      %v1286 = vmul.f32 %v1030, %v1254
      %v1287 = vmul.f32 %v1031, %v1255
      %v1288 = vmul.f32 %v1032, %v1256
      %v1289 = vmul.f32 %v1033, %v1257
      %v1290 = vmul.f32 %v1034, %v1258
      %v1291 = vmul.f32 %v1035, %v1259
      %v1292 = vmul.f32 %v1036, %v1260
      %v1293 = vmul.f32 %v1037, %v1261
      %v1294 = vmul.f32 %v1038, %v1262
      %v1295 = vmul.f32 %v1039, %v1263
      %v1296 = vmul.f32 %v1040, %v1264
      %v1297 = vmul.f32 %v1041, %v1265
      %v1298 = vmul.f32 %v1042, %v1266
      %v1299 = vmul.f32 %v1043, %v1267
      %v1300 = vmul.f32 %v1044, %v1268
      %v1301 = vmul.f32 %v1045, %v1269
      %v1302 = vmul.f32 %v1046, %v1270
      %v1303 = vld [vmem:[%s9] sm:$0xf]
      %v1304 = vld [vmem:[%s9 + $0x4] sm:$0xf]
      %v1305 = vld [vmem:[%s9 + $0x8] sm:$0xf]
      %v1306 = vld [vmem:[%s9 + $0xc] sm:$0xf]
      %v1307 = vpack.c.bf16 %v1273, %v1271
      %v1308 = vpack.c.bf16 %v1274, %v1272
      %v1309 = vpack.c.bf16 %v1277, %v1275
      %v1310 = vpack.c.bf16 %v1278, %v1276
      %v1311 = vpack.c.bf16 %v1281, %v1279
      %v1312 = vpack.c.bf16 %v1282, %v1280
      %v1313 = vpack.c.bf16 %v1285, %v1283
      %v1314 = vpack.c.bf16 %v1286, %v1284
      %v1315 = vpack.c.bf16 %v1289, %v1287
      %v1316 = vpack.c.bf16 %v1290, %v1288
      %v1317 = vpack.c.bf16 %v1293, %v1291
      %v1318 = vpack.c.bf16 %v1294, %v1292
      %v1319 = vpack.c.bf16 %v1297, %v1295
      %v1320 = vpack.c.bf16 %v1298, %v1296
      %v1321 = vpack.c.bf16 %v1301, %v1299
      %v1322 = vpack.c.bf16 %v1302, %v1300
      %v1323 = vld [vmem:[%s10] sm:$0xff]
      %v1324 = vld [vmem:[%s10 + $0x8] sm:$0xff]
      %v1325 = vld [vmem:[%s10 + $0x10] sm:$0xff]
      %v1326 = vld [vmem:[%s10 + $0x18] sm:$0xff]
      %1328 = vset.pattern.permute.xlu0 0
      %1329 = vperm.xlu0 %1328, %v1323
      %v1330 = vpop.permute.xlu0 %1329
      %1333 = vset.pattern.permute.xlu0 0
      %1334 = vperm.xlu0 %1333, %v1324
      %v1335 = vpop.permute.xlu0 %1334
      %1338 = vset.pattern.permute.xlu0 0
      %1339 = vperm.xlu0 %1338, %v1325
      %v1340 = vpop.permute.xlu0 %1339
      %1343 = vset.pattern.permute.xlu0 0
      %1344 = vperm.xlu0 %1343, %v1326
      %v1345 = vpop.permute.xlu0 %1344
      %v1351 = vunpack.c.l.b16 %v1303
      %v1352 = vunpack.c.l.b16 %v1304
      %v1353 = vunpack.c.l.b16 %v1305
      %v1354 = vunpack.c.l.b16 %v1306
      %v1355 = vpack.c.b16 %v1352, %v1351
      %v1356 = vpack.c.b16 %v1354, %v1353
      %1359 = vmatprep.subr.bf16.mxu0 %v1322
      %1360 = vmatpush1.bf16.msra.mxu0 %v1321
      %1361 = vmatprep.subr.bf16.mxu0 %v1320
      %1362 = vmatpush1.bf16.msra.mxu0 %v1319
      %1363 = vmatprep.subr.bf16.mxu0 %v1318
      %1364 = vmatpush1.bf16.msra.mxu0 %v1317
      %1365 = vmatprep.subr.bf16.mxu0 %v1316
      %1366 = vmatpush1.bf16.msra.mxu0 %v1315
      %1367 = vmatprep.subr.bf16.mxu0 %v1314
      %1368 = vmatpush1.bf16.msra.mxu0 %v1313
      %1369 = vmatprep.subr.bf16.mxu0 %v1312
      %1370 = vmatpush1.bf16.msra.mxu0 %v1311
      %1371 = vmatprep.subr.bf16.mxu0 %v1310
      %1372 = vmatpush1.bf16.msra.mxu0 %v1309
      %1373 = vmatprep.subr.bf16.mxu0 %v1308
      %1374 = vmatpush1.bf16.msra.mxu0 %v1307
      %1375 = vmatprep.subr.bf16.mxu0 0
      %1376 = vmatpush2.bf16.msra.mxu0 0
      %1377 = vmatprep.subr.bf16.mxu0 0
      %1378 = vmatpush2.bf16.msra.mxu0 0
      %1379 = vmatprep.subr.bf16.mxu0 0
      %1380 = vmatpush2.bf16.msra.mxu0 0
      %1381 = vmatprep.subr.bf16.mxu0 0
      %1382 = vmatpush2.bf16.msra.mxu0 0
      %1383 = vmatprep.subr.bf16.mxu0 0
      %1384 = vmatpush2.bf16.msra.mxu0 0
      %1385 = vmatprep.subr.bf16.mxu0 0
      %1386 = vmatpush2.bf16.msra.mxu0 0
      %1387 = vmatprep.subr.bf16.mxu0 0
      %1388 = vmatpush2.bf16.msra.mxu0 0
      %1389 = vmatprep.subr.bf16.mxu0 0
      %1390 = vmatpush2.bf16.msra.mxu0 0
      %1391 = vmatprep.mubr.bf16.mxu0 0
      %1392 = vmatmul.mubr.bf16.gmra.mxu0 %v1355
      %v1393 = vpop.f32.mrf.mxu0
      %v1394 = vadd.f32 %v1330, %v1393
      %v1395 = vpop.f32.mrf.mxu0
      %v1396 = vadd.f32 %v1330, %v1395
      %v1397 = vpop.f32.mrf.mxu0
      %v1398 = vadd.f32 %v1335, %v1397
      %v1399 = vpop.f32.mrf.mxu0
      %v1400 = vadd.f32 %v1335, %v1399
      %1401 = vmatprep.mubr.bf16.mxu0 0
      %1402 = vmatmul.mubr.bf16.gmra.mxu0 %v1356
      %v1403 = vpop.f32.mrf.mxu0
      %v1404 = vadd.f32 %v1340, %v1403
      %v1405 = vpop.f32.mrf.mxu0
      %v1406 = vadd.f32 %v1340, %v1405
      %v1407 = vpop.f32.mrf.mxu0
      %v1408 = vadd.f32 %v1345, %v1407
      %v1409 = vpop.f32.mrf.mxu0
      %v1410 = vadd.f32 %v1345, %v1409
      %1411 = vdwg.mxu0
      %v1412 = vadd.f32 %v1394, %v609
      %v1413 = vadd.f32 %v1396, %v610
      %v1414 = vadd.f32 %v1398, %v611
      %v1415 = vadd.f32 %v1400, %v612
      %v1416 = vadd.f32 %v1404, %v613
      %v1417 = vadd.f32 %v1406, %v614
      %v1418 = vadd.f32 %v1408, %v615
      %v1419 = vadd.f32 %v1410, %v616
      %1420 = vst [vmem:[%s574] sm:$0xff] %v1412
      %1421 = vst [vmem:[%s574 + $0x8] sm:$0xff] %v1413
      %1422 = vst [vmem:[%s574 + $0x10] sm:$0xff] %v1414
      %1423 = vst [vmem:[%s574 + $0x18] sm:$0xff] %v1415
      %1424 = vst [vmem:[%s574 + $0x20] sm:$0xff] %v1416
      %1425 = vst [vmem:[%s574 + $0x28] sm:$0xff] %v1417
      %1426 = vst [vmem:[%s574 + $0x30] sm:$0xff] %v1418
      %1427 = vst [vmem:[%s574 + $0x38] sm:$0xff] %v1419
      %s1428 = smul.u32 2, %s27
      %p1429 = scmp.lt.s32.totalorder %s26, 1
      %s1430 = scalar_select %p1429, %s26, 1
      %p1431 = scmp.lt.s32.totalorder %s1428, 1
      %s1432 = scalar_select %p1431, %s1428, 1
      %s1433 = smul.addr %s1430, 8
      %s1434 = sadd.s32 %s1432, %s1433
      %s1435 = smul.addr %s1434, 8
      %s1436 = scalar_lea.vmem %s11, %s1435
      // Predicated region
      $region65: #{distributed_block_forward.7} parent=63 // pred_check
        %p1437 = pneg %p326
      $region66: #{distributed_block_forward.7} parent=63 // pred_check_branch
        %1439 = sbr.rel (%p1437) target = $region68
      $region67: #{distributed_block_forward.7} parent=63 // pred_region
        %s1440 = smul.u32 2, %s27
      $region68: #{distributed_block_forward.7} parent=63 // pred_fallthru
        _
    $region64: #{distributed_block_forward.7} parent=5 // pred_fallthru
      _
    %p1441 = scmp.le.s32.totalorder 2, %s17
    // Predicated region
    $region69: #{distributed_block_forward.7} parent=5 // pred_check
      %p1442 = pneg %p1441
    $region70: #{distributed_block_forward.7} parent=5 // pred_check_branch
      %1444 = sbr.rel (%p1442) target = $region72
    $region71: #{distributed_block_forward.7} parent=5 // pred_region
      %s1445 = ssub.s32 %s17, 2
      // Predicated region
      $region73: #{distributed_block_forward.7} parent=71 // pred_check
        %p1446 = pneg %p332
      $region74: #{distributed_block_forward.7} parent=71 // pred_check_branch
        %1448 = sbr.rel (%p1446) target = $region76
      $region75: #{distributed_block_forward.7} parent=71 // pred_region
        %s1449 = smul.u32 2, %s29
        %p1450 = scmp.lt.s32.totalorder %s28, 1
        %s1451 = scalar_select %p1450, %s28, 1
        %p1452 = scmp.lt.s32.totalorder %s1449, 1
        %s1453 = scalar_select %p1452, %s1449, 1
        %s1454 = smul.addr %s1451, 8
        %s1455 = sadd.s32 %s1453, %s1454
        %s1456 = smul.addr %s1455, 8
        %s1457 = scalar_lea.vmem %s11, %s1456
      $region76: #{distributed_block_forward.7} parent=71 // pred_fallthru
        _
    $region72: #{distributed_block_forward.7} parent=5 // pred_fallthru
      _
  $region6: #{distributed_block_forward.7} parent=0 // loop_footer
    %s21 = sadd.s32 1, %s17
  $region7: #{distributed_block_forward.7} parent=0 // loop_footer_branch
    %16 = sbr.rel target = $region3
  $region8: #{distributed_block_forward.7} parent=0 // loop_exit
    _

</llo_original>
